<compile_context>
chip_gen: v7x
topology: tpu7x:2x2x1
jax: 0.10.0
libtpu: 0.0.40
codegen_flags: <defaults>
</compile_context>

<pallas_src>
import jax
import jax.numpy as jnp
from jax import lax
from jax.experimental import pallas as pl
from jax.experimental.pallas import tpu as pltpu


def _round_up(x, m):
    return ((x + m - 1) // m) * m


def _make_gru_kernel(Tc, H, T_pad, nb):
    """Bidirectional GRU recurrence; input projections (x@Wih + b_ih) are precomputed outside."""

    def kernel(gif_ref, gib_ref, len_ref, whh_ref, bhh_ref,
               outf_ref, outb_ref, hid_ref,
               hf_sc, hb_sc):
        c = pl.program_id(0)

        @pl.when(c == 0)
        def _():
            hf_sc[...] = jnp.zeros_like(hf_sc)
            hb_sc[...] = jnp.zeros_like(hb_sc)

        lengths = len_ref[...]          # (B_pad, 1) int32, VMEM-resident
        whh = whh_ref[...]              # (2H, 6H) f32 block-diagonal: [Whh_f 0; 0 Whh_b]
        bhh = bhh_ref[...]              # (1, 6H) f32: [b_hh_f | b_hh_b]
        t0 = c * Tc

        def gates(gi, gh_d, h):
            # PyTorch GRU cell: r,z,n with b_hn multiplied by r (biases already folded into gi/gh).
            r = jax.nn.sigmoid(gi[:, 0:H] + gh_d[:, 0:H])
            z = jax.nn.sigmoid(gi[:, H:2 * H] + gh_d[:, H:2 * H])
            n = jnp.tanh(gi[:, 2 * H:3 * H] + r * gh_d[:, 2 * H:3 * H])
            return (1.0 - z) * n + z * h

        def step(s, carry):
            hf, hb = carry
            t_f = t0 + s                       # forward original time index
            t_b = T_pad - 1 - t_f              # backward original time index (mirrored block)

            # Masks: broadcast once per direction, reused for update and output store.
            vf = jnp.broadcast_to(lengths > t_f, hf.shape)
            vb = jnp.broadcast_to(lengths > t_b, hb.shape)

            gi_f = gif_ref[s]                  # (B_pad, 3H) precomputed x@Wih_f + b_ih_f
            gi_b = gib_ref[Tc - 1 - s]         # (B_pad, 3H) precomputed x@Wih_b + b_ih_b

            # Fused recurrent matmul for both directions: one MXU push per step.
            h_cat = jnp.concatenate([hf, hb], axis=1)                       # (B_pad, 2H)
            gh = jnp.dot(h_cat, whh, preferred_element_type=jnp.float32) + bhh  # (B_pad, 6H)

            hf_new = jnp.where(vf, gates(gi_f, gh[:, 0:3 * H], hf), hf)
            hb_new = jnp.where(vb, gates(gi_b, gh[:, 3 * H:6 * H], hb), hb)

            outf_ref[s] = jnp.where(vf, hf_new, 0.0)
            outb_ref[Tc - 1 - s] = jnp.where(vb, hb_new, 0.0)
            return hf_new, hb_new

        hf, hb = lax.fori_loop(0, Tc, step, (hf_sc[...], hb_sc[...]), unroll=True)

        hf_sc[...] = hf
        hb_sc[...] = hb

        # Final hidden (both directions), written only on the last grid step.
        @pl.when(c == nb - 1)
        def _():
            hid_ref[:, 0:H] = hf
            hid_ref[:, H:2 * H] = hb

    return kernel


def recurrent_encoder_forward(embed_src, src_length, params, *, time_block=32):
    """embed_src: (B,T,E) f32, src_length: (B,) int32 -> (output (B,T,2H), hidden_concat (B,2H))."""
    B, T, E = embed_src.shape
    H = params["wih_f"].shape[1] // 3

    Tc = max(1, min(time_block, _round_up(T, 8)))
    nb = -(-T // Tc)
    T_pad = nb * Tc
    B_pad = _round_up(B, 8)

    # Pad the (small, E-wide) embeddings BEFORE the projection so gi comes out already padded:
    # no post-einsum pad / slice passes over the big (T_pad, B_pad, 3H) tensors.
    x = jnp.pad(embed_src.astype(jnp.float32),
                ((0, B_pad - B), (0, T_pad - T), (0, 0)))                     # (B_pad, T_pad, E)

    # Hoisted input projections, one per direction, emitted directly time-major.
    gi_f = jnp.einsum("bte,eh->tbh", x, params["wih_f"]) + params["b_f"][0]   # (T_pad, B_pad, 3H)
    gi_b = jnp.einsum("bte,eh->tbh", x, params["wih_b"]) + params["b_b"][0]

    lengths = jnp.pad(src_length.astype(jnp.int32), (0, B_pad - B)).reshape(B_pad, 1)

    # Block-diagonal recurrent weight so both directions share one dot per step.
    zeros = jnp.zeros((H, 3 * H), jnp.float32)
    whh_bd = jnp.concatenate(
        [jnp.concatenate([params["whh_f"].astype(jnp.float32), zeros], axis=1),
         jnp.concatenate([zeros, params["whh_b"].astype(jnp.float32)], axis=1)],
        axis=0)                                                               # (2H, 6H)
    bhh_cat = jnp.concatenate([params["b_f"][1], params["b_b"][1]]).reshape(1, 6 * H).astype(jnp.float32)

    kernel = _make_gru_kernel(Tc=Tc, H=H, T_pad=T_pad, nb=nb)

    # Whole-array, VMEM-resident, single-buffered (grid-constant) operands.
    resident = pl.BlockSpec(memory_space=pltpu.MemorySpace.VMEM)

    out_f, out_b, hidden = pl.pallas_call(
        kernel,
        out_shape=(
            jax.ShapeDtypeStruct((T_pad, B_pad, H), jnp.float32),
            jax.ShapeDtypeStruct((T_pad, B_pad, H), jnp.float32),
            jax.ShapeDtypeStruct((B_pad, 2 * H), jnp.float32),
        ),
        grid_spec=pltpu.PrefetchScalarGridSpec(
            num_scalar_prefetch=0,
            grid=(nb,),
            in_specs=[
                pl.BlockSpec((Tc, B_pad, 3 * H), lambda c: (c, 0, 0)),           # gi fwd (time order)
                pl.BlockSpec((Tc, B_pad, 3 * H), lambda c: (nb - 1 - c, 0, 0)),  # gi bwd (mirrored)
                resident,                                                        # lengths
                resident,                                                        # whh block-diagonal
                resident,                                                        # bhh concat
            ],
            out_specs=[
                pl.BlockSpec((Tc, B_pad, H), lambda c: (c, 0, 0)),
                pl.BlockSpec((Tc, B_pad, H), lambda c: (nb - 1 - c, 0, 0)),
                pl.BlockSpec((B_pad, 2 * H), lambda c: (0, 0)),
            ],
            scratch_shapes=[
                pltpu.VMEM((B_pad, H), jnp.float32),   # forward hidden carry
                pltpu.VMEM((B_pad, H), jnp.float32),   # backward hidden carry
            ],
        ),
        compiler_params=pltpu.CompilerParams(
            dimension_semantics=("arbitrary",),        # sequential recurrence over time blocks
        ),
    )(gi_f, gi_b, lengths, whh_bd, bhh_cat)

    # Batch-first output, directions concatenated on the feature axis (PyTorch biGRU layout).
    # TODO(synk): optionally store batch-first / direction-fused from the kernel if it benches better.
    output = jnp.transpose(
        jnp.concatenate([out_f[:T, :B], out_b[:T, :B]], axis=-1), (1, 0, 2))     # (B, T, 2H)
    return output, hidden[:B]


def _reference_forward(embed_src, src_length, params):
    """Pure-JAX float32 reference GRU (mirrors PyTorch nn.GRU packed-sequence forward)."""
    B, T, E = embed_src.shape
    H = params["wih_f"].shape[1] // 3

    def cell(x_t, h, wih, whh, b):
        gi = x_t @ wih + b[0]
        gh = h @ whh + b[1]
        r = jax.nn.sigmoid(gi[:, :H] + gh[:, :H])
        z = jax.nn.sigmoid(gi[:, H:2 * H] + gh[:, H:2 * H])
        n = jnp.tanh(gi[:, 2 * H:] + r * gh[:, 2 * H:])
        return (1.0 - z) * n + z * h

    h = jnp.zeros((B, H), jnp.float32)
    outs_f = []
    for t in range(T):
        valid = (src_length > t)[:, None]
        h = jnp.where(valid, cell(embed_src[:, t], h, params["wih_f"], params["whh_f"], params["b_f"]), h)
        outs_f.append(jnp.where(valid, h, 0.0))
    hf = h

    h = jnp.zeros((B, H), jnp.float32)
    outs_b = [None] * T
    for t in range(T - 1, -1, -1):
        valid = (src_length > t)[:, None]
        h = jnp.where(valid, cell(embed_src[:, t], h, params["wih_b"], params["whh_b"], params["b_b"]), h)
        outs_b[t] = jnp.where(valid, h, 0.0)
    hb = h

    output = jnp.concatenate([jnp.stack(outs_f, 1), jnp.stack(outs_b, 1)], axis=-1)
    hidden = jnp.concatenate([hf, hb], axis=-1)
    return output, hidden


def init_params(key, emb_size, hidden_size):
    """Deterministic GRU parameter init (uniform like PyTorch), stored pre-transposed."""
    ks = jax.random.split(key, 8)
    s = 1.0 / jnp.sqrt(hidden_size)
    u = lambda k, shape: jax.random.uniform(k, shape, jnp.float32, -s, s)
    return {
        "wih_f": u(ks[0], (emb_size, 3 * hidden_size)),
        "whh_f": u(ks[1], (hidden_size, 3 * hidden_size)),
        "b_f":   jnp.stack([u(ks[2], (3 * hidden_size,)), u(ks[3], (3 * hidden_size,))]),
        "wih_b": u(ks[4], (emb_size, 3 * hidden_size)),
        "whh_b": u(ks[5], (hidden_size, 3 * hidden_size)),
        "b_b":   jnp.stack([u(ks[6], (3 * hidden_size,)), u(ks[7], (3 * hidden_size,))]),
    }


if __name__ == "__main__":
    B, T, E, H = 2, 12, 16, 32

    key = jax.random.PRNGKey(0)
    k_x, k_p = jax.random.split(key)
    embed_src = jax.random.normal(k_x, (B, T, E), jnp.float32)
    # lengths sorted descending (pack_padded_sequence convention); max length == T
    src_length = jnp.array([12, 7], jnp.int32)
    # mask (zeros where padding), shape (B, T, E); not needed by the GRU math itself.
    mask = (jnp.arange(T)[None, :, None] < src_length[:, None, None]).astype(jnp.float32)

    params = init_params(k_p, E, H)

    encoder = jax.jit(recurrent_encoder_forward)
    output, hidden_concat = encoder(embed_src, src_length, params)
    jax.block_until_ready((output, hidden_concat))

    ref_out, ref_hid = _reference_forward(embed_src, src_length, params)
    assert output.shape == (B, T, 2 * H) and hidden_concat.shape == (B, 2 * H)
    assert jnp.allclose(output, ref_out, atol=2e-3), "output mismatch vs reference"
    assert jnp.allclose(hidden_concat, ref_hid, atol=2e-3), "hidden mismatch vs reference"

    print("KERNEL_OK")
</pallas_src>

<mosaic_0001>
module attributes {stable_mosaic.version = 11 : i64} {
  func.func @kernel(%arg0: i32, %arg1: memref<16x8x96xf32, #tpu.memory_space<vmem>>, %arg2: memref<16x8x96xf32, #tpu.memory_space<vmem>>, %arg3: memref<8x1xi32, #tpu.memory_space<vmem>>, %arg4: memref<64x192xf32, #tpu.memory_space<vmem>>, %arg5: memref<1x192xf32, #tpu.memory_space<vmem>>, %arg6: memref<16x8x32xf32, #tpu.memory_space<vmem>>, %arg7: memref<16x8x32xf32, #tpu.memory_space<vmem>>, %arg8: memref<8x64xf32, #tpu.memory_space<vmem>>, %arg9: memref<8x32xf32, #tpu.memory_space<vmem>>, %arg10: memref<8x32xf32, #tpu.memory_space<vmem>>) attributes {dimension_semantics = [#tpu.dimension_semantics<arbitrary>], iteration_bounds = array<i64: 1>, scalar_prefetch = 0 : i64, scratch_operands = 2 : i64, tpu.core_type = #tpu.core_type<tc>, window_params = [{transform_indices = @transform_0, window_bounds = array<i64: 16, 8, 96>}, {transform_indices = @transform_1, window_bounds = array<i64: 16, 8, 96>}, {pipeline_mode = #tpu.pipeline_mode<synchronous>, transform_indices = @transform_2, window_bounds = array<i64: 8, 1>}, {pipeline_mode = #tpu.pipeline_mode<synchronous>, transform_indices = @transform_3, window_bounds = array<i64: 64, 192>}, {pipeline_mode = #tpu.pipeline_mode<synchronous>, transform_indices = @transform_4, window_bounds = array<i64: 1, 192>}, {transform_indices = @transform_5, window_bounds = array<i64: 16, 8, 32>}, {transform_indices = @transform_6, window_bounds = array<i64: 16, 8, 32>}, {pipeline_mode = #tpu.pipeline_mode<synchronous>, transform_indices = @transform_7, window_bounds = array<i64: 8, 64>}]} {
    %c0_i32 = arith.constant 0 : i32
    %0 = arith.cmpi eq, %arg0, %c0_i32 : i32
    %1 = arith.extui %0 : i1 to i32
    %c0_i32_0 = arith.constant 0 : i32
    %2 = arith.cmpi ne, %1, %c0_i32_0 : i32
    scf.if %2 {
      %cst_337 = arith.constant 0.000000e+00 : f32
      %1454 = vector.broadcast %cst_337 : f32 to vector<8x32xf32>
      %c0_338 = arith.constant 0 : index
      %c0_339 = arith.constant 0 : index
      %1455 = vector.load %arg9[%c0_338, %c0_339] : memref<8x32xf32, #tpu.memory_space<vmem>>, vector<8x32xf32>
      tpu.vector_store %arg9[%c0_338, %c0_339], %1454 {strides = array<i32>} : memref<8x32xf32, #tpu.memory_space<vmem>>, vector<8x32xf32>,
      %cst_340 = arith.constant 0.000000e+00 : f32
      %1456 = vector.broadcast %cst_340 : f32 to vector<8x32xf32>
      %c0_341 = arith.constant 0 : index
      %c0_342 = arith.constant 0 : index
      %1457 = vector.load %arg10[%c0_341, %c0_342] : memref<8x32xf32, #tpu.memory_space<vmem>>, vector<8x32xf32>
      tpu.vector_store %arg10[%c0_341, %c0_342], %1456 {strides = array<i32>} : memref<8x32xf32, #tpu.memory_space<vmem>>, vector<8x32xf32>,
    } else {
    }
    %c0 = arith.constant 0 : index
    %c0_1 = arith.constant 0 : index
    %3 = vector.load %arg3[%c0, %c0_1] : memref<8x1xi32, #tpu.memory_space<vmem>>, vector<8x1xi32>
    %c0_2 = arith.constant 0 : index
    %c0_3 = arith.constant 0 : index
    %4 = vector.load %arg4[%c0_2, %c0_3] : memref<64x192xf32, #tpu.memory_space<vmem>>, vector<64x192xf32>
    %c0_4 = arith.constant 0 : index
    %c0_5 = arith.constant 0 : index
    %5 = vector.load %arg5[%c0_4, %c0_5] : memref<1x192xf32, #tpu.memory_space<vmem>>, vector<1x192xf32>
    %c16_i32 = arith.constant 16 : i32
    %6 = arith.muli %arg0, %c16_i32 : i32
    %c0_6 = arith.constant 0 : index
    %c0_7 = arith.constant 0 : index
    %7 = vector.load %arg9[%c0_6, %c0_7] : memref<8x32xf32, #tpu.memory_space<vmem>>, vector<8x32xf32>
    %c0_8 = arith.constant 0 : index
    %c0_9 = arith.constant 0 : index
    %8 = vector.load %arg10[%c0_8, %c0_9] : memref<8x32xf32, #tpu.memory_space<vmem>>, vector<8x32xf32>
    %c0_i32_10 = arith.constant 0 : i32
    %9 = arith.addi %6, %c0_i32_10 : i32
    %c15_i32 = arith.constant 15 : i32
    %10 = arith.subi %c15_i32, %9 : i32
    %11 = vector.broadcast %9 : i32 to vector<8x1xi32>
    %12 = arith.cmpi sgt, %3, %11 : vector<8x1xi32>
    %13 = vector.shape_cast %12 : vector<8x1xi1> to vector<8x1xi1>
    %14 = vector.broadcast %13 : vector<8x1xi1> to vector<8x32xi1>
    %15 = vector.broadcast %10 : i32 to vector<8x1xi32>
    %16 = arith.cmpi sgt, %3, %15 : vector<8x1xi32>
    %17 = vector.shape_cast %16 : vector<8x1xi1> to vector<8x1xi1>
    %18 = vector.broadcast %17 : vector<8x1xi1> to vector<8x32xi1>
    %19 = arith.index_cast %c0_i32_10 : i32 to index
    %c0_11 = arith.constant 0 : index
    %c0_12 = arith.constant 0 : index
    %20 = vector.load %arg1[%19, %c0_11, %c0_12] : memref<16x8x96xf32, #tpu.memory_space<vmem>>, vector<1x8x96xf32>
    %21 = vector.shape_cast %20 : vector<1x8x96xf32> to vector<8x96xf32>
    %c15_i32_13 = arith.constant 15 : i32
    %22 = arith.subi %c15_i32_13, %c0_i32_10 : i32
    %23 = arith.index_cast %22 : i32 to index
    %c0_14 = arith.constant 0 : index
    %c0_15 = arith.constant 0 : index
    %24 = vector.load %arg2[%23, %c0_14, %c0_15] : memref<16x8x96xf32, #tpu.memory_space<vmem>>, vector<1x8x96xf32>
    %25 = vector.shape_cast %24 : vector<1x8x96xf32> to vector<8x96xf32>
    %26 = tpu.concatenate %7, %8 in 1 : vector<8x32xf32>, vector<8x32xf32> -> vector<8x64xf32>
    %cst = arith.constant dense<0.000000e+00> : vector<8x192xf32>
    %27 = tpu.matmul %26, %4, %cst {dimension_numbers = #tpu.dot_dimension_numbers<[1], [0], [0], [1], [0, 0, 1, 1], [], []>} : vector<8x64xf32>, vector<64x192xf32>, vector<8x192xf32> -> vector<8x192xf32>
    %28 = vector.broadcast %5 : vector<1x192xf32> to vector<8x192xf32>
    %29 = arith.addf %27, %28 : vector<8x192xf32>
    %30 = vector.extract_strided_slice %29 {offsets = [0, 0], sizes = [8, 96], strides = [1, 1]} : vector<8x192xf32> to vector<8x96xf32>
    %31 = vector.extract_strided_slice %21 {offsets = [0, 0], sizes = [8, 32], strides = [1, 1]} : vector<8x96xf32> to vector<8x32xf32>
    %32 = vector.extract_strided_slice %30 {offsets = [0, 0], sizes = [8, 32], strides = [1, 1]} : vector<8x96xf32> to vector<8x32xf32>
    %33 = arith.addf %31, %32 : vector<8x32xf32>
    %34 = arith.negf %33 : vector<8x32xf32>
    %35 = math.exp %34 : vector<8x32xf32>
    %cst_16 = arith.constant 1.000000e+00 : f32
    %36 = vector.broadcast %cst_16 : f32 to vector<8x32xf32>
    %37 = arith.addf %36, %35 : vector<8x32xf32>
    %38 = arith.divf %36, %37 : vector<8x32xf32>
    %39 = vector.extract_strided_slice %21 {offsets = [0, 32], sizes = [8, 32], strides = [1, 1]} : vector<8x96xf32> to vector<8x32xf32>
    %40 = vector.extract_strided_slice %30 {offsets = [0, 32], sizes = [8, 32], strides = [1, 1]} : vector<8x96xf32> to vector<8x32xf32>
    %41 = arith.addf %39, %40 : vector<8x32xf32>
    %42 = arith.negf %41 : vector<8x32xf32>
    %43 = math.exp %42 : vector<8x32xf32>
    %cst_17 = arith.constant 1.000000e+00 : f32
    %44 = vector.broadcast %cst_17 : f32 to vector<8x32xf32>
    %45 = arith.addf %44, %43 : vector<8x32xf32>
    %46 = arith.divf %44, %45 : vector<8x32xf32>
    %47 = vector.extract_strided_slice %21 {offsets = [0, 64], sizes = [8, 32], strides = [1, 1]} : vector<8x96xf32> to vector<8x32xf32>
    %48 = vector.extract_strided_slice %30 {offsets = [0, 64], sizes = [8, 32], strides = [1, 1]} : vector<8x96xf32> to vector<8x32xf32>
    %49 = arith.mulf %38, %48 : vector<8x32xf32>
    %50 = arith.addf %47, %49 : vector<8x32xf32>
    %51 = math.tanh %50 : vector<8x32xf32>
    %cst_18 = arith.constant 1.000000e+00 : f32
    %52 = vector.broadcast %cst_18 : f32 to vector<8x32xf32>
    %53 = arith.subf %52, %46 : vector<8x32xf32>
    %54 = arith.mulf %53, %51 : vector<8x32xf32>
    %55 = arith.mulf %46, %7 : vector<8x32xf32>
    %56 = arith.addf %54, %55 : vector<8x32xf32>
    %57 = arith.select %14, %56, %7 : vector<8x32xi1>, vector<8x32xf32>
    %58 = vector.extract_strided_slice %29 {offsets = [0, 96], sizes = [8, 96], strides = [1, 1]} : vector<8x192xf32> to vector<8x96xf32>
    %59 = vector.extract_strided_slice %25 {offsets = [0, 0], sizes = [8, 32], strides = [1, 1]} : vector<8x96xf32> to vector<8x32xf32>
    %60 = vector.extract_strided_slice %58 {offsets = [0, 0], sizes = [8, 32], strides = [1, 1]} : vector<8x96xf32> to vector<8x32xf32>
    %61 = arith.addf %59, %60 : vector<8x32xf32>
    %62 = arith.negf %61 : vector<8x32xf32>
    %63 = math.exp %62 : vector<8x32xf32>
    %cst_19 = arith.constant 1.000000e+00 : f32
    %64 = vector.broadcast %cst_19 : f32 to vector<8x32xf32>
    %65 = arith.addf %64, %63 : vector<8x32xf32>
    %66 = arith.divf %64, %65 : vector<8x32xf32>
    %67 = vector.extract_strided_slice %25 {offsets = [0, 32], sizes = [8, 32], strides = [1, 1]} : vector<8x96xf32> to vector<8x32xf32>
    %68 = vector.extract_strided_slice %58 {offsets = [0, 32], sizes = [8, 32], strides = [1, 1]} : vector<8x96xf32> to vector<8x32xf32>
    %69 = arith.addf %67, %68 : vector<8x32xf32>
    %70 = arith.negf %69 : vector<8x32xf32>
    %71 = math.exp %70 : vector<8x32xf32>
    %cst_20 = arith.constant 1.000000e+00 : f32
    %72 = vector.broadcast %cst_20 : f32 to vector<8x32xf32>
    %73 = arith.addf %72, %71 : vector<8x32xf32>
    %74 = arith.divf %72, %73 : vector<8x32xf32>
    %75 = vector.extract_strided_slice %25 {offsets = [0, 64], sizes = [8, 32], strides = [1, 1]} : vector<8x96xf32> to vector<8x32xf32>
    %76 = vector.extract_strided_slice %58 {offsets = [0, 64], sizes = [8, 32], strides = [1, 1]} : vector<8x96xf32> to vector<8x32xf32>
    %77 = arith.mulf %66, %76 : vector<8x32xf32>
    %78 = arith.addf %75, %77 : vector<8x32xf32>
    %79 = math.tanh %78 : vector<8x32xf32>
    %cst_21 = arith.constant 1.000000e+00 : f32
    %80 = vector.broadcast %cst_21 : f32 to vector<8x32xf32>
    %81 = arith.subf %80, %74 : vector<8x32xf32>
    %82 = arith.mulf %81, %79 : vector<8x32xf32>
    %83 = arith.mulf %74, %8 : vector<8x32xf32>
    %84 = arith.addf %82, %83 : vector<8x32xf32>
    %85 = arith.select %18, %84, %8 : vector<8x32xi1>, vector<8x32xf32>
    %cst_22 = arith.constant 0.000000e+00 : f32
    %86 = vector.broadcast %cst_22 : f32 to vector<8x32xf32>
    %87 = arith.select %14, %57, %86 : vector<8x32xi1>, vector<8x32xf32>
    %88 = arith.index_cast %c0_i32_10 : i32 to index
    %c0_23 = arith.constant 0 : index
    %c0_24 = arith.constant 0 : index
    %89 = vector.load %arg6[%88, %c0_23, %c0_24] : memref<16x8x32xf32, #tpu.memory_space<vmem>>, vector<1x8x32xf32>
    %90 = vector.shape_cast %89 : vector<1x8x32xf32> to vector<8x32xf32>
    %91 = vector.shape_cast %87 : vector<8x32xf32> to vector<1x8x32xf32>
    tpu.vector_store %arg6[%88, %c0_23, %c0_24], %91 {strides = array<i32>} : memref<16x8x32xf32, #tpu.memory_space<vmem>>, vector<1x8x32xf32>,
    %cst_25 = arith.constant 0.000000e+00 : f32
    %92 = vector.broadcast %cst_25 : f32 to vector<8x32xf32>
    %93 = arith.select %18, %85, %92 : vector<8x32xi1>, vector<8x32xf32>
    %c15_i32_26 = arith.constant 15 : i32
    %94 = arith.subi %c15_i32_26, %c0_i32_10 : i32
    %95 = arith.index_cast %94 : i32 to index
    %c0_27 = arith.constant 0 : index
    %c0_28 = arith.constant 0 : index
    %96 = vector.load %arg7[%95, %c0_27, %c0_28] : memref<16x8x32xf32, #tpu.memory_space<vmem>>, vector<1x8x32xf32>
    %97 = vector.shape_cast %96 : vector<1x8x32xf32> to vector<8x32xf32>
    %98 = vector.shape_cast %93 : vector<8x32xf32> to vector<1x8x32xf32>
    tpu.vector_store %arg7[%95, %c0_27, %c0_28], %98 {strides = array<i32>} : memref<16x8x32xf32, #tpu.memory_space<vmem>>, vector<1x8x32xf32>,
    %c1_i32 = arith.constant 1 : i32
    %99 = arith.addi %6, %c1_i32 : i32
    %c15_i32_29 = arith.constant 15 : i32
    %100 = arith.subi %c15_i32_29, %99 : i32
    %101 = vector.broadcast %99 : i32 to vector<8x1xi32>
    %102 = arith.cmpi sgt, %3, %101 : vector<8x1xi32>
    %103 = vector.shape_cast %102 : vector<8x1xi1> to vector<8x1xi1>
    %104 = vector.broadcast %103 : vector<8x1xi1> to vector<8x32xi1>
    %105 = vector.broadcast %100 : i32 to vector<8x1xi32>
    %106 = arith.cmpi sgt, %3, %105 : vector<8x1xi32>
    %107 = vector.shape_cast %106 : vector<8x1xi1> to vector<8x1xi1>
    %108 = vector.broadcast %107 : vector<8x1xi1> to vector<8x32xi1>
    %109 = arith.index_cast %c1_i32 : i32 to index
    %c0_30 = arith.constant 0 : index
    %c0_31 = arith.constant 0 : index
    %110 = vector.load %arg1[%109, %c0_30, %c0_31] : memref<16x8x96xf32, #tpu.memory_space<vmem>>, vector<1x8x96xf32>
    %111 = vector.shape_cast %110 : vector<1x8x96xf32> to vector<8x96xf32>
    %c15_i32_32 = arith.constant 15 : i32
    %112 = arith.subi %c15_i32_32, %c1_i32 : i32
    %113 = arith.index_cast %112 : i32 to index
    %c0_33 = arith.constant 0 : index
    %c0_34 = arith.constant 0 : index
    %114 = vector.load %arg2[%113, %c0_33, %c0_34] : memref<16x8x96xf32, #tpu.memory_space<vmem>>, vector<1x8x96xf32>
    %115 = vector.shape_cast %114 : vector<1x8x96xf32> to vector<8x96xf32>
    %116 = tpu.concatenate %57, %85 in 1 : vector<8x32xf32>, vector<8x32xf32> -> vector<8x64xf32>
    %cst_35 = arith.constant dense<0.000000e+00> : vector<8x192xf32>
    %117 = tpu.matmul %116, %4, %cst_35 {dimension_numbers = #tpu.dot_dimension_numbers<[1], [0], [0], [1], [0, 0, 1, 1], [], []>} : vector<8x64xf32>, vector<64x192xf32>, vector<8x192xf32> -> vector<8x192xf32>
    %118 = vector.broadcast %5 : vector<1x192xf32> to vector<8x192xf32>
    %119 = arith.addf %117, %118 : vector<8x192xf32>
    %120 = vector.extract_strided_slice %119 {offsets = [0, 0], sizes = [8, 96], strides = [1, 1]} : vector<8x192xf32> to vector<8x96xf32>
    %121 = vector.extract_strided_slice %111 {offsets = [0, 0], sizes = [8, 32], strides = [1, 1]} : vector<8x96xf32> to vector<8x32xf32>
    %122 = vector.extract_strided_slice %120 {offsets = [0, 0], sizes = [8, 32], strides = [1, 1]} : vector<8x96xf32> to vector<8x32xf32>
    %123 = arith.addf %121, %122 : vector<8x32xf32>
    %124 = arith.negf %123 : vector<8x32xf32>
    %125 = math.exp %124 : vector<8x32xf32>
    %cst_36 = arith.constant 1.000000e+00 : f32
    %126 = vector.broadcast %cst_36 : f32 to vector<8x32xf32>
    %127 = arith.addf %126, %125 : vector<8x32xf32>
    %128 = arith.divf %126, %127 : vector<8x32xf32>
    %129 = vector.extract_strided_slice %111 {offsets = [0, 32], sizes = [8, 32], strides = [1, 1]} : vector<8x96xf32> to vector<8x32xf32>
    %130 = vector.extract_strided_slice %120 {offsets = [0, 32], sizes = [8, 32], strides = [1, 1]} : vector<8x96xf32> to vector<8x32xf32>
    %131 = arith.addf %129, %130 : vector<8x32xf32>
    %132 = arith.negf %131 : vector<8x32xf32>
    %133 = math.exp %132 : vector<8x32xf32>
    %cst_37 = arith.constant 1.000000e+00 : f32
    %134 = vector.broadcast %cst_37 : f32 to vector<8x32xf32>
    %135 = arith.addf %134, %133 : vector<8x32xf32>
    %136 = arith.divf %134, %135 : vector<8x32xf32>
    %137 = vector.extract_strided_slice %111 {offsets = [0, 64], sizes = [8, 32], strides = [1, 1]} : vector<8x96xf32> to vector<8x32xf32>
    %138 = vector.extract_strided_slice %120 {offsets = [0, 64], sizes = [8, 32], strides = [1, 1]} : vector<8x96xf32> to vector<8x32xf32>
    %139 = arith.mulf %128, %138 : vector<8x32xf32>
    %140 = arith.addf %137, %139 : vector<8x32xf32>
    %141 = math.tanh %140 : vector<8x32xf32>
    %cst_38 = arith.constant 1.000000e+00 : f32
    %142 = vector.broadcast %cst_38 : f32 to vector<8x32xf32>
    %143 = arith.subf %142, %136 : vector<8x32xf32>
    %144 = arith.mulf %143, %141 : vector<8x32xf32>
    %145 = arith.mulf %136, %57 : vector<8x32xf32>
    %146 = arith.addf %144, %145 : vector<8x32xf32>
    %147 = arith.select %104, %146, %57 : vector<8x32xi1>, vector<8x32xf32>
    %148 = vector.extract_strided_slice %119 {offsets = [0, 96], sizes = [8, 96], strides = [1, 1]} : vector<8x192xf32> to vector<8x96xf32>
    %149 = vector.extract_strided_slice %115 {offsets = [0, 0], sizes = [8, 32], strides = [1, 1]} : vector<8x96xf32> to vector<8x32xf32>
    %150 = vector.extract_strided_slice %148 {offsets = [0, 0], sizes = [8, 32], strides = [1, 1]} : vector<8x96xf32> to vector<8x32xf32>
    %151 = arith.addf %149, %150 : vector<8x32xf32>
    %152 = arith.negf %151 : vector<8x32xf32>
    %153 = math.exp %152 : vector<8x32xf32>
    %cst_39 = arith.constant 1.000000e+00 : f32
    %154 = vector.broadcast %cst_39 : f32 to vector<8x32xf32>
    %155 = arith.addf %154, %153 : vector<8x32xf32>
    %156 = arith.divf %154, %155 : vector<8x32xf32>
    %157 = vector.extract_strided_slice %115 {offsets = [0, 32], sizes = [8, 32], strides = [1, 1]} : vector<8x96xf32> to vector<8x32xf32>
    %158 = vector.extract_strided_slice %148 {offsets = [0, 32], sizes = [8, 32], strides = [1, 1]} : vector<8x96xf32> to vector<8x32xf32>
    %159 = arith.addf %157, %158 : vector<8x32xf32>
    %160 = arith.negf %159 : vector<8x32xf32>
    %161 = math.exp %160 : vector<8x32xf32>
    %cst_40 = arith.constant 1.000000e+00 : f32
    %162 = vector.broadcast %cst_40 : f32 to vector<8x32xf32>
    %163 = arith.addf %162, %161 : vector<8x32xf32>
    %164 = arith.divf %162, %163 : vector<8x32xf32>
    %165 = vector.extract_strided_slice %115 {offsets = [0, 64], sizes = [8, 32], strides = [1, 1]} : vector<8x96xf32> to vector<8x32xf32>
    %166 = vector.extract_strided_slice %148 {offsets = [0, 64], sizes = [8, 32], strides = [1, 1]} : vector<8x96xf32> to vector<8x32xf32>
    %167 = arith.mulf %156, %166 : vector<8x32xf32>
    %168 = arith.addf %165, %167 : vector<8x32xf32>
    %169 = math.tanh %168 : vector<8x32xf32>
    %cst_41 = arith.constant 1.000000e+00 : f32
    %170 = vector.broadcast %cst_41 : f32 to vector<8x32xf32>
    %171 = arith.subf %170, %164 : vector<8x32xf32>
    %172 = arith.mulf %171, %169 : vector<8x32xf32>
    %173 = arith.mulf %164, %85 : vector<8x32xf32>
    %174 = arith.addf %172, %173 : vector<8x32xf32>
    %175 = arith.select %108, %174, %85 : vector<8x32xi1>, vector<8x32xf32>
    %cst_42 = arith.constant 0.000000e+00 : f32
    %176 = vector.broadcast %cst_42 : f32 to vector<8x32xf32>
    %177 = arith.select %104, %147, %176 : vector<8x32xi1>, vector<8x32xf32>
    %178 = arith.index_cast %c1_i32 : i32 to index
    %c0_43 = arith.constant 0 : index
    %c0_44 = arith.constant 0 : index
    %179 = vector.load %arg6[%178, %c0_43, %c0_44] : memref<16x8x32xf32, #tpu.memory_space<vmem>>, vector<1x8x32xf32>
    %180 = vector.shape_cast %179 : vector<1x8x32xf32> to vector<8x32xf32>
    %181 = vector.shape_cast %177 : vector<8x32xf32> to vector<1x8x32xf32>
    tpu.vector_store %arg6[%178, %c0_43, %c0_44], %181 {strides = array<i32>} : memref<16x8x32xf32, #tpu.memory_space<vmem>>, vector<1x8x32xf32>,
    %cst_45 = arith.constant 0.000000e+00 : f32
    %182 = vector.broadcast %cst_45 : f32 to vector<8x32xf32>
    %183 = arith.select %108, %175, %182 : vector<8x32xi1>, vector<8x32xf32>
    %c15_i32_46 = arith.constant 15 : i32
    %184 = arith.subi %c15_i32_46, %c1_i32 : i32
    %185 = arith.index_cast %184 : i32 to index
    %c0_47 = arith.constant 0 : index
    %c0_48 = arith.constant 0 : index
    %186 = vector.load %arg7[%185, %c0_47, %c0_48] : memref<16x8x32xf32, #tpu.memory_space<vmem>>, vector<1x8x32xf32>
    %187 = vector.shape_cast %186 : vector<1x8x32xf32> to vector<8x32xf32>
    %188 = vector.shape_cast %183 : vector<8x32xf32> to vector<1x8x32xf32>
    tpu.vector_store %arg7[%185, %c0_47, %c0_48], %188 {strides = array<i32>} : memref<16x8x32xf32, #tpu.memory_space<vmem>>, vector<1x8x32xf32>,
    %c2_i32 = arith.constant 2 : i32
    %189 = arith.addi %6, %c2_i32 : i32
    %c15_i32_49 = arith.constant 15 : i32
    %190 = arith.subi %c15_i32_49, %189 : i32
    %191 = vector.broadcast %189 : i32 to vector<8x1xi32>
    %192 = arith.cmpi sgt, %3, %191 : vector<8x1xi32>
    %193 = vector.shape_cast %192 : vector<8x1xi1> to vector<8x1xi1>
    %194 = vector.broadcast %193 : vector<8x1xi1> to vector<8x32xi1>
    %195 = vector.broadcast %190 : i32 to vector<8x1xi32>
    %196 = arith.cmpi sgt, %3, %195 : vector<8x1xi32>
    %197 = vector.shape_cast %196 : vector<8x1xi1> to vector<8x1xi1>
    %198 = vector.broadcast %197 : vector<8x1xi1> to vector<8x32xi1>
    %199 = arith.index_cast %c2_i32 : i32 to index
    %c0_50 = arith.constant 0 : index
    %c0_51 = arith.constant 0 : index
    %200 = vector.load %arg1[%199, %c0_50, %c0_51] : memref<16x8x96xf32, #tpu.memory_space<vmem>>, vector<1x8x96xf32>
    %201 = vector.shape_cast %200 : vector<1x8x96xf32> to vector<8x96xf32>
    %c15_i32_52 = arith.constant 15 : i32
    %202 = arith.subi %c15_i32_52, %c2_i32 : i32
    %203 = arith.index_cast %202 : i32 to index
    %c0_53 = arith.constant 0 : index
    %c0_54 = arith.constant 0 : index
    %204 = vector.load %arg2[%203, %c0_53, %c0_54] : memref<16x8x96xf32, #tpu.memory_space<vmem>>, vector<1x8x96xf32>
    %205 = vector.shape_cast %204 : vector<1x8x96xf32> to vector<8x96xf32>
    %206 = tpu.concatenate %147, %175 in 1 : vector<8x32xf32>, vector<8x32xf32> -> vector<8x64xf32>
    %cst_55 = arith.constant dense<0.000000e+00> : vector<8x192xf32>
    %207 = tpu.matmul %206, %4, %cst_55 {dimension_numbers = #tpu.dot_dimension_numbers<[1], [0], [0], [1], [0, 0, 1, 1], [], []>} : vector<8x64xf32>, vector<64x192xf32>, vector<8x192xf32> -> vector<8x192xf32>
    %208 = vector.broadcast %5 : vector<1x192xf32> to vector<8x192xf32>
    %209 = arith.addf %207, %208 : vector<8x192xf32>
    %210 = vector.extract_strided_slice %209 {offsets = [0, 0], sizes = [8, 96], strides = [1, 1]} : vector<8x192xf32> to vector<8x96xf32>
    %211 = vector.extract_strided_slice %201 {offsets = [0, 0], sizes = [8, 32], strides = [1, 1]} : vector<8x96xf32> to vector<8x32xf32>
    %212 = vector.extract_strided_slice %210 {offsets = [0, 0], sizes = [8, 32], strides = [1, 1]} : vector<8x96xf32> to vector<8x32xf32>
    %213 = arith.addf %211, %212 : vector<8x32xf32>
    %214 = arith.negf %213 : vector<8x32xf32>
    %215 = math.exp %214 : vector<8x32xf32>
    %cst_56 = arith.constant 1.000000e+00 : f32
    %216 = vector.broadcast %cst_56 : f32 to vector<8x32xf32>
    %217 = arith.addf %216, %215 : vector<8x32xf32>
    %218 = arith.divf %216, %217 : vector<8x32xf32>
    %219 = vector.extract_strided_slice %201 {offsets = [0, 32], sizes = [8, 32], strides = [1, 1]} : vector<8x96xf32> to vector<8x32xf32>
    %220 = vector.extract_strided_slice %210 {offsets = [0, 32], sizes = [8, 32], strides = [1, 1]} : vector<8x96xf32> to vector<8x32xf32>
    %221 = arith.addf %219, %220 : vector<8x32xf32>
    %222 = arith.negf %221 : vector<8x32xf32>
    %223 = math.exp %222 : vector<8x32xf32>
    %cst_57 = arith.constant 1.000000e+00 : f32
    %224 = vector.broadcast %cst_57 : f32 to vector<8x32xf32>
    %225 = arith.addf %224, %223 : vector<8x32xf32>
    %226 = arith.divf %224, %225 : vector<8x32xf32>
    %227 = vector.extract_strided_slice %201 {offsets = [0, 64], sizes = [8, 32], strides = [1, 1]} : vector<8x96xf32> to vector<8x32xf32>
    %228 = vector.extract_strided_slice %210 {offsets = [0, 64], sizes = [8, 32], strides = [1, 1]} : vector<8x96xf32> to vector<8x32xf32>
    %229 = arith.mulf %218, %228 : vector<8x32xf32>
    %230 = arith.addf %227, %229 : vector<8x32xf32>
    %231 = math.tanh %230 : vector<8x32xf32>
    %cst_58 = arith.constant 1.000000e+00 : f32
    %232 = vector.broadcast %cst_58 : f32 to vector<8x32xf32>
    %233 = arith.subf %232, %226 : vector<8x32xf32>
    %234 = arith.mulf %233, %231 : vector<8x32xf32>
    %235 = arith.mulf %226, %147 : vector<8x32xf32>
    %236 = arith.addf %234, %235 : vector<8x32xf32>
    %237 = arith.select %194, %236, %147 : vector<8x32xi1>, vector<8x32xf32>
    %238 = vector.extract_strided_slice %209 {offsets = [0, 96], sizes = [8, 96], strides = [1, 1]} : vector<8x192xf32> to vector<8x96xf32>
    %239 = vector.extract_strided_slice %205 {offsets = [0, 0], sizes = [8, 32], strides = [1, 1]} : vector<8x96xf32> to vector<8x32xf32>
    %240 = vector.extract_strided_slice %238 {offsets = [0, 0], sizes = [8, 32], strides = [1, 1]} : vector<8x96xf32> to vector<8x32xf32>
    %241 = arith.addf %239, %240 : vector<8x32xf32>
    %242 = arith.negf %241 : vector<8x32xf32>
    %243 = math.exp %242 : vector<8x32xf32>
    %cst_59 = arith.constant 1.000000e+00 : f32
    %244 = vector.broadcast %cst_59 : f32 to vector<8x32xf32>
    %245 = arith.addf %244, %243 : vector<8x32xf32>
    %246 = arith.divf %244, %245 : vector<8x32xf32>
    %247 = vector.extract_strided_slice %205 {offsets = [0, 32], sizes = [8, 32], strides = [1, 1]} : vector<8x96xf32> to vector<8x32xf32>
    %248 = vector.extract_strided_slice %238 {offsets = [0, 32], sizes = [8, 32], strides = [1, 1]} : vector<8x96xf32> to vector<8x32xf32>
    %249 = arith.addf %247, %248 : vector<8x32xf32>
    %250 = arith.negf %249 : vector<8x32xf32>
    %251 = math.exp %250 : vector<8x32xf32>
    %cst_60 = arith.constant 1.000000e+00 : f32
    %252 = vector.broadcast %cst_60 : f32 to vector<8x32xf32>
    %253 = arith.addf %252, %251 : vector<8x32xf32>
    %254 = arith.divf %252, %253 : vector<8x32xf32>
    %255 = vector.extract_strided_slice %205 {offsets = [0, 64], sizes = [8, 32], strides = [1, 1]} : vector<8x96xf32> to vector<8x32xf32>
    %256 = vector.extract_strided_slice %238 {offsets = [0, 64], sizes = [8, 32], strides = [1, 1]} : vector<8x96xf32> to vector<8x32xf32>
    %257 = arith.mulf %246, %256 : vector<8x32xf32>
    %258 = arith.addf %255, %257 : vector<8x32xf32>
    %259 = math.tanh %258 : vector<8x32xf32>
    %cst_61 = arith.constant 1.000000e+00 : f32
    %260 = vector.broadcast %cst_61 : f32 to vector<8x32xf32>
    %261 = arith.subf %260, %254 : vector<8x32xf32>
    %262 = arith.mulf %261, %259 : vector<8x32xf32>
    %263 = arith.mulf %254, %175 : vector<8x32xf32>
    %264 = arith.addf %262, %263 : vector<8x32xf32>
    %265 = arith.select %198, %264, %175 : vector<8x32xi1>, vector<8x32xf32>
    %cst_62 = arith.constant 0.000000e+00 : f32
    %266 = vector.broadcast %cst_62 : f32 to vector<8x32xf32>
    %267 = arith.select %194, %237, %266 : vector<8x32xi1>, vector<8x32xf32>
    %268 = arith.index_cast %c2_i32 : i32 to index
    %c0_63 = arith.constant 0 : index
    %c0_64 = arith.constant 0 : index
    %269 = vector.load %arg6[%268, %c0_63, %c0_64] : memref<16x8x32xf32, #tpu.memory_space<vmem>>, vector<1x8x32xf32>
    %270 = vector.shape_cast %269 : vector<1x8x32xf32> to vector<8x32xf32>
    %271 = vector.shape_cast %267 : vector<8x32xf32> to vector<1x8x32xf32>
    tpu.vector_store %arg6[%268, %c0_63, %c0_64], %271 {strides = array<i32>} : memref<16x8x32xf32, #tpu.memory_space<vmem>>, vector<1x8x32xf32>,
    %cst_65 = arith.constant 0.000000e+00 : f32
    %272 = vector.broadcast %cst_65 : f32 to vector<8x32xf32>
    %273 = arith.select %198, %265, %272 : vector<8x32xi1>, vector<8x32xf32>
    %c15_i32_66 = arith.constant 15 : i32
    %274 = arith.subi %c15_i32_66, %c2_i32 : i32
    %275 = arith.index_cast %274 : i32 to index
    %c0_67 = arith.constant 0 : index
    %c0_68 = arith.constant 0 : index
    %276 = vector.load %arg7[%275, %c0_67, %c0_68] : memref<16x8x32xf32, #tpu.memory_space<vmem>>, vector<1x8x32xf32>
    %277 = vector.shape_cast %276 : vector<1x8x32xf32> to vector<8x32xf32>
    %278 = vector.shape_cast %273 : vector<8x32xf32> to vector<1x8x32xf32>
    tpu.vector_store %arg7[%275, %c0_67, %c0_68], %278 {strides = array<i32>} : memref<16x8x32xf32, #tpu.memory_space<vmem>>, vector<1x8x32xf32>,
    %c3_i32 = arith.constant 3 : i32
    %279 = arith.addi %6, %c3_i32 : i32
    %c15_i32_69 = arith.constant 15 : i32
    %280 = arith.subi %c15_i32_69, %279 : i32
    %281 = vector.broadcast %279 : i32 to vector<8x1xi32>
    %282 = arith.cmpi sgt, %3, %281 : vector<8x1xi32>
    %283 = vector.shape_cast %282 : vector<8x1xi1> to vector<8x1xi1>
    %284 = vector.broadcast %283 : vector<8x1xi1> to vector<8x32xi1>
    %285 = vector.broadcast %280 : i32 to vector<8x1xi32>
    %286 = arith.cmpi sgt, %3, %285 : vector<8x1xi32>
    %287 = vector.shape_cast %286 : vector<8x1xi1> to vector<8x1xi1>
    %288 = vector.broadcast %287 : vector<8x1xi1> to vector<8x32xi1>
    %289 = arith.index_cast %c3_i32 : i32 to index
    %c0_70 = arith.constant 0 : index
    %c0_71 = arith.constant 0 : index
    %290 = vector.load %arg1[%289, %c0_70, %c0_71] : memref<16x8x96xf32, #tpu.memory_space<vmem>>, vector<1x8x96xf32>
    %291 = vector.shape_cast %290 : vector<1x8x96xf32> to vector<8x96xf32>
    %c15_i32_72 = arith.constant 15 : i32
    %292 = arith.subi %c15_i32_72, %c3_i32 : i32
    %293 = arith.index_cast %292 : i32 to index
    %c0_73 = arith.constant 0 : index
    %c0_74 = arith.constant 0 : index
    %294 = vector.load %arg2[%293, %c0_73, %c0_74] : memref<16x8x96xf32, #tpu.memory_space<vmem>>, vector<1x8x96xf32>
    %295 = vector.shape_cast %294 : vector<1x8x96xf32> to vector<8x96xf32>
    %296 = tpu.concatenate %237, %265 in 1 : vector<8x32xf32>, vector<8x32xf32> -> vector<8x64xf32>
    %cst_75 = arith.constant dense<0.000000e+00> : vector<8x192xf32>
    %297 = tpu.matmul %296, %4, %cst_75 {dimension_numbers = #tpu.dot_dimension_numbers<[1], [0], [0], [1], [0, 0, 1, 1], [], []>} : vector<8x64xf32>, vector<64x192xf32>, vector<8x192xf32> -> vector<8x192xf32>
    %298 = vector.broadcast %5 : vector<1x192xf32> to vector<8x192xf32>
    %299 = arith.addf %297, %298 : vector<8x192xf32>
    %300 = vector.extract_strided_slice %299 {offsets = [0, 0], sizes = [8, 96], strides = [1, 1]} : vector<8x192xf32> to vector<8x96xf32>
    %301 = vector.extract_strided_slice %291 {offsets = [0, 0], sizes = [8, 32], strides = [1, 1]} : vector<8x96xf32> to vector<8x32xf32>
    %302 = vector.extract_strided_slice %300 {offsets = [0, 0], sizes = [8, 32], strides = [1, 1]} : vector<8x96xf32> to vector<8x32xf32>
    %303 = arith.addf %301, %302 : vector<8x32xf32>
    %304 = arith.negf %303 : vector<8x32xf32>
    %305 = math.exp %304 : vector<8x32xf32>
    %cst_76 = arith.constant 1.000000e+00 : f32
    %306 = vector.broadcast %cst_76 : f32 to vector<8x32xf32>
    %307 = arith.addf %306, %305 : vector<8x32xf32>
    %308 = arith.divf %306, %307 : vector<8x32xf32>
    %309 = vector.extract_strided_slice %291 {offsets = [0, 32], sizes = [8, 32], strides = [1, 1]} : vector<8x96xf32> to vector<8x32xf32>
    %310 = vector.extract_strided_slice %300 {offsets = [0, 32], sizes = [8, 32], strides = [1, 1]} : vector<8x96xf32> to vector<8x32xf32>
    %311 = arith.addf %309, %310 : vector<8x32xf32>
    %312 = arith.negf %311 : vector<8x32xf32>
    %313 = math.exp %312 : vector<8x32xf32>
    %cst_77 = arith.constant 1.000000e+00 : f32
    %314 = vector.broadcast %cst_77 : f32 to vector<8x32xf32>
    %315 = arith.addf %314, %313 : vector<8x32xf32>
    %316 = arith.divf %314, %315 : vector<8x32xf32>
    %317 = vector.extract_strided_slice %291 {offsets = [0, 64], sizes = [8, 32], strides = [1, 1]} : vector<8x96xf32> to vector<8x32xf32>
    %318 = vector.extract_strided_slice %300 {offsets = [0, 64], sizes = [8, 32], strides = [1, 1]} : vector<8x96xf32> to vector<8x32xf32>
    %319 = arith.mulf %308, %318 : vector<8x32xf32>
    %320 = arith.addf %317, %319 : vector<8x32xf32>
    %321 = math.tanh %320 : vector<8x32xf32>
    %cst_78 = arith.constant 1.000000e+00 : f32
    %322 = vector.broadcast %cst_78 : f32 to vector<8x32xf32>
    %323 = arith.subf %322, %316 : vector<8x32xf32>
    %324 = arith.mulf %323, %321 : vector<8x32xf32>
    %325 = arith.mulf %316, %237 : vector<8x32xf32>
    %326 = arith.addf %324, %325 : vector<8x32xf32>
    %327 = arith.select %284, %326, %237 : vector<8x32xi1>, vector<8x32xf32>
    %328 = vector.extract_strided_slice %299 {offsets = [0, 96], sizes = [8, 96], strides = [1, 1]} : vector<8x192xf32> to vector<8x96xf32>
    %329 = vector.extract_strided_slice %295 {offsets = [0, 0], sizes = [8, 32], strides = [1, 1]} : vector<8x96xf32> to vector<8x32xf32>
    %330 = vector.extract_strided_slice %328 {offsets = [0, 0], sizes = [8, 32], strides = [1, 1]} : vector<8x96xf32> to vector<8x32xf32>
    %331 = arith.addf %329, %330 : vector<8x32xf32>
    %332 = arith.negf %331 : vector<8x32xf32>
    %333 = math.exp %332 : vector<8x32xf32>
    %cst_79 = arith.constant 1.000000e+00 : f32
    %334 = vector.broadcast %cst_79 : f32 to vector<8x32xf32>
    %335 = arith.addf %334, %333 : vector<8x32xf32>
    %336 = arith.divf %334, %335 : vector<8x32xf32>
    %337 = vector.extract_strided_slice %295 {offsets = [0, 32], sizes = [8, 32], strides = [1, 1]} : vector<8x96xf32> to vector<8x32xf32>
    %338 = vector.extract_strided_slice %328 {offsets = [0, 32], sizes = [8, 32], strides = [1, 1]} : vector<8x96xf32> to vector<8x32xf32>
    %339 = arith.addf %337, %338 : vector<8x32xf32>
    %340 = arith.negf %339 : vector<8x32xf32>
    %341 = math.exp %340 : vector<8x32xf32>
    %cst_80 = arith.constant 1.000000e+00 : f32
    %342 = vector.broadcast %cst_80 : f32 to vector<8x32xf32>
    %343 = arith.addf %342, %341 : vector<8x32xf32>
    %344 = arith.divf %342, %343 : vector<8x32xf32>
    %345 = vector.extract_strided_slice %295 {offsets = [0, 64], sizes = [8, 32], strides = [1, 1]} : vector<8x96xf32> to vector<8x32xf32>
    %346 = vector.extract_strided_slice %328 {offsets = [0, 64], sizes = [8, 32], strides = [1, 1]} : vector<8x96xf32> to vector<8x32xf32>
    %347 = arith.mulf %336, %346 : vector<8x32xf32>
    %348 = arith.addf %345, %347 : vector<8x32xf32>
    %349 = math.tanh %348 : vector<8x32xf32>
    %cst_81 = arith.constant 1.000000e+00 : f32
    %350 = vector.broadcast %cst_81 : f32 to vector<8x32xf32>
    %351 = arith.subf %350, %344 : vector<8x32xf32>
    %352 = arith.mulf %351, %349 : vector<8x32xf32>
    %353 = arith.mulf %344, %265 : vector<8x32xf32>
    %354 = arith.addf %352, %353 : vector<8x32xf32>
    %355 = arith.select %288, %354, %265 : vector<8x32xi1>, vector<8x32xf32>
    %cst_82 = arith.constant 0.000000e+00 : f32
    %356 = vector.broadcast %cst_82 : f32 to vector<8x32xf32>
    %357 = arith.select %284, %327, %356 : vector<8x32xi1>, vector<8x32xf32>
    %358 = arith.index_cast %c3_i32 : i32 to index
    %c0_83 = arith.constant 0 : index
    %c0_84 = arith.constant 0 : index
    %359 = vector.load %arg6[%358, %c0_83, %c0_84] : memref<16x8x32xf32, #tpu.memory_space<vmem>>, vector<1x8x32xf32>
    %360 = vector.shape_cast %359 : vector<1x8x32xf32> to vector<8x32xf32>
    %361 = vector.shape_cast %357 : vector<8x32xf32> to vector<1x8x32xf32>
    tpu.vector_store %arg6[%358, %c0_83, %c0_84], %361 {strides = array<i32>} : memref<16x8x32xf32, #tpu.memory_space<vmem>>, vector<1x8x32xf32>,
    %cst_85 = arith.constant 0.000000e+00 : f32
    %362 = vector.broadcast %cst_85 : f32 to vector<8x32xf32>
    %363 = arith.select %288, %355, %362 : vector<8x32xi1>, vector<8x32xf32>
    %c15_i32_86 = arith.constant 15 : i32
    %364 = arith.subi %c15_i32_86, %c3_i32 : i32
    %365 = arith.index_cast %364 : i32 to index
    %c0_87 = arith.constant 0 : index
    %c0_88 = arith.constant 0 : index
    %366 = vector.load %arg7[%365, %c0_87, %c0_88] : memref<16x8x32xf32, #tpu.memory_space<vmem>>, vector<1x8x32xf32>
    %367 = vector.shape_cast %366 : vector<1x8x32xf32> to vector<8x32xf32>
    %368 = vector.shape_cast %363 : vector<8x32xf32> to vector<1x8x32xf32>
    tpu.vector_store %arg7[%365, %c0_87, %c0_88], %368 {strides = array<i32>} : memref<16x8x32xf32, #tpu.memory_space<vmem>>, vector<1x8x32xf32>,
    %c4_i32 = arith.constant 4 : i32
    %369 = arith.addi %6, %c4_i32 : i32
    %c15_i32_89 = arith.constant 15 : i32
    %370 = arith.subi %c15_i32_89, %369 : i32
    %371 = vector.broadcast %369 : i32 to vector<8x1xi32>
    %372 = arith.cmpi sgt, %3, %371 : vector<8x1xi32>
    %373 = vector.shape_cast %372 : vector<8x1xi1> to vector<8x1xi1>
    %374 = vector.broadcast %373 : vector<8x1xi1> to vector<8x32xi1>
    %375 = vector.broadcast %370 : i32 to vector<8x1xi32>
    %376 = arith.cmpi sgt, %3, %375 : vector<8x1xi32>
    %377 = vector.shape_cast %376 : vector<8x1xi1> to vector<8x1xi1>
    %378 = vector.broadcast %377 : vector<8x1xi1> to vector<8x32xi1>
    %379 = arith.index_cast %c4_i32 : i32 to index
    %c0_90 = arith.constant 0 : index
    %c0_91 = arith.constant 0 : index
    %380 = vector.load %arg1[%379, %c0_90, %c0_91] : memref<16x8x96xf32, #tpu.memory_space<vmem>>, vector<1x8x96xf32>
    %381 = vector.shape_cast %380 : vector<1x8x96xf32> to vector<8x96xf32>
    %c15_i32_92 = arith.constant 15 : i32
    %382 = arith.subi %c15_i32_92, %c4_i32 : i32
    %383 = arith.index_cast %382 : i32 to index
    %c0_93 = arith.constant 0 : index
    %c0_94 = arith.constant 0 : index
    %384 = vector.load %arg2[%383, %c0_93, %c0_94] : memref<16x8x96xf32, #tpu.memory_space<vmem>>, vector<1x8x96xf32>
    %385 = vector.shape_cast %384 : vector<1x8x96xf32> to vector<8x96xf32>
    %386 = tpu.concatenate %327, %355 in 1 : vector<8x32xf32>, vector<8x32xf32> -> vector<8x64xf32>
    %cst_95 = arith.constant dense<0.000000e+00> : vector<8x192xf32>
    %387 = tpu.matmul %386, %4, %cst_95 {dimension_numbers = #tpu.dot_dimension_numbers<[1], [0], [0], [1], [0, 0, 1, 1], [], []>} : vector<8x64xf32>, vector<64x192xf32>, vector<8x192xf32> -> vector<8x192xf32>
    %388 = vector.broadcast %5 : vector<1x192xf32> to vector<8x192xf32>
    %389 = arith.addf %387, %388 : vector<8x192xf32>
    %390 = vector.extract_strided_slice %389 {offsets = [0, 0], sizes = [8, 96], strides = [1, 1]} : vector<8x192xf32> to vector<8x96xf32>
    %391 = vector.extract_strided_slice %381 {offsets = [0, 0], sizes = [8, 32], strides = [1, 1]} : vector<8x96xf32> to vector<8x32xf32>
    %392 = vector.extract_strided_slice %390 {offsets = [0, 0], sizes = [8, 32], strides = [1, 1]} : vector<8x96xf32> to vector<8x32xf32>
    %393 = arith.addf %391, %392 : vector<8x32xf32>
    %394 = arith.negf %393 : vector<8x32xf32>
    %395 = math.exp %394 : vector<8x32xf32>
    %cst_96 = arith.constant 1.000000e+00 : f32
    %396 = vector.broadcast %cst_96 : f32 to vector<8x32xf32>
    %397 = arith.addf %396, %395 : vector<8x32xf32>
    %398 = arith.divf %396, %397 : vector<8x32xf32>
    %399 = vector.extract_strided_slice %381 {offsets = [0, 32], sizes = [8, 32], strides = [1, 1]} : vector<8x96xf32> to vector<8x32xf32>
    %400 = vector.extract_strided_slice %390 {offsets = [0, 32], sizes = [8, 32], strides = [1, 1]} : vector<8x96xf32> to vector<8x32xf32>
    %401 = arith.addf %399, %400 : vector<8x32xf32>
    %402 = arith.negf %401 : vector<8x32xf32>
    %403 = math.exp %402 : vector<8x32xf32>
    %cst_97 = arith.constant 1.000000e+00 : f32
    %404 = vector.broadcast %cst_97 : f32 to vector<8x32xf32>
    %405 = arith.addf %404, %403 : vector<8x32xf32>
    %406 = arith.divf %404, %405 : vector<8x32xf32>
    %407 = vector.extract_strided_slice %381 {offsets = [0, 64], sizes = [8, 32], strides = [1, 1]} : vector<8x96xf32> to vector<8x32xf32>
    %408 = vector.extract_strided_slice %390 {offsets = [0, 64], sizes = [8, 32], strides = [1, 1]} : vector<8x96xf32> to vector<8x32xf32>
    %409 = arith.mulf %398, %408 : vector<8x32xf32>
    %410 = arith.addf %407, %409 : vector<8x32xf32>
    %411 = math.tanh %410 : vector<8x32xf32>
    %cst_98 = arith.constant 1.000000e+00 : f32
    %412 = vector.broadcast %cst_98 : f32 to vector<8x32xf32>
    %413 = arith.subf %412, %406 : vector<8x32xf32>
    %414 = arith.mulf %413, %411 : vector<8x32xf32>
    %415 = arith.mulf %406, %327 : vector<8x32xf32>
    %416 = arith.addf %414, %415 : vector<8x32xf32>
    %417 = arith.select %374, %416, %327 : vector<8x32xi1>, vector<8x32xf32>
    %418 = vector.extract_strided_slice %389 {offsets = [0, 96], sizes = [8, 96], strides = [1, 1]} : vector<8x192xf32> to vector<8x96xf32>
    %419 = vector.extract_strided_slice %385 {offsets = [0, 0], sizes = [8, 32], strides = [1, 1]} : vector<8x96xf32> to vector<8x32xf32>
    %420 = vector.extract_strided_slice %418 {offsets = [0, 0], sizes = [8, 32], strides = [1, 1]} : vector<8x96xf32> to vector<8x32xf32>
    %421 = arith.addf %419, %420 : vector<8x32xf32>
    %422 = arith.negf %421 : vector<8x32xf32>
    %423 = math.exp %422 : vector<8x32xf32>
    %cst_99 = arith.constant 1.000000e+00 : f32
    %424 = vector.broadcast %cst_99 : f32 to vector<8x32xf32>
    %425 = arith.addf %424, %423 : vector<8x32xf32>
    %426 = arith.divf %424, %425 : vector<8x32xf32>
    %427 = vector.extract_strided_slice %385 {offsets = [0, 32], sizes = [8, 32], strides = [1, 1]} : vector<8x96xf32> to vector<8x32xf32>
    %428 = vector.extract_strided_slice %418 {offsets = [0, 32], sizes = [8, 32], strides = [1, 1]} : vector<8x96xf32> to vector<8x32xf32>
    %429 = arith.addf %427, %428 : vector<8x32xf32>
    %430 = arith.negf %429 : vector<8x32xf32>
    %431 = math.exp %430 : vector<8x32xf32>
    %cst_100 = arith.constant 1.000000e+00 : f32
    %432 = vector.broadcast %cst_100 : f32 to vector<8x32xf32>
    %433 = arith.addf %432, %431 : vector<8x32xf32>
    %434 = arith.divf %432, %433 : vector<8x32xf32>
    %435 = vector.extract_strided_slice %385 {offsets = [0, 64], sizes = [8, 32], strides = [1, 1]} : vector<8x96xf32> to vector<8x32xf32>
    %436 = vector.extract_strided_slice %418 {offsets = [0, 64], sizes = [8, 32], strides = [1, 1]} : vector<8x96xf32> to vector<8x32xf32>
    %437 = arith.mulf %426, %436 : vector<8x32xf32>
    %438 = arith.addf %435, %437 : vector<8x32xf32>
    %439 = math.tanh %438 : vector<8x32xf32>
    %cst_101 = arith.constant 1.000000e+00 : f32
    %440 = vector.broadcast %cst_101 : f32 to vector<8x32xf32>
    %441 = arith.subf %440, %434 : vector<8x32xf32>
    %442 = arith.mulf %441, %439 : vector<8x32xf32>
    %443 = arith.mulf %434, %355 : vector<8x32xf32>
    %444 = arith.addf %442, %443 : vector<8x32xf32>
    %445 = arith.select %378, %444, %355 : vector<8x32xi1>, vector<8x32xf32>
    %cst_102 = arith.constant 0.000000e+00 : f32
    %446 = vector.broadcast %cst_102 : f32 to vector<8x32xf32>
    %447 = arith.select %374, %417, %446 : vector<8x32xi1>, vector<8x32xf32>
    %448 = arith.index_cast %c4_i32 : i32 to index
    %c0_103 = arith.constant 0 : index
    %c0_104 = arith.constant 0 : index
    %449 = vector.load %arg6[%448, %c0_103, %c0_104] : memref<16x8x32xf32, #tpu.memory_space<vmem>>, vector<1x8x32xf32>
    %450 = vector.shape_cast %449 : vector<1x8x32xf32> to vector<8x32xf32>
    %451 = vector.shape_cast %447 : vector<8x32xf32> to vector<1x8x32xf32>
    tpu.vector_store %arg6[%448, %c0_103, %c0_104], %451 {strides = array<i32>} : memref<16x8x32xf32, #tpu.memory_space<vmem>>, vector<1x8x32xf32>,
    %cst_105 = arith.constant 0.000000e+00 : f32
    %452 = vector.broadcast %cst_105 : f32 to vector<8x32xf32>
    %453 = arith.select %378, %445, %452 : vector<8x32xi1>, vector<8x32xf32>
    %c15_i32_106 = arith.constant 15 : i32
    %454 = arith.subi %c15_i32_106, %c4_i32 : i32
    %455 = arith.index_cast %454 : i32 to index
    %c0_107 = arith.constant 0 : index
    %c0_108 = arith.constant 0 : index
    %456 = vector.load %arg7[%455, %c0_107, %c0_108] : memref<16x8x32xf32, #tpu.memory_space<vmem>>, vector<1x8x32xf32>
    %457 = vector.shape_cast %456 : vector<1x8x32xf32> to vector<8x32xf32>
    %458 = vector.shape_cast %453 : vector<8x32xf32> to vector<1x8x32xf32>
    tpu.vector_store %arg7[%455, %c0_107, %c0_108], %458 {strides = array<i32>} : memref<16x8x32xf32, #tpu.memory_space<vmem>>, vector<1x8x32xf32>,
    %c5_i32 = arith.constant 5 : i32
    %459 = arith.addi %6, %c5_i32 : i32
    %c15_i32_109 = arith.constant 15 : i32
    %460 = arith.subi %c15_i32_109, %459 : i32
    %461 = vector.broadcast %459 : i32 to vector<8x1xi32>
    %462 = arith.cmpi sgt, %3, %461 : vector<8x1xi32>
    %463 = vector.shape_cast %462 : vector<8x1xi1> to vector<8x1xi1>
    %464 = vector.broadcast %463 : vector<8x1xi1> to vector<8x32xi1>
    %465 = vector.broadcast %460 : i32 to vector<8x1xi32>
    %466 = arith.cmpi sgt, %3, %465 : vector<8x1xi32>
    %467 = vector.shape_cast %466 : vector<8x1xi1> to vector<8x1xi1>
    %468 = vector.broadcast %467 : vector<8x1xi1> to vector<8x32xi1>
    %469 = arith.index_cast %c5_i32 : i32 to index
    %c0_110 = arith.constant 0 : index
    %c0_111 = arith.constant 0 : index
    %470 = vector.load %arg1[%469, %c0_110, %c0_111] : memref<16x8x96xf32, #tpu.memory_space<vmem>>, vector<1x8x96xf32>
    %471 = vector.shape_cast %470 : vector<1x8x96xf32> to vector<8x96xf32>
    %c15_i32_112 = arith.constant 15 : i32
    %472 = arith.subi %c15_i32_112, %c5_i32 : i32
    %473 = arith.index_cast %472 : i32 to index
    %c0_113 = arith.constant 0 : index
    %c0_114 = arith.constant 0 : index
    %474 = vector.load %arg2[%473, %c0_113, %c0_114] : memref<16x8x96xf32, #tpu.memory_space<vmem>>, vector<1x8x96xf32>
    %475 = vector.shape_cast %474 : vector<1x8x96xf32> to vector<8x96xf32>
    %476 = tpu.concatenate %417, %445 in 1 : vector<8x32xf32>, vector<8x32xf32> -> vector<8x64xf32>
    %cst_115 = arith.constant dense<0.000000e+00> : vector<8x192xf32>
    %477 = tpu.matmul %476, %4, %cst_115 {dimension_numbers = #tpu.dot_dimension_numbers<[1], [0], [0], [1], [0, 0, 1, 1], [], []>} : vector<8x64xf32>, vector<64x192xf32>, vector<8x192xf32> -> vector<8x192xf32>
    %478 = vector.broadcast %5 : vector<1x192xf32> to vector<8x192xf32>
    %479 = arith.addf %477, %478 : vector<8x192xf32>
    %480 = vector.extract_strided_slice %479 {offsets = [0, 0], sizes = [8, 96], strides = [1, 1]} : vector<8x192xf32> to vector<8x96xf32>
    %481 = vector.extract_strided_slice %471 {offsets = [0, 0], sizes = [8, 32], strides = [1, 1]} : vector<8x96xf32> to vector<8x32xf32>
    %482 = vector.extract_strided_slice %480 {offsets = [0, 0], sizes = [8, 32], strides = [1, 1]} : vector<8x96xf32> to vector<8x32xf32>
    %483 = arith.addf %481, %482 : vector<8x32xf32>
    %484 = arith.negf %483 : vector<8x32xf32>
    %485 = math.exp %484 : vector<8x32xf32>
    %cst_116 = arith.constant 1.000000e+00 : f32
    %486 = vector.broadcast %cst_116 : f32 to vector<8x32xf32>
    %487 = arith.addf %486, %485 : vector<8x32xf32>
    %488 = arith.divf %486, %487 : vector<8x32xf32>
    %489 = vector.extract_strided_slice %471 {offsets = [0, 32], sizes = [8, 32], strides = [1, 1]} : vector<8x96xf32> to vector<8x32xf32>
    %490 = vector.extract_strided_slice %480 {offsets = [0, 32], sizes = [8, 32], strides = [1, 1]} : vector<8x96xf32> to vector<8x32xf32>
    %491 = arith.addf %489, %490 : vector<8x32xf32>
    %492 = arith.negf %491 : vector<8x32xf32>
    %493 = math.exp %492 : vector<8x32xf32>
    %cst_117 = arith.constant 1.000000e+00 : f32
    %494 = vector.broadcast %cst_117 : f32 to vector<8x32xf32>
    %495 = arith.addf %494, %493 : vector<8x32xf32>
    %496 = arith.divf %494, %495 : vector<8x32xf32>
    %497 = vector.extract_strided_slice %471 {offsets = [0, 64], sizes = [8, 32], strides = [1, 1]} : vector<8x96xf32> to vector<8x32xf32>
    %498 = vector.extract_strided_slice %480 {offsets = [0, 64], sizes = [8, 32], strides = [1, 1]} : vector<8x96xf32> to vector<8x32xf32>
    %499 = arith.mulf %488, %498 : vector<8x32xf32>
    %500 = arith.addf %497, %499 : vector<8x32xf32>
    %501 = math.tanh %500 : vector<8x32xf32>
    %cst_118 = arith.constant 1.000000e+00 : f32
    %502 = vector.broadcast %cst_118 : f32 to vector<8x32xf32>
    %503 = arith.subf %502, %496 : vector<8x32xf32>
    %504 = arith.mulf %503, %501 : vector<8x32xf32>
    %505 = arith.mulf %496, %417 : vector<8x32xf32>
    %506 = arith.addf %504, %505 : vector<8x32xf32>
    %507 = arith.select %464, %506, %417 : vector<8x32xi1>, vector<8x32xf32>
    %508 = vector.extract_strided_slice %479 {offsets = [0, 96], sizes = [8, 96], strides = [1, 1]} : vector<8x192xf32> to vector<8x96xf32>
    %509 = vector.extract_strided_slice %475 {offsets = [0, 0], sizes = [8, 32], strides = [1, 1]} : vector<8x96xf32> to vector<8x32xf32>
    %510 = vector.extract_strided_slice %508 {offsets = [0, 0], sizes = [8, 32], strides = [1, 1]} : vector<8x96xf32> to vector<8x32xf32>
    %511 = arith.addf %509, %510 : vector<8x32xf32>
    %512 = arith.negf %511 : vector<8x32xf32>
    %513 = math.exp %512 : vector<8x32xf32>
    %cst_119 = arith.constant 1.000000e+00 : f32
    %514 = vector.broadcast %cst_119 : f32 to vector<8x32xf32>
    %515 = arith.addf %514, %513 : vector<8x32xf32>
    %516 = arith.divf %514, %515 : vector<8x32xf32>
    %517 = vector.extract_strided_slice %475 {offsets = [0, 32], sizes = [8, 32], strides = [1, 1]} : vector<8x96xf32> to vector<8x32xf32>
    %518 = vector.extract_strided_slice %508 {offsets = [0, 32], sizes = [8, 32], strides = [1, 1]} : vector<8x96xf32> to vector<8x32xf32>
    %519 = arith.addf %517, %518 : vector<8x32xf32>
    %520 = arith.negf %519 : vector<8x32xf32>
    %521 = math.exp %520 : vector<8x32xf32>
    %cst_120 = arith.constant 1.000000e+00 : f32
    %522 = vector.broadcast %cst_120 : f32 to vector<8x32xf32>
    %523 = arith.addf %522, %521 : vector<8x32xf32>
    %524 = arith.divf %522, %523 : vector<8x32xf32>
    %525 = vector.extract_strided_slice %475 {offsets = [0, 64], sizes = [8, 32], strides = [1, 1]} : vector<8x96xf32> to vector<8x32xf32>
    %526 = vector.extract_strided_slice %508 {offsets = [0, 64], sizes = [8, 32], strides = [1, 1]} : vector<8x96xf32> to vector<8x32xf32>
    %527 = arith.mulf %516, %526 : vector<8x32xf32>
    %528 = arith.addf %525, %527 : vector<8x32xf32>
    %529 = math.tanh %528 : vector<8x32xf32>
    %cst_121 = arith.constant 1.000000e+00 : f32
    %530 = vector.broadcast %cst_121 : f32 to vector<8x32xf32>
    %531 = arith.subf %530, %524 : vector<8x32xf32>
    %532 = arith.mulf %531, %529 : vector<8x32xf32>
    %533 = arith.mulf %524, %445 : vector<8x32xf32>
    %534 = arith.addf %532, %533 : vector<8x32xf32>
    %535 = arith.select %468, %534, %445 : vector<8x32xi1>, vector<8x32xf32>
    %cst_122 = arith.constant 0.000000e+00 : f32
    %536 = vector.broadcast %cst_122 : f32 to vector<8x32xf32>
    %537 = arith.select %464, %507, %536 : vector<8x32xi1>, vector<8x32xf32>
    %538 = arith.index_cast %c5_i32 : i32 to index
    %c0_123 = arith.constant 0 : index
    %c0_124 = arith.constant 0 : index
    %539 = vector.load %arg6[%538, %c0_123, %c0_124] : memref<16x8x32xf32, #tpu.memory_space<vmem>>, vector<1x8x32xf32>
    %540 = vector.shape_cast %539 : vector<1x8x32xf32> to vector<8x32xf32>
    %541 = vector.shape_cast %537 : vector<8x32xf32> to vector<1x8x32xf32>
    tpu.vector_store %arg6[%538, %c0_123, %c0_124], %541 {strides = array<i32>} : memref<16x8x32xf32, #tpu.memory_space<vmem>>, vector<1x8x32xf32>,
    %cst_125 = arith.constant 0.000000e+00 : f32
    %542 = vector.broadcast %cst_125 : f32 to vector<8x32xf32>
    %543 = arith.select %468, %535, %542 : vector<8x32xi1>, vector<8x32xf32>
    %c15_i32_126 = arith.constant 15 : i32
    %544 = arith.subi %c15_i32_126, %c5_i32 : i32
    %545 = arith.index_cast %544 : i32 to index
    %c0_127 = arith.constant 0 : index
    %c0_128 = arith.constant 0 : index
    %546 = vector.load %arg7[%545, %c0_127, %c0_128] : memref<16x8x32xf32, #tpu.memory_space<vmem>>, vector<1x8x32xf32>
    %547 = vector.shape_cast %546 : vector<1x8x32xf32> to vector<8x32xf32>
    %548 = vector.shape_cast %543 : vector<8x32xf32> to vector<1x8x32xf32>
    tpu.vector_store %arg7[%545, %c0_127, %c0_128], %548 {strides = array<i32>} : memref<16x8x32xf32, #tpu.memory_space<vmem>>, vector<1x8x32xf32>,
    %c6_i32 = arith.constant 6 : i32
    %549 = arith.addi %6, %c6_i32 : i32
    %c15_i32_129 = arith.constant 15 : i32
    %550 = arith.subi %c15_i32_129, %549 : i32
    %551 = vector.broadcast %549 : i32 to vector<8x1xi32>
    %552 = arith.cmpi sgt, %3, %551 : vector<8x1xi32>
    %553 = vector.shape_cast %552 : vector<8x1xi1> to vector<8x1xi1>
    %554 = vector.broadcast %553 : vector<8x1xi1> to vector<8x32xi1>
    %555 = vector.broadcast %550 : i32 to vector<8x1xi32>
    %556 = arith.cmpi sgt, %3, %555 : vector<8x1xi32>
    %557 = vector.shape_cast %556 : vector<8x1xi1> to vector<8x1xi1>
    %558 = vector.broadcast %557 : vector<8x1xi1> to vector<8x32xi1>
    %559 = arith.index_cast %c6_i32 : i32 to index
    %c0_130 = arith.constant 0 : index
    %c0_131 = arith.constant 0 : index
    %560 = vector.load %arg1[%559, %c0_130, %c0_131] : memref<16x8x96xf32, #tpu.memory_space<vmem>>, vector<1x8x96xf32>
    %561 = vector.shape_cast %560 : vector<1x8x96xf32> to vector<8x96xf32>
    %c15_i32_132 = arith.constant 15 : i32
    %562 = arith.subi %c15_i32_132, %c6_i32 : i32
    %563 = arith.index_cast %562 : i32 to index
    %c0_133 = arith.constant 0 : index
    %c0_134 = arith.constant 0 : index
    %564 = vector.load %arg2[%563, %c0_133, %c0_134] : memref<16x8x96xf32, #tpu.memory_space<vmem>>, vector<1x8x96xf32>
    %565 = vector.shape_cast %564 : vector<1x8x96xf32> to vector<8x96xf32>
    %566 = tpu.concatenate %507, %535 in 1 : vector<8x32xf32>, vector<8x32xf32> -> vector<8x64xf32>
    %cst_135 = arith.constant dense<0.000000e+00> : vector<8x192xf32>
    %567 = tpu.matmul %566, %4, %cst_135 {dimension_numbers = #tpu.dot_dimension_numbers<[1], [0], [0], [1], [0, 0, 1, 1], [], []>} : vector<8x64xf32>, vector<64x192xf32>, vector<8x192xf32> -> vector<8x192xf32>
    %568 = vector.broadcast %5 : vector<1x192xf32> to vector<8x192xf32>
    %569 = arith.addf %567, %568 : vector<8x192xf32>
    %570 = vector.extract_strided_slice %569 {offsets = [0, 0], sizes = [8, 96], strides = [1, 1]} : vector<8x192xf32> to vector<8x96xf32>
    %571 = vector.extract_strided_slice %561 {offsets = [0, 0], sizes = [8, 32], strides = [1, 1]} : vector<8x96xf32> to vector<8x32xf32>
    %572 = vector.extract_strided_slice %570 {offsets = [0, 0], sizes = [8, 32], strides = [1, 1]} : vector<8x96xf32> to vector<8x32xf32>
    %573 = arith.addf %571, %572 : vector<8x32xf32>
    %574 = arith.negf %573 : vector<8x32xf32>
    %575 = math.exp %574 : vector<8x32xf32>
    %cst_136 = arith.constant 1.000000e+00 : f32
    %576 = vector.broadcast %cst_136 : f32 to vector<8x32xf32>
    %577 = arith.addf %576, %575 : vector<8x32xf32>
    %578 = arith.divf %576, %577 : vector<8x32xf32>
    %579 = vector.extract_strided_slice %561 {offsets = [0, 32], sizes = [8, 32], strides = [1, 1]} : vector<8x96xf32> to vector<8x32xf32>
    %580 = vector.extract_strided_slice %570 {offsets = [0, 32], sizes = [8, 32], strides = [1, 1]} : vector<8x96xf32> to vector<8x32xf32>
    %581 = arith.addf %579, %580 : vector<8x32xf32>
    %582 = arith.negf %581 : vector<8x32xf32>
    %583 = math.exp %582 : vector<8x32xf32>
    %cst_137 = arith.constant 1.000000e+00 : f32
    %584 = vector.broadcast %cst_137 : f32 to vector<8x32xf32>
    %585 = arith.addf %584, %583 : vector<8x32xf32>
    %586 = arith.divf %584, %585 : vector<8x32xf32>
    %587 = vector.extract_strided_slice %561 {offsets = [0, 64], sizes = [8, 32], strides = [1, 1]} : vector<8x96xf32> to vector<8x32xf32>
    %588 = vector.extract_strided_slice %570 {offsets = [0, 64], sizes = [8, 32], strides = [1, 1]} : vector<8x96xf32> to vector<8x32xf32>
    %589 = arith.mulf %578, %588 : vector<8x32xf32>
    %590 = arith.addf %587, %589 : vector<8x32xf32>
    %591 = math.tanh %590 : vector<8x32xf32>
    %cst_138 = arith.constant 1.000000e+00 : f32
    %592 = vector.broadcast %cst_138 : f32 to vector<8x32xf32>
    %593 = arith.subf %592, %586 : vector<8x32xf32>
    %594 = arith.mulf %593, %591 : vector<8x32xf32>
    %595 = arith.mulf %586, %507 : vector<8x32xf32>
    %596 = arith.addf %594, %595 : vector<8x32xf32>
    %597 = arith.select %554, %596, %507 : vector<8x32xi1>, vector<8x32xf32>
    %598 = vector.extract_strided_slice %569 {offsets = [0, 96], sizes = [8, 96], strides = [1, 1]} : vector<8x192xf32> to vector<8x96xf32>
    %599 = vector.extract_strided_slice %565 {offsets = [0, 0], sizes = [8, 32], strides = [1, 1]} : vector<8x96xf32> to vector<8x32xf32>
    %600 = vector.extract_strided_slice %598 {offsets = [0, 0], sizes = [8, 32], strides = [1, 1]} : vector<8x96xf32> to vector<8x32xf32>
    %601 = arith.addf %599, %600 : vector<8x32xf32>
    %602 = arith.negf %601 : vector<8x32xf32>
    %603 = math.exp %602 : vector<8x32xf32>
    %cst_139 = arith.constant 1.000000e+00 : f32
    %604 = vector.broadcast %cst_139 : f32 to vector<8x32xf32>
    %605 = arith.addf %604, %603 : vector<8x32xf32>
    %606 = arith.divf %604, %605 : vector<8x32xf32>
    %607 = vector.extract_strided_slice %565 {offsets = [0, 32], sizes = [8, 32], strides = [1, 1]} : vector<8x96xf32> to vector<8x32xf32>
    %608 = vector.extract_strided_slice %598 {offsets = [0, 32], sizes = [8, 32], strides = [1, 1]} : vector<8x96xf32> to vector<8x32xf32>
    %609 = arith.addf %607, %608 : vector<8x32xf32>
    %610 = arith.negf %609 : vector<8x32xf32>
    %611 = math.exp %610 : vector<8x32xf32>
    %cst_140 = arith.constant 1.000000e+00 : f32
    %612 = vector.broadcast %cst_140 : f32 to vector<8x32xf32>
    %613 = arith.addf %612, %611 : vector<8x32xf32>
    %614 = arith.divf %612, %613 : vector<8x32xf32>
    %615 = vector.extract_strided_slice %565 {offsets = [0, 64], sizes = [8, 32], strides = [1, 1]} : vector<8x96xf32> to vector<8x32xf32>
    %616 = vector.extract_strided_slice %598 {offsets = [0, 64], sizes = [8, 32], strides = [1, 1]} : vector<8x96xf32> to vector<8x32xf32>
    %617 = arith.mulf %606, %616 : vector<8x32xf32>
    %618 = arith.addf %615, %617 : vector<8x32xf32>
    %619 = math.tanh %618 : vector<8x32xf32>
    %cst_141 = arith.constant 1.000000e+00 : f32
    %620 = vector.broadcast %cst_141 : f32 to vector<8x32xf32>
    %621 = arith.subf %620, %614 : vector<8x32xf32>
    %622 = arith.mulf %621, %619 : vector<8x32xf32>
    %623 = arith.mulf %614, %535 : vector<8x32xf32>
    %624 = arith.addf %622, %623 : vector<8x32xf32>
    %625 = arith.select %558, %624, %535 : vector<8x32xi1>, vector<8x32xf32>
    %cst_142 = arith.constant 0.000000e+00 : f32
    %626 = vector.broadcast %cst_142 : f32 to vector<8x32xf32>
    %627 = arith.select %554, %597, %626 : vector<8x32xi1>, vector<8x32xf32>
    %628 = arith.index_cast %c6_i32 : i32 to index
    %c0_143 = arith.constant 0 : index
    %c0_144 = arith.constant 0 : index
    %629 = vector.load %arg6[%628, %c0_143, %c0_144] : memref<16x8x32xf32, #tpu.memory_space<vmem>>, vector<1x8x32xf32>
    %630 = vector.shape_cast %629 : vector<1x8x32xf32> to vector<8x32xf32>
    %631 = vector.shape_cast %627 : vector<8x32xf32> to vector<1x8x32xf32>
    tpu.vector_store %arg6[%628, %c0_143, %c0_144], %631 {strides = array<i32>} : memref<16x8x32xf32, #tpu.memory_space<vmem>>, vector<1x8x32xf32>,
    %cst_145 = arith.constant 0.000000e+00 : f32
    %632 = vector.broadcast %cst_145 : f32 to vector<8x32xf32>
    %633 = arith.select %558, %625, %632 : vector<8x32xi1>, vector<8x32xf32>
    %c15_i32_146 = arith.constant 15 : i32
    %634 = arith.subi %c15_i32_146, %c6_i32 : i32
    %635 = arith.index_cast %634 : i32 to index
    %c0_147 = arith.constant 0 : index
    %c0_148 = arith.constant 0 : index
    %636 = vector.load %arg7[%635, %c0_147, %c0_148] : memref<16x8x32xf32, #tpu.memory_space<vmem>>, vector<1x8x32xf32>
    %637 = vector.shape_cast %636 : vector<1x8x32xf32> to vector<8x32xf32>
    %638 = vector.shape_cast %633 : vector<8x32xf32> to vector<1x8x32xf32>
    tpu.vector_store %arg7[%635, %c0_147, %c0_148], %638 {strides = array<i32>} : memref<16x8x32xf32, #tpu.memory_space<vmem>>, vector<1x8x32xf32>,
    %c7_i32 = arith.constant 7 : i32
    %639 = arith.addi %6, %c7_i32 : i32
    %c15_i32_149 = arith.constant 15 : i32
    %640 = arith.subi %c15_i32_149, %639 : i32
    %641 = vector.broadcast %639 : i32 to vector<8x1xi32>
    %642 = arith.cmpi sgt, %3, %641 : vector<8x1xi32>
    %643 = vector.shape_cast %642 : vector<8x1xi1> to vector<8x1xi1>
    %644 = vector.broadcast %643 : vector<8x1xi1> to vector<8x32xi1>
    %645 = vector.broadcast %640 : i32 to vector<8x1xi32>
    %646 = arith.cmpi sgt, %3, %645 : vector<8x1xi32>
    %647 = vector.shape_cast %646 : vector<8x1xi1> to vector<8x1xi1>
    %648 = vector.broadcast %647 : vector<8x1xi1> to vector<8x32xi1>
    %649 = arith.index_cast %c7_i32 : i32 to index
    %c0_150 = arith.constant 0 : index
    %c0_151 = arith.constant 0 : index
    %650 = vector.load %arg1[%649, %c0_150, %c0_151] : memref<16x8x96xf32, #tpu.memory_space<vmem>>, vector<1x8x96xf32>
    %651 = vector.shape_cast %650 : vector<1x8x96xf32> to vector<8x96xf32>
    %c15_i32_152 = arith.constant 15 : i32
    %652 = arith.subi %c15_i32_152, %c7_i32 : i32
    %653 = arith.index_cast %652 : i32 to index
    %c0_153 = arith.constant 0 : index
    %c0_154 = arith.constant 0 : index
    %654 = vector.load %arg2[%653, %c0_153, %c0_154] : memref<16x8x96xf32, #tpu.memory_space<vmem>>, vector<1x8x96xf32>
    %655 = vector.shape_cast %654 : vector<1x8x96xf32> to vector<8x96xf32>
    %656 = tpu.concatenate %597, %625 in 1 : vector<8x32xf32>, vector<8x32xf32> -> vector<8x64xf32>
    %cst_155 = arith.constant dense<0.000000e+00> : vector<8x192xf32>
    %657 = tpu.matmul %656, %4, %cst_155 {dimension_numbers = #tpu.dot_dimension_numbers<[1], [0], [0], [1], [0, 0, 1, 1], [], []>} : vector<8x64xf32>, vector<64x192xf32>, vector<8x192xf32> -> vector<8x192xf32>
    %658 = vector.broadcast %5 : vector<1x192xf32> to vector<8x192xf32>
    %659 = arith.addf %657, %658 : vector<8x192xf32>
    %660 = vector.extract_strided_slice %659 {offsets = [0, 0], sizes = [8, 96], strides = [1, 1]} : vector<8x192xf32> to vector<8x96xf32>
    %661 = vector.extract_strided_slice %651 {offsets = [0, 0], sizes = [8, 32], strides = [1, 1]} : vector<8x96xf32> to vector<8x32xf32>
    %662 = vector.extract_strided_slice %660 {offsets = [0, 0], sizes = [8, 32], strides = [1, 1]} : vector<8x96xf32> to vector<8x32xf32>
    %663 = arith.addf %661, %662 : vector<8x32xf32>
    %664 = arith.negf %663 : vector<8x32xf32>
    %665 = math.exp %664 : vector<8x32xf32>
    %cst_156 = arith.constant 1.000000e+00 : f32
    %666 = vector.broadcast %cst_156 : f32 to vector<8x32xf32>
    %667 = arith.addf %666, %665 : vector<8x32xf32>
    %668 = arith.divf %666, %667 : vector<8x32xf32>
    %669 = vector.extract_strided_slice %651 {offsets = [0, 32], sizes = [8, 32], strides = [1, 1]} : vector<8x96xf32> to vector<8x32xf32>
    %670 = vector.extract_strided_slice %660 {offsets = [0, 32], sizes = [8, 32], strides = [1, 1]} : vector<8x96xf32> to vector<8x32xf32>
    %671 = arith.addf %669, %670 : vector<8x32xf32>
    %672 = arith.negf %671 : vector<8x32xf32>
    %673 = math.exp %672 : vector<8x32xf32>
    %cst_157 = arith.constant 1.000000e+00 : f32
    %674 = vector.broadcast %cst_157 : f32 to vector<8x32xf32>
    %675 = arith.addf %674, %673 : vector<8x32xf32>
    %676 = arith.divf %674, %675 : vector<8x32xf32>
    %677 = vector.extract_strided_slice %651 {offsets = [0, 64], sizes = [8, 32], strides = [1, 1]} : vector<8x96xf32> to vector<8x32xf32>
    %678 = vector.extract_strided_slice %660 {offsets = [0, 64], sizes = [8, 32], strides = [1, 1]} : vector<8x96xf32> to vector<8x32xf32>
    %679 = arith.mulf %668, %678 : vector<8x32xf32>
    %680 = arith.addf %677, %679 : vector<8x32xf32>
    %681 = math.tanh %680 : vector<8x32xf32>
    %cst_158 = arith.constant 1.000000e+00 : f32
    %682 = vector.broadcast %cst_158 : f32 to vector<8x32xf32>
    %683 = arith.subf %682, %676 : vector<8x32xf32>
    %684 = arith.mulf %683, %681 : vector<8x32xf32>
    %685 = arith.mulf %676, %597 : vector<8x32xf32>
    %686 = arith.addf %684, %685 : vector<8x32xf32>
    %687 = arith.select %644, %686, %597 : vector<8x32xi1>, vector<8x32xf32>
    %688 = vector.extract_strided_slice %659 {offsets = [0, 96], sizes = [8, 96], strides = [1, 1]} : vector<8x192xf32> to vector<8x96xf32>
    %689 = vector.extract_strided_slice %655 {offsets = [0, 0], sizes = [8, 32], strides = [1, 1]} : vector<8x96xf32> to vector<8x32xf32>
    %690 = vector.extract_strided_slice %688 {offsets = [0, 0], sizes = [8, 32], strides = [1, 1]} : vector<8x96xf32> to vector<8x32xf32>
    %691 = arith.addf %689, %690 : vector<8x32xf32>
    %692 = arith.negf %691 : vector<8x32xf32>
    %693 = math.exp %692 : vector<8x32xf32>
    %cst_159 = arith.constant 1.000000e+00 : f32
    %694 = vector.broadcast %cst_159 : f32 to vector<8x32xf32>
    %695 = arith.addf %694, %693 : vector<8x32xf32>
    %696 = arith.divf %694, %695 : vector<8x32xf32>
    %697 = vector.extract_strided_slice %655 {offsets = [0, 32], sizes = [8, 32], strides = [1, 1]} : vector<8x96xf32> to vector<8x32xf32>
    %698 = vector.extract_strided_slice %688 {offsets = [0, 32], sizes = [8, 32], strides = [1, 1]} : vector<8x96xf32> to vector<8x32xf32>
    %699 = arith.addf %697, %698 : vector<8x32xf32>
    %700 = arith.negf %699 : vector<8x32xf32>
    %701 = math.exp %700 : vector<8x32xf32>
    %cst_160 = arith.constant 1.000000e+00 : f32
    %702 = vector.broadcast %cst_160 : f32 to vector<8x32xf32>
    %703 = arith.addf %702, %701 : vector<8x32xf32>
    %704 = arith.divf %702, %703 : vector<8x32xf32>
    %705 = vector.extract_strided_slice %655 {offsets = [0, 64], sizes = [8, 32], strides = [1, 1]} : vector<8x96xf32> to vector<8x32xf32>
    %706 = vector.extract_strided_slice %688 {offsets = [0, 64], sizes = [8, 32], strides = [1, 1]} : vector<8x96xf32> to vector<8x32xf32>
    %707 = arith.mulf %696, %706 : vector<8x32xf32>
    %708 = arith.addf %705, %707 : vector<8x32xf32>
    %709 = math.tanh %708 : vector<8x32xf32>
    %cst_161 = arith.constant 1.000000e+00 : f32
    %710 = vector.broadcast %cst_161 : f32 to vector<8x32xf32>
    %711 = arith.subf %710, %704 : vector<8x32xf32>
    %712 = arith.mulf %711, %709 : vector<8x32xf32>
    %713 = arith.mulf %704, %625 : vector<8x32xf32>
    %714 = arith.addf %712, %713 : vector<8x32xf32>
    %715 = arith.select %648, %714, %625 : vector<8x32xi1>, vector<8x32xf32>
    %cst_162 = arith.constant 0.000000e+00 : f32
    %716 = vector.broadcast %cst_162 : f32 to vector<8x32xf32>
    %717 = arith.select %644, %687, %716 : vector<8x32xi1>, vector<8x32xf32>
    %718 = arith.index_cast %c7_i32 : i32 to index
    %c0_163 = arith.constant 0 : index
    %c0_164 = arith.constant 0 : index
    %719 = vector.load %arg6[%718, %c0_163, %c0_164] : memref<16x8x32xf32, #tpu.memory_space<vmem>>, vector<1x8x32xf32>
    %720 = vector.shape_cast %719 : vector<1x8x32xf32> to vector<8x32xf32>
    %721 = vector.shape_cast %717 : vector<8x32xf32> to vector<1x8x32xf32>
    tpu.vector_store %arg6[%718, %c0_163, %c0_164], %721 {strides = array<i32>} : memref<16x8x32xf32, #tpu.memory_space<vmem>>, vector<1x8x32xf32>,
    %cst_165 = arith.constant 0.000000e+00 : f32
    %722 = vector.broadcast %cst_165 : f32 to vector<8x32xf32>
    %723 = arith.select %648, %715, %722 : vector<8x32xi1>, vector<8x32xf32>
    %c15_i32_166 = arith.constant 15 : i32
    %724 = arith.subi %c15_i32_166, %c7_i32 : i32
    %725 = arith.index_cast %724 : i32 to index
    %c0_167 = arith.constant 0 : index
    %c0_168 = arith.constant 0 : index
    %726 = vector.load %arg7[%725, %c0_167, %c0_168] : memref<16x8x32xf32, #tpu.memory_space<vmem>>, vector<1x8x32xf32>
    %727 = vector.shape_cast %726 : vector<1x8x32xf32> to vector<8x32xf32>
    %728 = vector.shape_cast %723 : vector<8x32xf32> to vector<1x8x32xf32>
    tpu.vector_store %arg7[%725, %c0_167, %c0_168], %728 {strides = array<i32>} : memref<16x8x32xf32, #tpu.memory_space<vmem>>, vector<1x8x32xf32>,
    %c8_i32 = arith.constant 8 : i32
    %729 = arith.addi %6, %c8_i32 : i32
    %c15_i32_169 = arith.constant 15 : i32
    %730 = arith.subi %c15_i32_169, %729 : i32
    %731 = vector.broadcast %729 : i32 to vector<8x1xi32>
    %732 = arith.cmpi sgt, %3, %731 : vector<8x1xi32>
    %733 = vector.shape_cast %732 : vector<8x1xi1> to vector<8x1xi1>
    %734 = vector.broadcast %733 : vector<8x1xi1> to vector<8x32xi1>
    %735 = vector.broadcast %730 : i32 to vector<8x1xi32>
    %736 = arith.cmpi sgt, %3, %735 : vector<8x1xi32>
    %737 = vector.shape_cast %736 : vector<8x1xi1> to vector<8x1xi1>
    %738 = vector.broadcast %737 : vector<8x1xi1> to vector<8x32xi1>
    %739 = arith.index_cast %c8_i32 : i32 to index
    %c0_170 = arith.constant 0 : index
    %c0_171 = arith.constant 0 : index
    %740 = vector.load %arg1[%739, %c0_170, %c0_171] : memref<16x8x96xf32, #tpu.memory_space<vmem>>, vector<1x8x96xf32>
    %741 = vector.shape_cast %740 : vector<1x8x96xf32> to vector<8x96xf32>
    %c15_i32_172 = arith.constant 15 : i32
    %742 = arith.subi %c15_i32_172, %c8_i32 : i32
    %743 = arith.index_cast %742 : i32 to index
    %c0_173 = arith.constant 0 : index
    %c0_174 = arith.constant 0 : index
    %744 = vector.load %arg2[%743, %c0_173, %c0_174] : memref<16x8x96xf32, #tpu.memory_space<vmem>>, vector<1x8x96xf32>
    %745 = vector.shape_cast %744 : vector<1x8x96xf32> to vector<8x96xf32>
    %746 = tpu.concatenate %687, %715 in 1 : vector<8x32xf32>, vector<8x32xf32> -> vector<8x64xf32>
    %cst_175 = arith.constant dense<0.000000e+00> : vector<8x192xf32>
    %747 = tpu.matmul %746, %4, %cst_175 {dimension_numbers = #tpu.dot_dimension_numbers<[1], [0], [0], [1], [0, 0, 1, 1], [], []>} : vector<8x64xf32>, vector<64x192xf32>, vector<8x192xf32> -> vector<8x192xf32>
    %748 = vector.broadcast %5 : vector<1x192xf32> to vector<8x192xf32>
    %749 = arith.addf %747, %748 : vector<8x192xf32>
    %750 = vector.extract_strided_slice %749 {offsets = [0, 0], sizes = [8, 96], strides = [1, 1]} : vector<8x192xf32> to vector<8x96xf32>
    %751 = vector.extract_strided_slice %741 {offsets = [0, 0], sizes = [8, 32], strides = [1, 1]} : vector<8x96xf32> to vector<8x32xf32>
    %752 = vector.extract_strided_slice %750 {offsets = [0, 0], sizes = [8, 32], strides = [1, 1]} : vector<8x96xf32> to vector<8x32xf32>
    %753 = arith.addf %751, %752 : vector<8x32xf32>
    %754 = arith.negf %753 : vector<8x32xf32>
    %755 = math.exp %754 : vector<8x32xf32>
    %cst_176 = arith.constant 1.000000e+00 : f32
    %756 = vector.broadcast %cst_176 : f32 to vector<8x32xf32>
    %757 = arith.addf %756, %755 : vector<8x32xf32>
    %758 = arith.divf %756, %757 : vector<8x32xf32>
    %759 = vector.extract_strided_slice %741 {offsets = [0, 32], sizes = [8, 32], strides = [1, 1]} : vector<8x96xf32> to vector<8x32xf32>
    %760 = vector.extract_strided_slice %750 {offsets = [0, 32], sizes = [8, 32], strides = [1, 1]} : vector<8x96xf32> to vector<8x32xf32>
    %761 = arith.addf %759, %760 : vector<8x32xf32>
    %762 = arith.negf %761 : vector<8x32xf32>
    %763 = math.exp %762 : vector<8x32xf32>
    %cst_177 = arith.constant 1.000000e+00 : f32
    %764 = vector.broadcast %cst_177 : f32 to vector<8x32xf32>
    %765 = arith.addf %764, %763 : vector<8x32xf32>
    %766 = arith.divf %764, %765 : vector<8x32xf32>
    %767 = vector.extract_strided_slice %741 {offsets = [0, 64], sizes = [8, 32], strides = [1, 1]} : vector<8x96xf32> to vector<8x32xf32>
    %768 = vector.extract_strided_slice %750 {offsets = [0, 64], sizes = [8, 32], strides = [1, 1]} : vector<8x96xf32> to vector<8x32xf32>
    %769 = arith.mulf %758, %768 : vector<8x32xf32>
    %770 = arith.addf %767, %769 : vector<8x32xf32>
    %771 = math.tanh %770 : vector<8x32xf32>
    %cst_178 = arith.constant 1.000000e+00 : f32
    %772 = vector.broadcast %cst_178 : f32 to vector<8x32xf32>
    %773 = arith.subf %772, %766 : vector<8x32xf32>
    %774 = arith.mulf %773, %771 : vector<8x32xf32>
    %775 = arith.mulf %766, %687 : vector<8x32xf32>
    %776 = arith.addf %774, %775 : vector<8x32xf32>
    %777 = arith.select %734, %776, %687 : vector<8x32xi1>, vector<8x32xf32>
    %778 = vector.extract_strided_slice %749 {offsets = [0, 96], sizes = [8, 96], strides = [1, 1]} : vector<8x192xf32> to vector<8x96xf32>
    %779 = vector.extract_strided_slice %745 {offsets = [0, 0], sizes = [8, 32], strides = [1, 1]} : vector<8x96xf32> to vector<8x32xf32>
    %780 = vector.extract_strided_slice %778 {offsets = [0, 0], sizes = [8, 32], strides = [1, 1]} : vector<8x96xf32> to vector<8x32xf32>
    %781 = arith.addf %779, %780 : vector<8x32xf32>
    %782 = arith.negf %781 : vector<8x32xf32>
    %783 = math.exp %782 : vector<8x32xf32>
    %cst_179 = arith.constant 1.000000e+00 : f32
    %784 = vector.broadcast %cst_179 : f32 to vector<8x32xf32>
    %785 = arith.addf %784, %783 : vector<8x32xf32>
    %786 = arith.divf %784, %785 : vector<8x32xf32>
    %787 = vector.extract_strided_slice %745 {offsets = [0, 32], sizes = [8, 32], strides = [1, 1]} : vector<8x96xf32> to vector<8x32xf32>
    %788 = vector.extract_strided_slice %778 {offsets = [0, 32], sizes = [8, 32], strides = [1, 1]} : vector<8x96xf32> to vector<8x32xf32>
    %789 = arith.addf %787, %788 : vector<8x32xf32>
    %790 = arith.negf %789 : vector<8x32xf32>
    %791 = math.exp %790 : vector<8x32xf32>
    %cst_180 = arith.constant 1.000000e+00 : f32
    %792 = vector.broadcast %cst_180 : f32 to vector<8x32xf32>
    %793 = arith.addf %792, %791 : vector<8x32xf32>
    %794 = arith.divf %792, %793 : vector<8x32xf32>
    %795 = vector.extract_strided_slice %745 {offsets = [0, 64], sizes = [8, 32], strides = [1, 1]} : vector<8x96xf32> to vector<8x32xf32>
    %796 = vector.extract_strided_slice %778 {offsets = [0, 64], sizes = [8, 32], strides = [1, 1]} : vector<8x96xf32> to vector<8x32xf32>
    %797 = arith.mulf %786, %796 : vector<8x32xf32>
    %798 = arith.addf %795, %797 : vector<8x32xf32>
    %799 = math.tanh %798 : vector<8x32xf32>
    %cst_181 = arith.constant 1.000000e+00 : f32
    %800 = vector.broadcast %cst_181 : f32 to vector<8x32xf32>
    %801 = arith.subf %800, %794 : vector<8x32xf32>
    %802 = arith.mulf %801, %799 : vector<8x32xf32>
    %803 = arith.mulf %794, %715 : vector<8x32xf32>
    %804 = arith.addf %802, %803 : vector<8x32xf32>
    %805 = arith.select %738, %804, %715 : vector<8x32xi1>, vector<8x32xf32>
    %cst_182 = arith.constant 0.000000e+00 : f32
    %806 = vector.broadcast %cst_182 : f32 to vector<8x32xf32>
    %807 = arith.select %734, %777, %806 : vector<8x32xi1>, vector<8x32xf32>
    %808 = arith.index_cast %c8_i32 : i32 to index
    %c0_183 = arith.constant 0 : index
    %c0_184 = arith.constant 0 : index
    %809 = vector.load %arg6[%808, %c0_183, %c0_184] : memref<16x8x32xf32, #tpu.memory_space<vmem>>, vector<1x8x32xf32>
    %810 = vector.shape_cast %809 : vector<1x8x32xf32> to vector<8x32xf32>
    %811 = vector.shape_cast %807 : vector<8x32xf32> to vector<1x8x32xf32>
    tpu.vector_store %arg6[%808, %c0_183, %c0_184], %811 {strides = array<i32>} : memref<16x8x32xf32, #tpu.memory_space<vmem>>, vector<1x8x32xf32>,
    %cst_185 = arith.constant 0.000000e+00 : f32
    %812 = vector.broadcast %cst_185 : f32 to vector<8x32xf32>
    %813 = arith.select %738, %805, %812 : vector<8x32xi1>, vector<8x32xf32>
    %c15_i32_186 = arith.constant 15 : i32
    %814 = arith.subi %c15_i32_186, %c8_i32 : i32
    %815 = arith.index_cast %814 : i32 to index
    %c0_187 = arith.constant 0 : index
    %c0_188 = arith.constant 0 : index
    %816 = vector.load %arg7[%815, %c0_187, %c0_188] : memref<16x8x32xf32, #tpu.memory_space<vmem>>, vector<1x8x32xf32>
    %817 = vector.shape_cast %816 : vector<1x8x32xf32> to vector<8x32xf32>
    %818 = vector.shape_cast %813 : vector<8x32xf32> to vector<1x8x32xf32>
    tpu.vector_store %arg7[%815, %c0_187, %c0_188], %818 {strides = array<i32>} : memref<16x8x32xf32, #tpu.memory_space<vmem>>, vector<1x8x32xf32>,
    %c9_i32 = arith.constant 9 : i32
    %819 = arith.addi %6, %c9_i32 : i32
    %c15_i32_189 = arith.constant 15 : i32
    %820 = arith.subi %c15_i32_189, %819 : i32
    %821 = vector.broadcast %819 : i32 to vector<8x1xi32>
    %822 = arith.cmpi sgt, %3, %821 : vector<8x1xi32>
    %823 = vector.shape_cast %822 : vector<8x1xi1> to vector<8x1xi1>
    %824 = vector.broadcast %823 : vector<8x1xi1> to vector<8x32xi1>
    %825 = vector.broadcast %820 : i32 to vector<8x1xi32>
    %826 = arith.cmpi sgt, %3, %825 : vector<8x1xi32>
    %827 = vector.shape_cast %826 : vector<8x1xi1> to vector<8x1xi1>
    %828 = vector.broadcast %827 : vector<8x1xi1> to vector<8x32xi1>
    %829 = arith.index_cast %c9_i32 : i32 to index
    %c0_190 = arith.constant 0 : index
    %c0_191 = arith.constant 0 : index
    %830 = vector.load %arg1[%829, %c0_190, %c0_191] : memref<16x8x96xf32, #tpu.memory_space<vmem>>, vector<1x8x96xf32>
    %831 = vector.shape_cast %830 : vector<1x8x96xf32> to vector<8x96xf32>
    %c15_i32_192 = arith.constant 15 : i32
    %832 = arith.subi %c15_i32_192, %c9_i32 : i32
    %833 = arith.index_cast %832 : i32 to index
    %c0_193 = arith.constant 0 : index
    %c0_194 = arith.constant 0 : index
    %834 = vector.load %arg2[%833, %c0_193, %c0_194] : memref<16x8x96xf32, #tpu.memory_space<vmem>>, vector<1x8x96xf32>
    %835 = vector.shape_cast %834 : vector<1x8x96xf32> to vector<8x96xf32>
    %836 = tpu.concatenate %777, %805 in 1 : vector<8x32xf32>, vector<8x32xf32> -> vector<8x64xf32>
    %cst_195 = arith.constant dense<0.000000e+00> : vector<8x192xf32>
    %837 = tpu.matmul %836, %4, %cst_195 {dimension_numbers = #tpu.dot_dimension_numbers<[1], [0], [0], [1], [0, 0, 1, 1], [], []>} : vector<8x64xf32>, vector<64x192xf32>, vector<8x192xf32> -> vector<8x192xf32>
    %838 = vector.broadcast %5 : vector<1x192xf32> to vector<8x192xf32>
    %839 = arith.addf %837, %838 : vector<8x192xf32>
    %840 = vector.extract_strided_slice %839 {offsets = [0, 0], sizes = [8, 96], strides = [1, 1]} : vector<8x192xf32> to vector<8x96xf32>
    %841 = vector.extract_strided_slice %831 {offsets = [0, 0], sizes = [8, 32], strides = [1, 1]} : vector<8x96xf32> to vector<8x32xf32>
    %842 = vector.extract_strided_slice %840 {offsets = [0, 0], sizes = [8, 32], strides = [1, 1]} : vector<8x96xf32> to vector<8x32xf32>
    %843 = arith.addf %841, %842 : vector<8x32xf32>
    %844 = arith.negf %843 : vector<8x32xf32>
    %845 = math.exp %844 : vector<8x32xf32>
    %cst_196 = arith.constant 1.000000e+00 : f32
    %846 = vector.broadcast %cst_196 : f32 to vector<8x32xf32>
    %847 = arith.addf %846, %845 : vector<8x32xf32>
    %848 = arith.divf %846, %847 : vector<8x32xf32>
    %849 = vector.extract_strided_slice %831 {offsets = [0, 32], sizes = [8, 32], strides = [1, 1]} : vector<8x96xf32> to vector<8x32xf32>
    %850 = vector.extract_strided_slice %840 {offsets = [0, 32], sizes = [8, 32], strides = [1, 1]} : vector<8x96xf32> to vector<8x32xf32>
    %851 = arith.addf %849, %850 : vector<8x32xf32>
    %852 = arith.negf %851 : vector<8x32xf32>
    %853 = math.exp %852 : vector<8x32xf32>
    %cst_197 = arith.constant 1.000000e+00 : f32
    %854 = vector.broadcast %cst_197 : f32 to vector<8x32xf32>
    %855 = arith.addf %854, %853 : vector<8x32xf32>
    %856 = arith.divf %854, %855 : vector<8x32xf32>
    %857 = vector.extract_strided_slice %831 {offsets = [0, 64], sizes = [8, 32], strides = [1, 1]} : vector<8x96xf32> to vector<8x32xf32>
    %858 = vector.extract_strided_slice %840 {offsets = [0, 64], sizes = [8, 32], strides = [1, 1]} : vector<8x96xf32> to vector<8x32xf32>
    %859 = arith.mulf %848, %858 : vector<8x32xf32>
    %860 = arith.addf %857, %859 : vector<8x32xf32>
    %861 = math.tanh %860 : vector<8x32xf32>
    %cst_198 = arith.constant 1.000000e+00 : f32
    %862 = vector.broadcast %cst_198 : f32 to vector<8x32xf32>
    %863 = arith.subf %862, %856 : vector<8x32xf32>
    %864 = arith.mulf %863, %861 : vector<8x32xf32>
    %865 = arith.mulf %856, %777 : vector<8x32xf32>
    %866 = arith.addf %864, %865 : vector<8x32xf32>
    %867 = arith.select %824, %866, %777 : vector<8x32xi1>, vector<8x32xf32>
    %868 = vector.extract_strided_slice %839 {offsets = [0, 96], sizes = [8, 96], strides = [1, 1]} : vector<8x192xf32> to vector<8x96xf32>
    %869 = vector.extract_strided_slice %835 {offsets = [0, 0], sizes = [8, 32], strides = [1, 1]} : vector<8x96xf32> to vector<8x32xf32>
    %870 = vector.extract_strided_slice %868 {offsets = [0, 0], sizes = [8, 32], strides = [1, 1]} : vector<8x96xf32> to vector<8x32xf32>
    %871 = arith.addf %869, %870 : vector<8x32xf32>
    %872 = arith.negf %871 : vector<8x32xf32>
    %873 = math.exp %872 : vector<8x32xf32>
    %cst_199 = arith.constant 1.000000e+00 : f32
    %874 = vector.broadcast %cst_199 : f32 to vector<8x32xf32>
    %875 = arith.addf %874, %873 : vector<8x32xf32>
    %876 = arith.divf %874, %875 : vector<8x32xf32>
    %877 = vector.extract_strided_slice %835 {offsets = [0, 32], sizes = [8, 32], strides = [1, 1]} : vector<8x96xf32> to vector<8x32xf32>
    %878 = vector.extract_strided_slice %868 {offsets = [0, 32], sizes = [8, 32], strides = [1, 1]} : vector<8x96xf32> to vector<8x32xf32>
    %879 = arith.addf %877, %878 : vector<8x32xf32>
    %880 = arith.negf %879 : vector<8x32xf32>
    %881 = math.exp %880 : vector<8x32xf32>
    %cst_200 = arith.constant 1.000000e+00 : f32
    %882 = vector.broadcast %cst_200 : f32 to vector<8x32xf32>
    %883 = arith.addf %882, %881 : vector<8x32xf32>
    %884 = arith.divf %882, %883 : vector<8x32xf32>
    %885 = vector.extract_strided_slice %835 {offsets = [0, 64], sizes = [8, 32], strides = [1, 1]} : vector<8x96xf32> to vector<8x32xf32>
    %886 = vector.extract_strided_slice %868 {offsets = [0, 64], sizes = [8, 32], strides = [1, 1]} : vector<8x96xf32> to vector<8x32xf32>
    %887 = arith.mulf %876, %886 : vector<8x32xf32>
    %888 = arith.addf %885, %887 : vector<8x32xf32>
    %889 = math.tanh %888 : vector<8x32xf32>
    %cst_201 = arith.constant 1.000000e+00 : f32
    %890 = vector.broadcast %cst_201 : f32 to vector<8x32xf32>
    %891 = arith.subf %890, %884 : vector<8x32xf32>
    %892 = arith.mulf %891, %889 : vector<8x32xf32>
    %893 = arith.mulf %884, %805 : vector<8x32xf32>
    %894 = arith.addf %892, %893 : vector<8x32xf32>
    %895 = arith.select %828, %894, %805 : vector<8x32xi1>, vector<8x32xf32>
    %cst_202 = arith.constant 0.000000e+00 : f32
    %896 = vector.broadcast %cst_202 : f32 to vector<8x32xf32>
    %897 = arith.select %824, %867, %896 : vector<8x32xi1>, vector<8x32xf32>
    %898 = arith.index_cast %c9_i32 : i32 to index
    %c0_203 = arith.constant 0 : index
    %c0_204 = arith.constant 0 : index
    %899 = vector.load %arg6[%898, %c0_203, %c0_204] : memref<16x8x32xf32, #tpu.memory_space<vmem>>, vector<1x8x32xf32>
    %900 = vector.shape_cast %899 : vector<1x8x32xf32> to vector<8x32xf32>
    %901 = vector.shape_cast %897 : vector<8x32xf32> to vector<1x8x32xf32>
    tpu.vector_store %arg6[%898, %c0_203, %c0_204], %901 {strides = array<i32>} : memref<16x8x32xf32, #tpu.memory_space<vmem>>, vector<1x8x32xf32>,
    %cst_205 = arith.constant 0.000000e+00 : f32
    %902 = vector.broadcast %cst_205 : f32 to vector<8x32xf32>
    %903 = arith.select %828, %895, %902 : vector<8x32xi1>, vector<8x32xf32>
    %c15_i32_206 = arith.constant 15 : i32
    %904 = arith.subi %c15_i32_206, %c9_i32 : i32
    %905 = arith.index_cast %904 : i32 to index
    %c0_207 = arith.constant 0 : index
    %c0_208 = arith.constant 0 : index
    %906 = vector.load %arg7[%905, %c0_207, %c0_208] : memref<16x8x32xf32, #tpu.memory_space<vmem>>, vector<1x8x32xf32>
    %907 = vector.shape_cast %906 : vector<1x8x32xf32> to vector<8x32xf32>
    %908 = vector.shape_cast %903 : vector<8x32xf32> to vector<1x8x32xf32>
    tpu.vector_store %arg7[%905, %c0_207, %c0_208], %908 {strides = array<i32>} : memref<16x8x32xf32, #tpu.memory_space<vmem>>, vector<1x8x32xf32>,
    %c10_i32 = arith.constant 10 : i32
    %909 = arith.addi %6, %c10_i32 : i32
    %c15_i32_209 = arith.constant 15 : i32
    %910 = arith.subi %c15_i32_209, %909 : i32
    %911 = vector.broadcast %909 : i32 to vector<8x1xi32>
    %912 = arith.cmpi sgt, %3, %911 : vector<8x1xi32>
    %913 = vector.shape_cast %912 : vector<8x1xi1> to vector<8x1xi1>
    %914 = vector.broadcast %913 : vector<8x1xi1> to vector<8x32xi1>
    %915 = vector.broadcast %910 : i32 to vector<8x1xi32>
    %916 = arith.cmpi sgt, %3, %915 : vector<8x1xi32>
    %917 = vector.shape_cast %916 : vector<8x1xi1> to vector<8x1xi1>
    %918 = vector.broadcast %917 : vector<8x1xi1> to vector<8x32xi1>
    %919 = arith.index_cast %c10_i32 : i32 to index
    %c0_210 = arith.constant 0 : index
    %c0_211 = arith.constant 0 : index
    %920 = vector.load %arg1[%919, %c0_210, %c0_211] : memref<16x8x96xf32, #tpu.memory_space<vmem>>, vector<1x8x96xf32>
    %921 = vector.shape_cast %920 : vector<1x8x96xf32> to vector<8x96xf32>
    %c15_i32_212 = arith.constant 15 : i32
    %922 = arith.subi %c15_i32_212, %c10_i32 : i32
    %923 = arith.index_cast %922 : i32 to index
    %c0_213 = arith.constant 0 : index
    %c0_214 = arith.constant 0 : index
    %924 = vector.load %arg2[%923, %c0_213, %c0_214] : memref<16x8x96xf32, #tpu.memory_space<vmem>>, vector<1x8x96xf32>
    %925 = vector.shape_cast %924 : vector<1x8x96xf32> to vector<8x96xf32>
    %926 = tpu.concatenate %867, %895 in 1 : vector<8x32xf32>, vector<8x32xf32> -> vector<8x64xf32>
    %cst_215 = arith.constant dense<0.000000e+00> : vector<8x192xf32>
    %927 = tpu.matmul %926, %4, %cst_215 {dimension_numbers = #tpu.dot_dimension_numbers<[1], [0], [0], [1], [0, 0, 1, 1], [], []>} : vector<8x64xf32>, vector<64x192xf32>, vector<8x192xf32> -> vector<8x192xf32>
    %928 = vector.broadcast %5 : vector<1x192xf32> to vector<8x192xf32>
    %929 = arith.addf %927, %928 : vector<8x192xf32>
    %930 = vector.extract_strided_slice %929 {offsets = [0, 0], sizes = [8, 96], strides = [1, 1]} : vector<8x192xf32> to vector<8x96xf32>
    %931 = vector.extract_strided_slice %921 {offsets = [0, 0], sizes = [8, 32], strides = [1, 1]} : vector<8x96xf32> to vector<8x32xf32>
    %932 = vector.extract_strided_slice %930 {offsets = [0, 0], sizes = [8, 32], strides = [1, 1]} : vector<8x96xf32> to vector<8x32xf32>
    %933 = arith.addf %931, %932 : vector<8x32xf32>
    %934 = arith.negf %933 : vector<8x32xf32>
    %935 = math.exp %934 : vector<8x32xf32>
    %cst_216 = arith.constant 1.000000e+00 : f32
    %936 = vector.broadcast %cst_216 : f32 to vector<8x32xf32>
    %937 = arith.addf %936, %935 : vector<8x32xf32>
    %938 = arith.divf %936, %937 : vector<8x32xf32>
    %939 = vector.extract_strided_slice %921 {offsets = [0, 32], sizes = [8, 32], strides = [1, 1]} : vector<8x96xf32> to vector<8x32xf32>
    %940 = vector.extract_strided_slice %930 {offsets = [0, 32], sizes = [8, 32], strides = [1, 1]} : vector<8x96xf32> to vector<8x32xf32>
    %941 = arith.addf %939, %940 : vector<8x32xf32>
    %942 = arith.negf %941 : vector<8x32xf32>
    %943 = math.exp %942 : vector<8x32xf32>
    %cst_217 = arith.constant 1.000000e+00 : f32
    %944 = vector.broadcast %cst_217 : f32 to vector<8x32xf32>
    %945 = arith.addf %944, %943 : vector<8x32xf32>
    %946 = arith.divf %944, %945 : vector<8x32xf32>
    %947 = vector.extract_strided_slice %921 {offsets = [0, 64], sizes = [8, 32], strides = [1, 1]} : vector<8x96xf32> to vector<8x32xf32>
    %948 = vector.extract_strided_slice %930 {offsets = [0, 64], sizes = [8, 32], strides = [1, 1]} : vector<8x96xf32> to vector<8x32xf32>
    %949 = arith.mulf %938, %948 : vector<8x32xf32>
    %950 = arith.addf %947, %949 : vector<8x32xf32>
    %951 = math.tanh %950 : vector<8x32xf32>
    %cst_218 = arith.constant 1.000000e+00 : f32
    %952 = vector.broadcast %cst_218 : f32 to vector<8x32xf32>
    %953 = arith.subf %952, %946 : vector<8x32xf32>
    %954 = arith.mulf %953, %951 : vector<8x32xf32>
    %955 = arith.mulf %946, %867 : vector<8x32xf32>
    %956 = arith.addf %954, %955 : vector<8x32xf32>
    %957 = arith.select %914, %956, %867 : vector<8x32xi1>, vector<8x32xf32>
    %958 = vector.extract_strided_slice %929 {offsets = [0, 96], sizes = [8, 96], strides = [1, 1]} : vector<8x192xf32> to vector<8x96xf32>
    %959 = vector.extract_strided_slice %925 {offsets = [0, 0], sizes = [8, 32], strides = [1, 1]} : vector<8x96xf32> to vector<8x32xf32>
    %960 = vector.extract_strided_slice %958 {offsets = [0, 0], sizes = [8, 32], strides = [1, 1]} : vector<8x96xf32> to vector<8x32xf32>
    %961 = arith.addf %959, %960 : vector<8x32xf32>
    %962 = arith.negf %961 : vector<8x32xf32>
    %963 = math.exp %962 : vector<8x32xf32>
    %cst_219 = arith.constant 1.000000e+00 : f32
    %964 = vector.broadcast %cst_219 : f32 to vector<8x32xf32>
    %965 = arith.addf %964, %963 : vector<8x32xf32>
    %966 = arith.divf %964, %965 : vector<8x32xf32>
    %967 = vector.extract_strided_slice %925 {offsets = [0, 32], sizes = [8, 32], strides = [1, 1]} : vector<8x96xf32> to vector<8x32xf32>
    %968 = vector.extract_strided_slice %958 {offsets = [0, 32], sizes = [8, 32], strides = [1, 1]} : vector<8x96xf32> to vector<8x32xf32>
    %969 = arith.addf %967, %968 : vector<8x32xf32>
    %970 = arith.negf %969 : vector<8x32xf32>
    %971 = math.exp %970 : vector<8x32xf32>
    %cst_220 = arith.constant 1.000000e+00 : f32
    %972 = vector.broadcast %cst_220 : f32 to vector<8x32xf32>
    %973 = arith.addf %972, %971 : vector<8x32xf32>
    %974 = arith.divf %972, %973 : vector<8x32xf32>
    %975 = vector.extract_strided_slice %925 {offsets = [0, 64], sizes = [8, 32], strides = [1, 1]} : vector<8x96xf32> to vector<8x32xf32>
    %976 = vector.extract_strided_slice %958 {offsets = [0, 64], sizes = [8, 32], strides = [1, 1]} : vector<8x96xf32> to vector<8x32xf32>
    %977 = arith.mulf %966, %976 : vector<8x32xf32>
    %978 = arith.addf %975, %977 : vector<8x32xf32>
    %979 = math.tanh %978 : vector<8x32xf32>
    %cst_221 = arith.constant 1.000000e+00 : f32
    %980 = vector.broadcast %cst_221 : f32 to vector<8x32xf32>
    %981 = arith.subf %980, %974 : vector<8x32xf32>
    %982 = arith.mulf %981, %979 : vector<8x32xf32>
    %983 = arith.mulf %974, %895 : vector<8x32xf32>
    %984 = arith.addf %982, %983 : vector<8x32xf32>
    %985 = arith.select %918, %984, %895 : vector<8x32xi1>, vector<8x32xf32>
    %cst_222 = arith.constant 0.000000e+00 : f32
    %986 = vector.broadcast %cst_222 : f32 to vector<8x32xf32>
    %987 = arith.select %914, %957, %986 : vector<8x32xi1>, vector<8x32xf32>
    %988 = arith.index_cast %c10_i32 : i32 to index
    %c0_223 = arith.constant 0 : index
    %c0_224 = arith.constant 0 : index
    %989 = vector.load %arg6[%988, %c0_223, %c0_224] : memref<16x8x32xf32, #tpu.memory_space<vmem>>, vector<1x8x32xf32>
    %990 = vector.shape_cast %989 : vector<1x8x32xf32> to vector<8x32xf32>
    %991 = vector.shape_cast %987 : vector<8x32xf32> to vector<1x8x32xf32>
    tpu.vector_store %arg6[%988, %c0_223, %c0_224], %991 {strides = array<i32>} : memref<16x8x32xf32, #tpu.memory_space<vmem>>, vector<1x8x32xf32>,
    %cst_225 = arith.constant 0.000000e+00 : f32
    %992 = vector.broadcast %cst_225 : f32 to vector<8x32xf32>
    %993 = arith.select %918, %985, %992 : vector<8x32xi1>, vector<8x32xf32>
    %c15_i32_226 = arith.constant 15 : i32
    %994 = arith.subi %c15_i32_226, %c10_i32 : i32
    %995 = arith.index_cast %994 : i32 to index
    %c0_227 = arith.constant 0 : index
    %c0_228 = arith.constant 0 : index
    %996 = vector.load %arg7[%995, %c0_227, %c0_228] : memref<16x8x32xf32, #tpu.memory_space<vmem>>, vector<1x8x32xf32>
    %997 = vector.shape_cast %996 : vector<1x8x32xf32> to vector<8x32xf32>
    %998 = vector.shape_cast %993 : vector<8x32xf32> to vector<1x8x32xf32>
    tpu.vector_store %arg7[%995, %c0_227, %c0_228], %998 {strides = array<i32>} : memref<16x8x32xf32, #tpu.memory_space<vmem>>, vector<1x8x32xf32>,
    %c11_i32 = arith.constant 11 : i32
    %999 = arith.addi %6, %c11_i32 : i32
    %c15_i32_229 = arith.constant 15 : i32
    %1000 = arith.subi %c15_i32_229, %999 : i32
    %1001 = vector.broadcast %999 : i32 to vector<8x1xi32>
    %1002 = arith.cmpi sgt, %3, %1001 : vector<8x1xi32>
    %1003 = vector.shape_cast %1002 : vector<8x1xi1> to vector<8x1xi1>
    %1004 = vector.broadcast %1003 : vector<8x1xi1> to vector<8x32xi1>
    %1005 = vector.broadcast %1000 : i32 to vector<8x1xi32>
    %1006 = arith.cmpi sgt, %3, %1005 : vector<8x1xi32>
    %1007 = vector.shape_cast %1006 : vector<8x1xi1> to vector<8x1xi1>
    %1008 = vector.broadcast %1007 : vector<8x1xi1> to vector<8x32xi1>
    %1009 = arith.index_cast %c11_i32 : i32 to index
    %c0_230 = arith.constant 0 : index
    %c0_231 = arith.constant 0 : index
    %1010 = vector.load %arg1[%1009, %c0_230, %c0_231] : memref<16x8x96xf32, #tpu.memory_space<vmem>>, vector<1x8x96xf32>
    %1011 = vector.shape_cast %1010 : vector<1x8x96xf32> to vector<8x96xf32>
    %c15_i32_232 = arith.constant 15 : i32
    %1012 = arith.subi %c15_i32_232, %c11_i32 : i32
    %1013 = arith.index_cast %1012 : i32 to index
    %c0_233 = arith.constant 0 : index
    %c0_234 = arith.constant 0 : index
    %1014 = vector.load %arg2[%1013, %c0_233, %c0_234] : memref<16x8x96xf32, #tpu.memory_space<vmem>>, vector<1x8x96xf32>
    %1015 = vector.shape_cast %1014 : vector<1x8x96xf32> to vector<8x96xf32>
    %1016 = tpu.concatenate %957, %985 in 1 : vector<8x32xf32>, vector<8x32xf32> -> vector<8x64xf32>
    %cst_235 = arith.constant dense<0.000000e+00> : vector<8x192xf32>
    %1017 = tpu.matmul %1016, %4, %cst_235 {dimension_numbers = #tpu.dot_dimension_numbers<[1], [0], [0], [1], [0, 0, 1, 1], [], []>} : vector<8x64xf32>, vector<64x192xf32>, vector<8x192xf32> -> vector<8x192xf32>
    %1018 = vector.broadcast %5 : vector<1x192xf32> to vector<8x192xf32>
    %1019 = arith.addf %1017, %1018 : vector<8x192xf32>
    %1020 = vector.extract_strided_slice %1019 {offsets = [0, 0], sizes = [8, 96], strides = [1, 1]} : vector<8x192xf32> to vector<8x96xf32>
    %1021 = vector.extract_strided_slice %1011 {offsets = [0, 0], sizes = [8, 32], strides = [1, 1]} : vector<8x96xf32> to vector<8x32xf32>
    %1022 = vector.extract_strided_slice %1020 {offsets = [0, 0], sizes = [8, 32], strides = [1, 1]} : vector<8x96xf32> to vector<8x32xf32>
    %1023 = arith.addf %1021, %1022 : vector<8x32xf32>
    %1024 = arith.negf %1023 : vector<8x32xf32>
    %1025 = math.exp %1024 : vector<8x32xf32>
    %cst_236 = arith.constant 1.000000e+00 : f32
    %1026 = vector.broadcast %cst_236 : f32 to vector<8x32xf32>
    %1027 = arith.addf %1026, %1025 : vector<8x32xf32>
    %1028 = arith.divf %1026, %1027 : vector<8x32xf32>
    %1029 = vector.extract_strided_slice %1011 {offsets = [0, 32], sizes = [8, 32], strides = [1, 1]} : vector<8x96xf32> to vector<8x32xf32>
    %1030 = vector.extract_strided_slice %1020 {offsets = [0, 32], sizes = [8, 32], strides = [1, 1]} : vector<8x96xf32> to vector<8x32xf32>
    %1031 = arith.addf %1029, %1030 : vector<8x32xf32>
    %1032 = arith.negf %1031 : vector<8x32xf32>
    %1033 = math.exp %1032 : vector<8x32xf32>
    %cst_237 = arith.constant 1.000000e+00 : f32
    %1034 = vector.broadcast %cst_237 : f32 to vector<8x32xf32>
    %1035 = arith.addf %1034, %1033 : vector<8x32xf32>
    %1036 = arith.divf %1034, %1035 : vector<8x32xf32>
    %1037 = vector.extract_strided_slice %1011 {offsets = [0, 64], sizes = [8, 32], strides = [1, 1]} : vector<8x96xf32> to vector<8x32xf32>
    %1038 = vector.extract_strided_slice %1020 {offsets = [0, 64], sizes = [8, 32], strides = [1, 1]} : vector<8x96xf32> to vector<8x32xf32>
    %1039 = arith.mulf %1028, %1038 : vector<8x32xf32>
    %1040 = arith.addf %1037, %1039 : vector<8x32xf32>
    %1041 = math.tanh %1040 : vector<8x32xf32>
    %cst_238 = arith.constant 1.000000e+00 : f32
    %1042 = vector.broadcast %cst_238 : f32 to vector<8x32xf32>
    %1043 = arith.subf %1042, %1036 : vector<8x32xf32>
    %1044 = arith.mulf %1043, %1041 : vector<8x32xf32>
    %1045 = arith.mulf %1036, %957 : vector<8x32xf32>
    %1046 = arith.addf %1044, %1045 : vector<8x32xf32>
    %1047 = arith.select %1004, %1046, %957 : vector<8x32xi1>, vector<8x32xf32>
    %1048 = vector.extract_strided_slice %1019 {offsets = [0, 96], sizes = [8, 96], strides = [1, 1]} : vector<8x192xf32> to vector<8x96xf32>
    %1049 = vector.extract_strided_slice %1015 {offsets = [0, 0], sizes = [8, 32], strides = [1, 1]} : vector<8x96xf32> to vector<8x32xf32>
    %1050 = vector.extract_strided_slice %1048 {offsets = [0, 0], sizes = [8, 32], strides = [1, 1]} : vector<8x96xf32> to vector<8x32xf32>
    %1051 = arith.addf %1049, %1050 : vector<8x32xf32>
    %1052 = arith.negf %1051 : vector<8x32xf32>
    %1053 = math.exp %1052 : vector<8x32xf32>
    %cst_239 = arith.constant 1.000000e+00 : f32
    %1054 = vector.broadcast %cst_239 : f32 to vector<8x32xf32>
    %1055 = arith.addf %1054, %1053 : vector<8x32xf32>
    %1056 = arith.divf %1054, %1055 : vector<8x32xf32>
    %1057 = vector.extract_strided_slice %1015 {offsets = [0, 32], sizes = [8, 32], strides = [1, 1]} : vector<8x96xf32> to vector<8x32xf32>
    %1058 = vector.extract_strided_slice %1048 {offsets = [0, 32], sizes = [8, 32], strides = [1, 1]} : vector<8x96xf32> to vector<8x32xf32>
    %1059 = arith.addf %1057, %1058 : vector<8x32xf32>
    %1060 = arith.negf %1059 : vector<8x32xf32>
    %1061 = math.exp %1060 : vector<8x32xf32>
    %cst_240 = arith.constant 1.000000e+00 : f32
    %1062 = vector.broadcast %cst_240 : f32 to vector<8x32xf32>
    %1063 = arith.addf %1062, %1061 : vector<8x32xf32>
    %1064 = arith.divf %1062, %1063 : vector<8x32xf32>
    %1065 = vector.extract_strided_slice %1015 {offsets = [0, 64], sizes = [8, 32], strides = [1, 1]} : vector<8x96xf32> to vector<8x32xf32>
    %1066 = vector.extract_strided_slice %1048 {offsets = [0, 64], sizes = [8, 32], strides = [1, 1]} : vector<8x96xf32> to vector<8x32xf32>
    %1067 = arith.mulf %1056, %1066 : vector<8x32xf32>
    %1068 = arith.addf %1065, %1067 : vector<8x32xf32>
    %1069 = math.tanh %1068 : vector<8x32xf32>
    %cst_241 = arith.constant 1.000000e+00 : f32
    %1070 = vector.broadcast %cst_241 : f32 to vector<8x32xf32>
    %1071 = arith.subf %1070, %1064 : vector<8x32xf32>
    %1072 = arith.mulf %1071, %1069 : vector<8x32xf32>
    %1073 = arith.mulf %1064, %985 : vector<8x32xf32>
    %1074 = arith.addf %1072, %1073 : vector<8x32xf32>
    %1075 = arith.select %1008, %1074, %985 : vector<8x32xi1>, vector<8x32xf32>
    %cst_242 = arith.constant 0.000000e+00 : f32
    %1076 = vector.broadcast %cst_242 : f32 to vector<8x32xf32>
    %1077 = arith.select %1004, %1047, %1076 : vector<8x32xi1>, vector<8x32xf32>
    %1078 = arith.index_cast %c11_i32 : i32 to index
    %c0_243 = arith.constant 0 : index
    %c0_244 = arith.constant 0 : index
    %1079 = vector.load %arg6[%1078, %c0_243, %c0_244] : memref<16x8x32xf32, #tpu.memory_space<vmem>>, vector<1x8x32xf32>
    %1080 = vector.shape_cast %1079 : vector<1x8x32xf32> to vector<8x32xf32>
    %1081 = vector.shape_cast %1077 : vector<8x32xf32> to vector<1x8x32xf32>
    tpu.vector_store %arg6[%1078, %c0_243, %c0_244], %1081 {strides = array<i32>} : memref<16x8x32xf32, #tpu.memory_space<vmem>>, vector<1x8x32xf32>,
    %cst_245 = arith.constant 0.000000e+00 : f32
    %1082 = vector.broadcast %cst_245 : f32 to vector<8x32xf32>
    %1083 = arith.select %1008, %1075, %1082 : vector<8x32xi1>, vector<8x32xf32>
    %c15_i32_246 = arith.constant 15 : i32
    %1084 = arith.subi %c15_i32_246, %c11_i32 : i32
    %1085 = arith.index_cast %1084 : i32 to index
    %c0_247 = arith.constant 0 : index
    %c0_248 = arith.constant 0 : index
    %1086 = vector.load %arg7[%1085, %c0_247, %c0_248] : memref<16x8x32xf32, #tpu.memory_space<vmem>>, vector<1x8x32xf32>
    %1087 = vector.shape_cast %1086 : vector<1x8x32xf32> to vector<8x32xf32>
    %1088 = vector.shape_cast %1083 : vector<8x32xf32> to vector<1x8x32xf32>
    tpu.vector_store %arg7[%1085, %c0_247, %c0_248], %1088 {strides = array<i32>} : memref<16x8x32xf32, #tpu.memory_space<vmem>>, vector<1x8x32xf32>,
    %c12_i32 = arith.constant 12 : i32
    %1089 = arith.addi %6, %c12_i32 : i32
    %c15_i32_249 = arith.constant 15 : i32
    %1090 = arith.subi %c15_i32_249, %1089 : i32
    %1091 = vector.broadcast %1089 : i32 to vector<8x1xi32>
    %1092 = arith.cmpi sgt, %3, %1091 : vector<8x1xi32>
    %1093 = vector.shape_cast %1092 : vector<8x1xi1> to vector<8x1xi1>
    %1094 = vector.broadcast %1093 : vector<8x1xi1> to vector<8x32xi1>
    %1095 = vector.broadcast %1090 : i32 to vector<8x1xi32>
    %1096 = arith.cmpi sgt, %3, %1095 : vector<8x1xi32>
    %1097 = vector.shape_cast %1096 : vector<8x1xi1> to vector<8x1xi1>
    %1098 = vector.broadcast %1097 : vector<8x1xi1> to vector<8x32xi1>
    %1099 = arith.index_cast %c12_i32 : i32 to index
    %c0_250 = arith.constant 0 : index
    %c0_251 = arith.constant 0 : index
    %1100 = vector.load %arg1[%1099, %c0_250, %c0_251] : memref<16x8x96xf32, #tpu.memory_space<vmem>>, vector<1x8x96xf32>
    %1101 = vector.shape_cast %1100 : vector<1x8x96xf32> to vector<8x96xf32>
    %c15_i32_252 = arith.constant 15 : i32
    %1102 = arith.subi %c15_i32_252, %c12_i32 : i32
    %1103 = arith.index_cast %1102 : i32 to index
    %c0_253 = arith.constant 0 : index
    %c0_254 = arith.constant 0 : index
    %1104 = vector.load %arg2[%1103, %c0_253, %c0_254] : memref<16x8x96xf32, #tpu.memory_space<vmem>>, vector<1x8x96xf32>
    %1105 = vector.shape_cast %1104 : vector<1x8x96xf32> to vector<8x96xf32>
    %1106 = tpu.concatenate %1047, %1075 in 1 : vector<8x32xf32>, vector<8x32xf32> -> vector<8x64xf32>
    %cst_255 = arith.constant dense<0.000000e+00> : vector<8x192xf32>
    %1107 = tpu.matmul %1106, %4, %cst_255 {dimension_numbers = #tpu.dot_dimension_numbers<[1], [0], [0], [1], [0, 0, 1, 1], [], []>} : vector<8x64xf32>, vector<64x192xf32>, vector<8x192xf32> -> vector<8x192xf32>
    %1108 = vector.broadcast %5 : vector<1x192xf32> to vector<8x192xf32>
    %1109 = arith.addf %1107, %1108 : vector<8x192xf32>
    %1110 = vector.extract_strided_slice %1109 {offsets = [0, 0], sizes = [8, 96], strides = [1, 1]} : vector<8x192xf32> to vector<8x96xf32>
    %1111 = vector.extract_strided_slice %1101 {offsets = [0, 0], sizes = [8, 32], strides = [1, 1]} : vector<8x96xf32> to vector<8x32xf32>
    %1112 = vector.extract_strided_slice %1110 {offsets = [0, 0], sizes = [8, 32], strides = [1, 1]} : vector<8x96xf32> to vector<8x32xf32>
    %1113 = arith.addf %1111, %1112 : vector<8x32xf32>
    %1114 = arith.negf %1113 : vector<8x32xf32>
    %1115 = math.exp %1114 : vector<8x32xf32>
    %cst_256 = arith.constant 1.000000e+00 : f32
    %1116 = vector.broadcast %cst_256 : f32 to vector<8x32xf32>
    %1117 = arith.addf %1116, %1115 : vector<8x32xf32>
    %1118 = arith.divf %1116, %1117 : vector<8x32xf32>
    %1119 = vector.extract_strided_slice %1101 {offsets = [0, 32], sizes = [8, 32], strides = [1, 1]} : vector<8x96xf32> to vector<8x32xf32>
    %1120 = vector.extract_strided_slice %1110 {offsets = [0, 32], sizes = [8, 32], strides = [1, 1]} : vector<8x96xf32> to vector<8x32xf32>
    %1121 = arith.addf %1119, %1120 : vector<8x32xf32>
    %1122 = arith.negf %1121 : vector<8x32xf32>
    %1123 = math.exp %1122 : vector<8x32xf32>
    %cst_257 = arith.constant 1.000000e+00 : f32
    %1124 = vector.broadcast %cst_257 : f32 to vector<8x32xf32>
    %1125 = arith.addf %1124, %1123 : vector<8x32xf32>
    %1126 = arith.divf %1124, %1125 : vector<8x32xf32>
    %1127 = vector.extract_strided_slice %1101 {offsets = [0, 64], sizes = [8, 32], strides = [1, 1]} : vector<8x96xf32> to vector<8x32xf32>
    %1128 = vector.extract_strided_slice %1110 {offsets = [0, 64], sizes = [8, 32], strides = [1, 1]} : vector<8x96xf32> to vector<8x32xf32>
    %1129 = arith.mulf %1118, %1128 : vector<8x32xf32>
    %1130 = arith.addf %1127, %1129 : vector<8x32xf32>
    %1131 = math.tanh %1130 : vector<8x32xf32>
    %cst_258 = arith.constant 1.000000e+00 : f32
    %1132 = vector.broadcast %cst_258 : f32 to vector<8x32xf32>
    %1133 = arith.subf %1132, %1126 : vector<8x32xf32>
    %1134 = arith.mulf %1133, %1131 : vector<8x32xf32>
    %1135 = arith.mulf %1126, %1047 : vector<8x32xf32>
    %1136 = arith.addf %1134, %1135 : vector<8x32xf32>
    %1137 = arith.select %1094, %1136, %1047 : vector<8x32xi1>, vector<8x32xf32>
    %1138 = vector.extract_strided_slice %1109 {offsets = [0, 96], sizes = [8, 96], strides = [1, 1]} : vector<8x192xf32> to vector<8x96xf32>
    %1139 = vector.extract_strided_slice %1105 {offsets = [0, 0], sizes = [8, 32], strides = [1, 1]} : vector<8x96xf32> to vector<8x32xf32>
    %1140 = vector.extract_strided_slice %1138 {offsets = [0, 0], sizes = [8, 32], strides = [1, 1]} : vector<8x96xf32> to vector<8x32xf32>
    %1141 = arith.addf %1139, %1140 : vector<8x32xf32>
    %1142 = arith.negf %1141 : vector<8x32xf32>
    %1143 = math.exp %1142 : vector<8x32xf32>
    %cst_259 = arith.constant 1.000000e+00 : f32
    %1144 = vector.broadcast %cst_259 : f32 to vector<8x32xf32>
    %1145 = arith.addf %1144, %1143 : vector<8x32xf32>
    %1146 = arith.divf %1144, %1145 : vector<8x32xf32>
    %1147 = vector.extract_strided_slice %1105 {offsets = [0, 32], sizes = [8, 32], strides = [1, 1]} : vector<8x96xf32> to vector<8x32xf32>
    %1148 = vector.extract_strided_slice %1138 {offsets = [0, 32], sizes = [8, 32], strides = [1, 1]} : vector<8x96xf32> to vector<8x32xf32>
    %1149 = arith.addf %1147, %1148 : vector<8x32xf32>
    %1150 = arith.negf %1149 : vector<8x32xf32>
    %1151 = math.exp %1150 : vector<8x32xf32>
    %cst_260 = arith.constant 1.000000e+00 : f32
    %1152 = vector.broadcast %cst_260 : f32 to vector<8x32xf32>
    %1153 = arith.addf %1152, %1151 : vector<8x32xf32>
    %1154 = arith.divf %1152, %1153 : vector<8x32xf32>
    %1155 = vector.extract_strided_slice %1105 {offsets = [0, 64], sizes = [8, 32], strides = [1, 1]} : vector<8x96xf32> to vector<8x32xf32>
    %1156 = vector.extract_strided_slice %1138 {offsets = [0, 64], sizes = [8, 32], strides = [1, 1]} : vector<8x96xf32> to vector<8x32xf32>
    %1157 = arith.mulf %1146, %1156 : vector<8x32xf32>
    %1158 = arith.addf %1155, %1157 : vector<8x32xf32>
    %1159 = math.tanh %1158 : vector<8x32xf32>
    %cst_261 = arith.constant 1.000000e+00 : f32
    %1160 = vector.broadcast %cst_261 : f32 to vector<8x32xf32>
    %1161 = arith.subf %1160, %1154 : vector<8x32xf32>
    %1162 = arith.mulf %1161, %1159 : vector<8x32xf32>
    %1163 = arith.mulf %1154, %1075 : vector<8x32xf32>
    %1164 = arith.addf %1162, %1163 : vector<8x32xf32>
    %1165 = arith.select %1098, %1164, %1075 : vector<8x32xi1>, vector<8x32xf32>
    %cst_262 = arith.constant 0.000000e+00 : f32
    %1166 = vector.broadcast %cst_262 : f32 to vector<8x32xf32>
    %1167 = arith.select %1094, %1137, %1166 : vector<8x32xi1>, vector<8x32xf32>
    %1168 = arith.index_cast %c12_i32 : i32 to index
    %c0_263 = arith.constant 0 : index
    %c0_264 = arith.constant 0 : index
    %1169 = vector.load %arg6[%1168, %c0_263, %c0_264] : memref<16x8x32xf32, #tpu.memory_space<vmem>>, vector<1x8x32xf32>
    %1170 = vector.shape_cast %1169 : vector<1x8x32xf32> to vector<8x32xf32>
    %1171 = vector.shape_cast %1167 : vector<8x32xf32> to vector<1x8x32xf32>
    tpu.vector_store %arg6[%1168, %c0_263, %c0_264], %1171 {strides = array<i32>} : memref<16x8x32xf32, #tpu.memory_space<vmem>>, vector<1x8x32xf32>,
    %cst_265 = arith.constant 0.000000e+00 : f32
    %1172 = vector.broadcast %cst_265 : f32 to vector<8x32xf32>
    %1173 = arith.select %1098, %1165, %1172 : vector<8x32xi1>, vector<8x32xf32>
    %c15_i32_266 = arith.constant 15 : i32
    %1174 = arith.subi %c15_i32_266, %c12_i32 : i32
    %1175 = arith.index_cast %1174 : i32 to index
    %c0_267 = arith.constant 0 : index
    %c0_268 = arith.constant 0 : index
    %1176 = vector.load %arg7[%1175, %c0_267, %c0_268] : memref<16x8x32xf32, #tpu.memory_space<vmem>>, vector<1x8x32xf32>
    %1177 = vector.shape_cast %1176 : vector<1x8x32xf32> to vector<8x32xf32>
    %1178 = vector.shape_cast %1173 : vector<8x32xf32> to vector<1x8x32xf32>
    tpu.vector_store %arg7[%1175, %c0_267, %c0_268], %1178 {strides = array<i32>} : memref<16x8x32xf32, #tpu.memory_space<vmem>>, vector<1x8x32xf32>,
    %c13_i32 = arith.constant 13 : i32
    %1179 = arith.addi %6, %c13_i32 : i32
    %c15_i32_269 = arith.constant 15 : i32
    %1180 = arith.subi %c15_i32_269, %1179 : i32
    %1181 = vector.broadcast %1179 : i32 to vector<8x1xi32>
    %1182 = arith.cmpi sgt, %3, %1181 : vector<8x1xi32>
    %1183 = vector.shape_cast %1182 : vector<8x1xi1> to vector<8x1xi1>
    %1184 = vector.broadcast %1183 : vector<8x1xi1> to vector<8x32xi1>
    %1185 = vector.broadcast %1180 : i32 to vector<8x1xi32>
    %1186 = arith.cmpi sgt, %3, %1185 : vector<8x1xi32>
    %1187 = vector.shape_cast %1186 : vector<8x1xi1> to vector<8x1xi1>
    %1188 = vector.broadcast %1187 : vector<8x1xi1> to vector<8x32xi1>
    %1189 = arith.index_cast %c13_i32 : i32 to index
    %c0_270 = arith.constant 0 : index
    %c0_271 = arith.constant 0 : index
    %1190 = vector.load %arg1[%1189, %c0_270, %c0_271] : memref<16x8x96xf32, #tpu.memory_space<vmem>>, vector<1x8x96xf32>
    %1191 = vector.shape_cast %1190 : vector<1x8x96xf32> to vector<8x96xf32>
    %c15_i32_272 = arith.constant 15 : i32
    %1192 = arith.subi %c15_i32_272, %c13_i32 : i32
    %1193 = arith.index_cast %1192 : i32 to index
    %c0_273 = arith.constant 0 : index
    %c0_274 = arith.constant 0 : index
    %1194 = vector.load %arg2[%1193, %c0_273, %c0_274] : memref<16x8x96xf32, #tpu.memory_space<vmem>>, vector<1x8x96xf32>
    %1195 = vector.shape_cast %1194 : vector<1x8x96xf32> to vector<8x96xf32>
    %1196 = tpu.concatenate %1137, %1165 in 1 : vector<8x32xf32>, vector<8x32xf32> -> vector<8x64xf32>
    %cst_275 = arith.constant dense<0.000000e+00> : vector<8x192xf32>
    %1197 = tpu.matmul %1196, %4, %cst_275 {dimension_numbers = #tpu.dot_dimension_numbers<[1], [0], [0], [1], [0, 0, 1, 1], [], []>} : vector<8x64xf32>, vector<64x192xf32>, vector<8x192xf32> -> vector<8x192xf32>
    %1198 = vector.broadcast %5 : vector<1x192xf32> to vector<8x192xf32>
    %1199 = arith.addf %1197, %1198 : vector<8x192xf32>
    %1200 = vector.extract_strided_slice %1199 {offsets = [0, 0], sizes = [8, 96], strides = [1, 1]} : vector<8x192xf32> to vector<8x96xf32>
    %1201 = vector.extract_strided_slice %1191 {offsets = [0, 0], sizes = [8, 32], strides = [1, 1]} : vector<8x96xf32> to vector<8x32xf32>
    %1202 = vector.extract_strided_slice %1200 {offsets = [0, 0], sizes = [8, 32], strides = [1, 1]} : vector<8x96xf32> to vector<8x32xf32>
    %1203 = arith.addf %1201, %1202 : vector<8x32xf32>
    %1204 = arith.negf %1203 : vector<8x32xf32>
    %1205 = math.exp %1204 : vector<8x32xf32>
    %cst_276 = arith.constant 1.000000e+00 : f32
    %1206 = vector.broadcast %cst_276 : f32 to vector<8x32xf32>
    %1207 = arith.addf %1206, %1205 : vector<8x32xf32>
    %1208 = arith.divf %1206, %1207 : vector<8x32xf32>
    %1209 = vector.extract_strided_slice %1191 {offsets = [0, 32], sizes = [8, 32], strides = [1, 1]} : vector<8x96xf32> to vector<8x32xf32>
    %1210 = vector.extract_strided_slice %1200 {offsets = [0, 32], sizes = [8, 32], strides = [1, 1]} : vector<8x96xf32> to vector<8x32xf32>
    %1211 = arith.addf %1209, %1210 : vector<8x32xf32>
    %1212 = arith.negf %1211 : vector<8x32xf32>
    %1213 = math.exp %1212 : vector<8x32xf32>
    %cst_277 = arith.constant 1.000000e+00 : f32
    %1214 = vector.broadcast %cst_277 : f32 to vector<8x32xf32>
    %1215 = arith.addf %1214, %1213 : vector<8x32xf32>
    %1216 = arith.divf %1214, %1215 : vector<8x32xf32>
    %1217 = vector.extract_strided_slice %1191 {offsets = [0, 64], sizes = [8, 32], strides = [1, 1]} : vector<8x96xf32> to vector<8x32xf32>
    %1218 = vector.extract_strided_slice %1200 {offsets = [0, 64], sizes = [8, 32], strides = [1, 1]} : vector<8x96xf32> to vector<8x32xf32>
    %1219 = arith.mulf %1208, %1218 : vector<8x32xf32>
    %1220 = arith.addf %1217, %1219 : vector<8x32xf32>
    %1221 = math.tanh %1220 : vector<8x32xf32>
    %cst_278 = arith.constant 1.000000e+00 : f32
    %1222 = vector.broadcast %cst_278 : f32 to vector<8x32xf32>
    %1223 = arith.subf %1222, %1216 : vector<8x32xf32>
    %1224 = arith.mulf %1223, %1221 : vector<8x32xf32>
    %1225 = arith.mulf %1216, %1137 : vector<8x32xf32>
    %1226 = arith.addf %1224, %1225 : vector<8x32xf32>
    %1227 = arith.select %1184, %1226, %1137 : vector<8x32xi1>, vector<8x32xf32>
    %1228 = vector.extract_strided_slice %1199 {offsets = [0, 96], sizes = [8, 96], strides = [1, 1]} : vector<8x192xf32> to vector<8x96xf32>
    %1229 = vector.extract_strided_slice %1195 {offsets = [0, 0], sizes = [8, 32], strides = [1, 1]} : vector<8x96xf32> to vector<8x32xf32>
    %1230 = vector.extract_strided_slice %1228 {offsets = [0, 0], sizes = [8, 32], strides = [1, 1]} : vector<8x96xf32> to vector<8x32xf32>
    %1231 = arith.addf %1229, %1230 : vector<8x32xf32>
    %1232 = arith.negf %1231 : vector<8x32xf32>
    %1233 = math.exp %1232 : vector<8x32xf32>
    %cst_279 = arith.constant 1.000000e+00 : f32
    %1234 = vector.broadcast %cst_279 : f32 to vector<8x32xf32>
    %1235 = arith.addf %1234, %1233 : vector<8x32xf32>
    %1236 = arith.divf %1234, %1235 : vector<8x32xf32>
    %1237 = vector.extract_strided_slice %1195 {offsets = [0, 32], sizes = [8, 32], strides = [1, 1]} : vector<8x96xf32> to vector<8x32xf32>
    %1238 = vector.extract_strided_slice %1228 {offsets = [0, 32], sizes = [8, 32], strides = [1, 1]} : vector<8x96xf32> to vector<8x32xf32>
    %1239 = arith.addf %1237, %1238 : vector<8x32xf32>
    %1240 = arith.negf %1239 : vector<8x32xf32>
    %1241 = math.exp %1240 : vector<8x32xf32>
    %cst_280 = arith.constant 1.000000e+00 : f32
    %1242 = vector.broadcast %cst_280 : f32 to vector<8x32xf32>
    %1243 = arith.addf %1242, %1241 : vector<8x32xf32>
    %1244 = arith.divf %1242, %1243 : vector<8x32xf32>
    %1245 = vector.extract_strided_slice %1195 {offsets = [0, 64], sizes = [8, 32], strides = [1, 1]} : vector<8x96xf32> to vector<8x32xf32>
    %1246 = vector.extract_strided_slice %1228 {offsets = [0, 64], sizes = [8, 32], strides = [1, 1]} : vector<8x96xf32> to vector<8x32xf32>
    %1247 = arith.mulf %1236, %1246 : vector<8x32xf32>
    %1248 = arith.addf %1245, %1247 : vector<8x32xf32>
    %1249 = math.tanh %1248 : vector<8x32xf32>
    %cst_281 = arith.constant 1.000000e+00 : f32
    %1250 = vector.broadcast %cst_281 : f32 to vector<8x32xf32>
    %1251 = arith.subf %1250, %1244 : vector<8x32xf32>
    %1252 = arith.mulf %1251, %1249 : vector<8x32xf32>
    %1253 = arith.mulf %1244, %1165 : vector<8x32xf32>
    %1254 = arith.addf %1252, %1253 : vector<8x32xf32>
    %1255 = arith.select %1188, %1254, %1165 : vector<8x32xi1>, vector<8x32xf32>
    %cst_282 = arith.constant 0.000000e+00 : f32
    %1256 = vector.broadcast %cst_282 : f32 to vector<8x32xf32>
    %1257 = arith.select %1184, %1227, %1256 : vector<8x32xi1>, vector<8x32xf32>
    %1258 = arith.index_cast %c13_i32 : i32 to index
    %c0_283 = arith.constant 0 : index
    %c0_284 = arith.constant 0 : index
    %1259 = vector.load %arg6[%1258, %c0_283, %c0_284] : memref<16x8x32xf32, #tpu.memory_space<vmem>>, vector<1x8x32xf32>
    %1260 = vector.shape_cast %1259 : vector<1x8x32xf32> to vector<8x32xf32>
    %1261 = vector.shape_cast %1257 : vector<8x32xf32> to vector<1x8x32xf32>
    tpu.vector_store %arg6[%1258, %c0_283, %c0_284], %1261 {strides = array<i32>} : memref<16x8x32xf32, #tpu.memory_space<vmem>>, vector<1x8x32xf32>,
    %cst_285 = arith.constant 0.000000e+00 : f32
    %1262 = vector.broadcast %cst_285 : f32 to vector<8x32xf32>
    %1263 = arith.select %1188, %1255, %1262 : vector<8x32xi1>, vector<8x32xf32>
    %c15_i32_286 = arith.constant 15 : i32
    %1264 = arith.subi %c15_i32_286, %c13_i32 : i32
    %1265 = arith.index_cast %1264 : i32 to index
    %c0_287 = arith.constant 0 : index
    %c0_288 = arith.constant 0 : index
    %1266 = vector.load %arg7[%1265, %c0_287, %c0_288] : memref<16x8x32xf32, #tpu.memory_space<vmem>>, vector<1x8x32xf32>
    %1267 = vector.shape_cast %1266 : vector<1x8x32xf32> to vector<8x32xf32>
    %1268 = vector.shape_cast %1263 : vector<8x32xf32> to vector<1x8x32xf32>
    tpu.vector_store %arg7[%1265, %c0_287, %c0_288], %1268 {strides = array<i32>} : memref<16x8x32xf32, #tpu.memory_space<vmem>>, vector<1x8x32xf32>,
    %c14_i32 = arith.constant 14 : i32
    %1269 = arith.addi %6, %c14_i32 : i32
    %c15_i32_289 = arith.constant 15 : i32
    %1270 = arith.subi %c15_i32_289, %1269 : i32
    %1271 = vector.broadcast %1269 : i32 to vector<8x1xi32>
    %1272 = arith.cmpi sgt, %3, %1271 : vector<8x1xi32>
    %1273 = vector.shape_cast %1272 : vector<8x1xi1> to vector<8x1xi1>
    %1274 = vector.broadcast %1273 : vector<8x1xi1> to vector<8x32xi1>
    %1275 = vector.broadcast %1270 : i32 to vector<8x1xi32>
    %1276 = arith.cmpi sgt, %3, %1275 : vector<8x1xi32>
    %1277 = vector.shape_cast %1276 : vector<8x1xi1> to vector<8x1xi1>
    %1278 = vector.broadcast %1277 : vector<8x1xi1> to vector<8x32xi1>
    %1279 = arith.index_cast %c14_i32 : i32 to index
    %c0_290 = arith.constant 0 : index
    %c0_291 = arith.constant 0 : index
    %1280 = vector.load %arg1[%1279, %c0_290, %c0_291] : memref<16x8x96xf32, #tpu.memory_space<vmem>>, vector<1x8x96xf32>
    %1281 = vector.shape_cast %1280 : vector<1x8x96xf32> to vector<8x96xf32>
    %c15_i32_292 = arith.constant 15 : i32
    %1282 = arith.subi %c15_i32_292, %c14_i32 : i32
    %1283 = arith.index_cast %1282 : i32 to index
    %c0_293 = arith.constant 0 : index
    %c0_294 = arith.constant 0 : index
    %1284 = vector.load %arg2[%1283, %c0_293, %c0_294] : memref<16x8x96xf32, #tpu.memory_space<vmem>>, vector<1x8x96xf32>
    %1285 = vector.shape_cast %1284 : vector<1x8x96xf32> to vector<8x96xf32>
    %1286 = tpu.concatenate %1227, %1255 in 1 : vector<8x32xf32>, vector<8x32xf32> -> vector<8x64xf32>
    %cst_295 = arith.constant dense<0.000000e+00> : vector<8x192xf32>
    %1287 = tpu.matmul %1286, %4, %cst_295 {dimension_numbers = #tpu.dot_dimension_numbers<[1], [0], [0], [1], [0, 0, 1, 1], [], []>} : vector<8x64xf32>, vector<64x192xf32>, vector<8x192xf32> -> vector<8x192xf32>
    %1288 = vector.broadcast %5 : vector<1x192xf32> to vector<8x192xf32>
    %1289 = arith.addf %1287, %1288 : vector<8x192xf32>
    %1290 = vector.extract_strided_slice %1289 {offsets = [0, 0], sizes = [8, 96], strides = [1, 1]} : vector<8x192xf32> to vector<8x96xf32>
    %1291 = vector.extract_strided_slice %1281 {offsets = [0, 0], sizes = [8, 32], strides = [1, 1]} : vector<8x96xf32> to vector<8x32xf32>
    %1292 = vector.extract_strided_slice %1290 {offsets = [0, 0], sizes = [8, 32], strides = [1, 1]} : vector<8x96xf32> to vector<8x32xf32>
    %1293 = arith.addf %1291, %1292 : vector<8x32xf32>
    %1294 = arith.negf %1293 : vector<8x32xf32>
    %1295 = math.exp %1294 : vector<8x32xf32>
    %cst_296 = arith.constant 1.000000e+00 : f32
    %1296 = vector.broadcast %cst_296 : f32 to vector<8x32xf32>
    %1297 = arith.addf %1296, %1295 : vector<8x32xf32>
    %1298 = arith.divf %1296, %1297 : vector<8x32xf32>
    %1299 = vector.extract_strided_slice %1281 {offsets = [0, 32], sizes = [8, 32], strides = [1, 1]} : vector<8x96xf32> to vector<8x32xf32>
    %1300 = vector.extract_strided_slice %1290 {offsets = [0, 32], sizes = [8, 32], strides = [1, 1]} : vector<8x96xf32> to vector<8x32xf32>
    %1301 = arith.addf %1299, %1300 : vector<8x32xf32>
    %1302 = arith.negf %1301 : vector<8x32xf32>
    %1303 = math.exp %1302 : vector<8x32xf32>
    %cst_297 = arith.constant 1.000000e+00 : f32
    %1304 = vector.broadcast %cst_297 : f32 to vector<8x32xf32>
    %1305 = arith.addf %1304, %1303 : vector<8x32xf32>
    %1306 = arith.divf %1304, %1305 : vector<8x32xf32>
    %1307 = vector.extract_strided_slice %1281 {offsets = [0, 64], sizes = [8, 32], strides = [1, 1]} : vector<8x96xf32> to vector<8x32xf32>
    %1308 = vector.extract_strided_slice %1290 {offsets = [0, 64], sizes = [8, 32], strides = [1, 1]} : vector<8x96xf32> to vector<8x32xf32>
    %1309 = arith.mulf %1298, %1308 : vector<8x32xf32>
    %1310 = arith.addf %1307, %1309 : vector<8x32xf32>
    %1311 = math.tanh %1310 : vector<8x32xf32>
    %cst_298 = arith.constant 1.000000e+00 : f32
    %1312 = vector.broadcast %cst_298 : f32 to vector<8x32xf32>
    %1313 = arith.subf %1312, %1306 : vector<8x32xf32>
    %1314 = arith.mulf %1313, %1311 : vector<8x32xf32>
    %1315 = arith.mulf %1306, %1227 : vector<8x32xf32>
    %1316 = arith.addf %1314, %1315 : vector<8x32xf32>
    %1317 = arith.select %1274, %1316, %1227 : vector<8x32xi1>, vector<8x32xf32>
    %1318 = vector.extract_strided_slice %1289 {offsets = [0, 96], sizes = [8, 96], strides = [1, 1]} : vector<8x192xf32> to vector<8x96xf32>
    %1319 = vector.extract_strided_slice %1285 {offsets = [0, 0], sizes = [8, 32], strides = [1, 1]} : vector<8x96xf32> to vector<8x32xf32>
    %1320 = vector.extract_strided_slice %1318 {offsets = [0, 0], sizes = [8, 32], strides = [1, 1]} : vector<8x96xf32> to vector<8x32xf32>
    %1321 = arith.addf %1319, %1320 : vector<8x32xf32>
    %1322 = arith.negf %1321 : vector<8x32xf32>
    %1323 = math.exp %1322 : vector<8x32xf32>
    %cst_299 = arith.constant 1.000000e+00 : f32
    %1324 = vector.broadcast %cst_299 : f32 to vector<8x32xf32>
    %1325 = arith.addf %1324, %1323 : vector<8x32xf32>
    %1326 = arith.divf %1324, %1325 : vector<8x32xf32>
    %1327 = vector.extract_strided_slice %1285 {offsets = [0, 32], sizes = [8, 32], strides = [1, 1]} : vector<8x96xf32> to vector<8x32xf32>
    %1328 = vector.extract_strided_slice %1318 {offsets = [0, 32], sizes = [8, 32], strides = [1, 1]} : vector<8x96xf32> to vector<8x32xf32>
    %1329 = arith.addf %1327, %1328 : vector<8x32xf32>
    %1330 = arith.negf %1329 : vector<8x32xf32>
    %1331 = math.exp %1330 : vector<8x32xf32>
    %cst_300 = arith.constant 1.000000e+00 : f32
    %1332 = vector.broadcast %cst_300 : f32 to vector<8x32xf32>
    %1333 = arith.addf %1332, %1331 : vector<8x32xf32>
    %1334 = arith.divf %1332, %1333 : vector<8x32xf32>
    %1335 = vector.extract_strided_slice %1285 {offsets = [0, 64], sizes = [8, 32], strides = [1, 1]} : vector<8x96xf32> to vector<8x32xf32>
    %1336 = vector.extract_strided_slice %1318 {offsets = [0, 64], sizes = [8, 32], strides = [1, 1]} : vector<8x96xf32> to vector<8x32xf32>
    %1337 = arith.mulf %1326, %1336 : vector<8x32xf32>
    %1338 = arith.addf %1335, %1337 : vector<8x32xf32>
    %1339 = math.tanh %1338 : vector<8x32xf32>
    %cst_301 = arith.constant 1.000000e+00 : f32
    %1340 = vector.broadcast %cst_301 : f32 to vector<8x32xf32>
    %1341 = arith.subf %1340, %1334 : vector<8x32xf32>
    %1342 = arith.mulf %1341, %1339 : vector<8x32xf32>
    %1343 = arith.mulf %1334, %1255 : vector<8x32xf32>
    %1344 = arith.addf %1342, %1343 : vector<8x32xf32>
    %1345 = arith.select %1278, %1344, %1255 : vector<8x32xi1>, vector<8x32xf32>
    %cst_302 = arith.constant 0.000000e+00 : f32
    %1346 = vector.broadcast %cst_302 : f32 to vector<8x32xf32>
    %1347 = arith.select %1274, %1317, %1346 : vector<8x32xi1>, vector<8x32xf32>
    %1348 = arith.index_cast %c14_i32 : i32 to index
    %c0_303 = arith.constant 0 : index
    %c0_304 = arith.constant 0 : index
    %1349 = vector.load %arg6[%1348, %c0_303, %c0_304] : memref<16x8x32xf32, #tpu.memory_space<vmem>>, vector<1x8x32xf32>
    %1350 = vector.shape_cast %1349 : vector<1x8x32xf32> to vector<8x32xf32>
    %1351 = vector.shape_cast %1347 : vector<8x32xf32> to vector<1x8x32xf32>
    tpu.vector_store %arg6[%1348, %c0_303, %c0_304], %1351 {strides = array<i32>} : memref<16x8x32xf32, #tpu.memory_space<vmem>>, vector<1x8x32xf32>,
    %cst_305 = arith.constant 0.000000e+00 : f32
    %1352 = vector.broadcast %cst_305 : f32 to vector<8x32xf32>
    %1353 = arith.select %1278, %1345, %1352 : vector<8x32xi1>, vector<8x32xf32>
    %c15_i32_306 = arith.constant 15 : i32
    %1354 = arith.subi %c15_i32_306, %c14_i32 : i32
    %1355 = arith.index_cast %1354 : i32 to index
    %c0_307 = arith.constant 0 : index
    %c0_308 = arith.constant 0 : index
    %1356 = vector.load %arg7[%1355, %c0_307, %c0_308] : memref<16x8x32xf32, #tpu.memory_space<vmem>>, vector<1x8x32xf32>
    %1357 = vector.shape_cast %1356 : vector<1x8x32xf32> to vector<8x32xf32>
    %1358 = vector.shape_cast %1353 : vector<8x32xf32> to vector<1x8x32xf32>
    tpu.vector_store %arg7[%1355, %c0_307, %c0_308], %1358 {strides = array<i32>} : memref<16x8x32xf32, #tpu.memory_space<vmem>>, vector<1x8x32xf32>,
    %c15_i32_309 = arith.constant 15 : i32
    %1359 = arith.addi %6, %c15_i32_309 : i32
    %c15_i32_310 = arith.constant 15 : i32
    %1360 = arith.subi %c15_i32_310, %1359 : i32
    %1361 = vector.broadcast %1359 : i32 to vector<8x1xi32>
    %1362 = arith.cmpi sgt, %3, %1361 : vector<8x1xi32>
    %1363 = vector.shape_cast %1362 : vector<8x1xi1> to vector<8x1xi1>
    %1364 = vector.broadcast %1363 : vector<8x1xi1> to vector<8x32xi1>
    %1365 = vector.broadcast %1360 : i32 to vector<8x1xi32>
    %1366 = arith.cmpi sgt, %3, %1365 : vector<8x1xi32>
    %1367 = vector.shape_cast %1366 : vector<8x1xi1> to vector<8x1xi1>
    %1368 = vector.broadcast %1367 : vector<8x1xi1> to vector<8x32xi1>
    %1369 = arith.index_cast %c15_i32_309 : i32 to index
    %c0_311 = arith.constant 0 : index
    %c0_312 = arith.constant 0 : index
    %1370 = vector.load %arg1[%1369, %c0_311, %c0_312] : memref<16x8x96xf32, #tpu.memory_space<vmem>>, vector<1x8x96xf32>
    %1371 = vector.shape_cast %1370 : vector<1x8x96xf32> to vector<8x96xf32>
    %c15_i32_313 = arith.constant 15 : i32
    %1372 = arith.subi %c15_i32_313, %c15_i32_309 : i32
    %1373 = arith.index_cast %1372 : i32 to index
    %c0_314 = arith.constant 0 : index
    %c0_315 = arith.constant 0 : index
    %1374 = vector.load %arg2[%1373, %c0_314, %c0_315] : memref<16x8x96xf32, #tpu.memory_space<vmem>>, vector<1x8x96xf32>
    %1375 = vector.shape_cast %1374 : vector<1x8x96xf32> to vector<8x96xf32>
    %1376 = tpu.concatenate %1317, %1345 in 1 : vector<8x32xf32>, vector<8x32xf32> -> vector<8x64xf32>
    %cst_316 = arith.constant dense<0.000000e+00> : vector<8x192xf32>
    %1377 = tpu.matmul %1376, %4, %cst_316 {dimension_numbers = #tpu.dot_dimension_numbers<[1], [0], [0], [1], [0, 0, 1, 1], [], []>} : vector<8x64xf32>, vector<64x192xf32>, vector<8x192xf32> -> vector<8x192xf32>
    %1378 = vector.broadcast %5 : vector<1x192xf32> to vector<8x192xf32>
    %1379 = arith.addf %1377, %1378 : vector<8x192xf32>
    %1380 = vector.extract_strided_slice %1379 {offsets = [0, 0], sizes = [8, 96], strides = [1, 1]} : vector<8x192xf32> to vector<8x96xf32>
    %1381 = vector.extract_strided_slice %1371 {offsets = [0, 0], sizes = [8, 32], strides = [1, 1]} : vector<8x96xf32> to vector<8x32xf32>
    %1382 = vector.extract_strided_slice %1380 {offsets = [0, 0], sizes = [8, 32], strides = [1, 1]} : vector<8x96xf32> to vector<8x32xf32>
    %1383 = arith.addf %1381, %1382 : vector<8x32xf32>
    %1384 = arith.negf %1383 : vector<8x32xf32>
    %1385 = math.exp %1384 : vector<8x32xf32>
    %cst_317 = arith.constant 1.000000e+00 : f32
    %1386 = vector.broadcast %cst_317 : f32 to vector<8x32xf32>
    %1387 = arith.addf %1386, %1385 : vector<8x32xf32>
    %1388 = arith.divf %1386, %1387 : vector<8x32xf32>
    %1389 = vector.extract_strided_slice %1371 {offsets = [0, 32], sizes = [8, 32], strides = [1, 1]} : vector<8x96xf32> to vector<8x32xf32>
    %1390 = vector.extract_strided_slice %1380 {offsets = [0, 32], sizes = [8, 32], strides = [1, 1]} : vector<8x96xf32> to vector<8x32xf32>
    %1391 = arith.addf %1389, %1390 : vector<8x32xf32>
    %1392 = arith.negf %1391 : vector<8x32xf32>
    %1393 = math.exp %1392 : vector<8x32xf32>
    %cst_318 = arith.constant 1.000000e+00 : f32
    %1394 = vector.broadcast %cst_318 : f32 to vector<8x32xf32>
    %1395 = arith.addf %1394, %1393 : vector<8x32xf32>
    %1396 = arith.divf %1394, %1395 : vector<8x32xf32>
    %1397 = vector.extract_strided_slice %1371 {offsets = [0, 64], sizes = [8, 32], strides = [1, 1]} : vector<8x96xf32> to vector<8x32xf32>
    %1398 = vector.extract_strided_slice %1380 {offsets = [0, 64], sizes = [8, 32], strides = [1, 1]} : vector<8x96xf32> to vector<8x32xf32>
    %1399 = arith.mulf %1388, %1398 : vector<8x32xf32>
    %1400 = arith.addf %1397, %1399 : vector<8x32xf32>
    %1401 = math.tanh %1400 : vector<8x32xf32>
    %cst_319 = arith.constant 1.000000e+00 : f32
    %1402 = vector.broadcast %cst_319 : f32 to vector<8x32xf32>
    %1403 = arith.subf %1402, %1396 : vector<8x32xf32>
    %1404 = arith.mulf %1403, %1401 : vector<8x32xf32>
    %1405 = arith.mulf %1396, %1317 : vector<8x32xf32>
    %1406 = arith.addf %1404, %1405 : vector<8x32xf32>
    %1407 = arith.select %1364, %1406, %1317 : vector<8x32xi1>, vector<8x32xf32>
    %1408 = vector.extract_strided_slice %1379 {offsets = [0, 96], sizes = [8, 96], strides = [1, 1]} : vector<8x192xf32> to vector<8x96xf32>
    %1409 = vector.extract_strided_slice %1375 {offsets = [0, 0], sizes = [8, 32], strides = [1, 1]} : vector<8x96xf32> to vector<8x32xf32>
    %1410 = vector.extract_strided_slice %1408 {offsets = [0, 0], sizes = [8, 32], strides = [1, 1]} : vector<8x96xf32> to vector<8x32xf32>
    %1411 = arith.addf %1409, %1410 : vector<8x32xf32>
    %1412 = arith.negf %1411 : vector<8x32xf32>
    %1413 = math.exp %1412 : vector<8x32xf32>
    %cst_320 = arith.constant 1.000000e+00 : f32
    %1414 = vector.broadcast %cst_320 : f32 to vector<8x32xf32>
    %1415 = arith.addf %1414, %1413 : vector<8x32xf32>
    %1416 = arith.divf %1414, %1415 : vector<8x32xf32>
    %1417 = vector.extract_strided_slice %1375 {offsets = [0, 32], sizes = [8, 32], strides = [1, 1]} : vector<8x96xf32> to vector<8x32xf32>
    %1418 = vector.extract_strided_slice %1408 {offsets = [0, 32], sizes = [8, 32], strides = [1, 1]} : vector<8x96xf32> to vector<8x32xf32>
    %1419 = arith.addf %1417, %1418 : vector<8x32xf32>
    %1420 = arith.negf %1419 : vector<8x32xf32>
    %1421 = math.exp %1420 : vector<8x32xf32>
    %cst_321 = arith.constant 1.000000e+00 : f32
    %1422 = vector.broadcast %cst_321 : f32 to vector<8x32xf32>
    %1423 = arith.addf %1422, %1421 : vector<8x32xf32>
    %1424 = arith.divf %1422, %1423 : vector<8x32xf32>
    %1425 = vector.extract_strided_slice %1375 {offsets = [0, 64], sizes = [8, 32], strides = [1, 1]} : vector<8x96xf32> to vector<8x32xf32>
    %1426 = vector.extract_strided_slice %1408 {offsets = [0, 64], sizes = [8, 32], strides = [1, 1]} : vector<8x96xf32> to vector<8x32xf32>
    %1427 = arith.mulf %1416, %1426 : vector<8x32xf32>
    %1428 = arith.addf %1425, %1427 : vector<8x32xf32>
    %1429 = math.tanh %1428 : vector<8x32xf32>
    %cst_322 = arith.constant 1.000000e+00 : f32
    %1430 = vector.broadcast %cst_322 : f32 to vector<8x32xf32>
    %1431 = arith.subf %1430, %1424 : vector<8x32xf32>
    %1432 = arith.mulf %1431, %1429 : vector<8x32xf32>
    %1433 = arith.mulf %1424, %1345 : vector<8x32xf32>
    %1434 = arith.addf %1432, %1433 : vector<8x32xf32>
    %1435 = arith.select %1368, %1434, %1345 : vector<8x32xi1>, vector<8x32xf32>
    %cst_323 = arith.constant 0.000000e+00 : f32
    %1436 = vector.broadcast %cst_323 : f32 to vector<8x32xf32>
    %1437 = arith.select %1364, %1407, %1436 : vector<8x32xi1>, vector<8x32xf32>
    %1438 = arith.index_cast %c15_i32_309 : i32 to index
    %c0_324 = arith.constant 0 : index
    %c0_325 = arith.constant 0 : index
    %1439 = vector.load %arg6[%1438, %c0_324, %c0_325] : memref<16x8x32xf32, #tpu.memory_space<vmem>>, vector<1x8x32xf32>
    %1440 = vector.shape_cast %1439 : vector<1x8x32xf32> to vector<8x32xf32>
    %1441 = vector.shape_cast %1437 : vector<8x32xf32> to vector<1x8x32xf32>
    tpu.vector_store %arg6[%1438, %c0_324, %c0_325], %1441 {strides = array<i32>} : memref<16x8x32xf32, #tpu.memory_space<vmem>>, vector<1x8x32xf32>,
    %cst_326 = arith.constant 0.000000e+00 : f32
    %1442 = vector.broadcast %cst_326 : f32 to vector<8x32xf32>
    %1443 = arith.select %1368, %1435, %1442 : vector<8x32xi1>, vector<8x32xf32>
    %c15_i32_327 = arith.constant 15 : i32
    %1444 = arith.subi %c15_i32_327, %c15_i32_309 : i32
    %1445 = arith.index_cast %1444 : i32 to index
    %c0_328 = arith.constant 0 : index
    %c0_329 = arith.constant 0 : index
    %1446 = vector.load %arg7[%1445, %c0_328, %c0_329] : memref<16x8x32xf32, #tpu.memory_space<vmem>>, vector<1x8x32xf32>
    %1447 = vector.shape_cast %1446 : vector<1x8x32xf32> to vector<8x32xf32>
    %1448 = vector.shape_cast %1443 : vector<8x32xf32> to vector<1x8x32xf32>
    tpu.vector_store %arg7[%1445, %c0_328, %c0_329], %1448 {strides = array<i32>} : memref<16x8x32xf32, #tpu.memory_space<vmem>>, vector<1x8x32xf32>,
    %c16_i32_330 = arith.constant 16 : i32
    %c0_331 = arith.constant 0 : index
    %c0_332 = arith.constant 0 : index
    %1449 = vector.load %arg9[%c0_331, %c0_332] : memref<8x32xf32, #tpu.memory_space<vmem>>, vector<8x32xf32>
    tpu.vector_store %arg9[%c0_331, %c0_332], %1407 {strides = array<i32>} : memref<8x32xf32, #tpu.memory_space<vmem>>, vector<8x32xf32>,
    %c0_333 = arith.constant 0 : index
    %c0_334 = arith.constant 0 : index
    %1450 = vector.load %arg10[%c0_333, %c0_334] : memref<8x32xf32, #tpu.memory_space<vmem>>, vector<8x32xf32>
    tpu.vector_store %arg10[%c0_333, %c0_334], %1435 {strides = array<i32>} : memref<8x32xf32, #tpu.memory_space<vmem>>, vector<8x32xf32>,
    %c0_i32_335 = arith.constant 0 : i32
    %1451 = arith.cmpi eq, %arg0, %c0_i32_335 : i32
    %1452 = arith.extui %1451 : i1 to i32
    %c0_i32_336 = arith.constant 0 : i32
    %1453 = arith.cmpi ne, %1452, %c0_i32_336 : i32
    scf.if %1453 {
      %c0_337 = arith.constant 0 : index
      %c0_338 = arith.constant 0 : index
      %1454 = vector.load %arg8[%c0_337, %c0_338] : memref<8x64xf32, #tpu.memory_space<vmem>>, vector<8x32xf32>
      tpu.vector_store %arg8[%c0_337, %c0_338], %1407 {strides = array<i32>} : memref<8x64xf32, #tpu.memory_space<vmem>>, vector<8x32xf32>,
      %c0_339 = arith.constant 0 : index
      %c32 = arith.constant 32 : index
      %1455 = vector.load %arg8[%c0_339, %c32] : memref<8x64xf32, #tpu.memory_space<vmem>>, vector<8x32xf32>
      tpu.vector_store %arg8[%c0_339, %c32], %1435 {strides = array<i32>} : memref<8x64xf32, #tpu.memory_space<vmem>>, vector<8x32xf32>,
    } else {
    }
    return
  }
  func.func @transform_0(%arg0: i32) -> (i32, i32, i32) {
    %c0_i32 = arith.constant 0 : i32
    %c0_i32_0 = arith.constant 0 : i32
    %c0_i32_1 = arith.constant 0 : i32
    return %arg0, %c0_i32, %c0_i32_0 : i32, i32, i32
  }
  func.func @transform_1(%arg0: i32) -> (i32, i32, i32) {
    %c0_i32 = arith.constant 0 : i32
    %0 = arith.subi %c0_i32, %arg0 : i32
    %c0_i32_0 = arith.constant 0 : i32
    %c0_i32_1 = arith.constant 0 : i32
    %c0_i32_2 = arith.constant 0 : i32
    return %0, %c0_i32_0, %c0_i32_1 : i32, i32, i32
  }
  func.func @transform_2(%arg0: i32) -> (i32, i32) {
    %c0_i32 = arith.constant 0 : i32
    %c0_i32_0 = arith.constant 0 : i32
    %c0_i32_1 = arith.constant 0 : i32
    return %c0_i32, %c0_i32_0 : i32, i32
  }
  func.func @transform_3(%arg0: i32) -> (i32, i32) {
    %c0_i32 = arith.constant 0 : i32
    %c0_i32_0 = arith.constant 0 : i32
    %c0_i32_1 = arith.constant 0 : i32
    return %c0_i32, %c0_i32_0 : i32, i32
  }
  func.func @transform_4(%arg0: i32) -> (i32, i32) {
    %c0_i32 = arith.constant 0 : i32
    %c0_i32_0 = arith.constant 0 : i32
    %c0_i32_1 = arith.constant 0 : i32
    return %c0_i32, %c0_i32_0 : i32, i32
  }
  func.func @transform_5(%arg0: i32) -> (i32, i32, i32) {
    %c0_i32 = arith.constant 0 : i32
    %c0_i32_0 = arith.constant 0 : i32
    %c0_i32_1 = arith.constant 0 : i32
    return %arg0, %c0_i32, %c0_i32_0 : i32, i32, i32
  }
  func.func @transform_6(%arg0: i32) -> (i32, i32, i32) {
    %c0_i32 = arith.constant 0 : i32
    %0 = arith.subi %c0_i32, %arg0 : i32
    %c0_i32_0 = arith.constant 0 : i32
    %c0_i32_1 = arith.constant 0 : i32
    %c0_i32_2 = arith.constant 0 : i32
    return %0, %c0_i32_0, %c0_i32_1 : i32, i32, i32
  }
  func.func @transform_7(%arg0: i32) -> (i32, i32) {
    %c0_i32 = arith.constant 0 : i32
    %c0_i32_0 = arith.constant 0 : i32
    %c0_i32_1 = arith.constant 0 : i32
    return %c0_i32, %c0_i32_0 : i32, i32
  }
}

</mosaic_0001>

<llo_original>
// kernel: recurrent_encoder_forward.1
$region0: #{recurrent_encoder_forward.1}
  #allocation0 [shape = 'u32[]', space=smem, size = 0x4, offset = 0x4, fixed_abs, tag = 'smem constant byte address 0x4 - core index']
  #allocation1 [shape = 'u32[144,128]{1,0:T(1,128)}', space=vmem, size = 0x12000, scoped, tag = 'internal scratch']
  #allocation2 [shape = 'f32[8,32]{1,0:T(8,128)}', space=vmem, size = 0x1000, scoped, tag = 'scratch operand']
  #allocation3 [shape = 'f32[8,32]{1,0:T(8,128)}', space=vmem, size = 0x1000, scoped, tag = 'scratch operand']
  %s0 = inlined_call_operand.vmem [shape: f32[16,8,96], index: 0, kind: input, shape index: {}]
  %s1 = inlined_call_operand.vmem [shape: f32[16,8,96], index: 1, kind: input, shape index: {}]
  %s2 = inlined_call_operand.vmem [shape: s32[8,1], index: 2, kind: input, shape index: {}]
  %s3 = inlined_call_operand.vmem [shape: f32[64,192], index: 3, kind: input, shape index: {}]
  %s4 = inlined_call_operand.vmem [shape: f32[1,192], index: 4, kind: input, shape index: {}]
  %s5 = inlined_call_operand.vmem [shape: f32[16,8,32], index: 5, kind: output, shape index: {0}]
  %s6 = inlined_call_operand.vmem [shape: f32[16,8,32], index: 6, kind: output, shape index: {1}]
  %s7 = inlined_call_operand.vmem [shape: f32[8,64], index: 7, kind: output, shape index: {2}]
  %8 = xla_tuple %s5, %s6, %s7
  %s9 = sld [smem:[#allocation0]]
  $region54: #{recurrent_encoder_forward.1} parent=0
    _
  %s11 = ssub.s32 1, %s9
  %s12 = scalar_select 0, %s11, %s9
  // Predicated region
  $region2: #{recurrent_encoder_forward.1} parent=0 // pred_check
    _
  $region3: #{recurrent_encoder_forward.1} parent=0 // pred_check_branch
    %14 = sbr.rel (0) target = $region5
  $region4: #{recurrent_encoder_forward.1} parent=0 // pred_region
    _
  $region5: #{recurrent_encoder_forward.1} parent=0 // pred_fallthru
    _
  // Predicated region
  $region6: #{recurrent_encoder_forward.1} parent=0 // pred_check
    _
  $region7: #{recurrent_encoder_forward.1} parent=0 // pred_check_branch
    %16 = sbr.rel (0) target = $region9
  $region8: #{recurrent_encoder_forward.1} parent=0 // pred_region
    %s17 = ssub.s32 0, 0
    %s18 = smul.u32 16, %s17
    %p19 = scmp.lt.s32.totalorder %s18, 15
    %s20 = scalar_select %p19, %s18, 15
    %s21 = smul.addr %s20, 8
    %s22 = scalar_lea.vmem %s1, %s21
    %s23 = ssub.s32 0, 0
    %s24 = smul.u32 16, %s23
  $region9: #{recurrent_encoder_forward.1} parent=0 // pred_fallthru
    _
  // Predicated region
  $region10: #{recurrent_encoder_forward.1} parent=0 // pred_check
    _
  $region11: #{recurrent_encoder_forward.1} parent=0 // pred_check_branch
    %26 = sbr.rel (0) target = $region13
  $region12: #{recurrent_encoder_forward.1} parent=0 // pred_region
    _
  $region13: #{recurrent_encoder_forward.1} parent=0 // pred_fallthru
    _
  // Predicated region
  $region14: #{recurrent_encoder_forward.1} parent=0 // pred_check
    _
  $region15: #{recurrent_encoder_forward.1} parent=0 // pred_check_branch
    %28 = sbr.rel (0) target = $region17
  $region16: #{recurrent_encoder_forward.1} parent=0 // pred_region
    _
  $region17: #{recurrent_encoder_forward.1} parent=0 // pred_fallthru
    _
  // Predicated region
  $region18: #{recurrent_encoder_forward.1} parent=0 // pred_check
    _
  $region19: #{recurrent_encoder_forward.1} parent=0 // pred_check_branch
    %30 = sbr.rel (0) target = $region21
  $region20: #{recurrent_encoder_forward.1} parent=0 // pred_region
    _
  $region21: #{recurrent_encoder_forward.1} parent=0 // pred_fallthru
    _
  %s31 = ssub.s32 0, 0
  %s32 = smul.u32 16, %s31
  %p33 = scmp.lt.s32.totalorder %s32, 15
  %s34 = scalar_select %p33, %s32, 15
  %s35 = smul.addr %s34, 8
  %s36 = scalar_lea.vmem %s1, %s35
  %s37 = ssub.s32 0, 0
  %s38 = smul.u32 16, %s37
  %p39 = scmp.lt.s32.totalorder %s38, 15
  %s40 = scalar_select %p39, %s38, 15
  %s41 = smul.addr %s40, 8
  %s42 = scalar_lea.vmem %s6, %s41
  %s43 = ssub.s32 0, 0
  %s44 = smul.u32 16, %s43
  %p45 = scmp.lt.s32.totalorder %s44, 15
  %s46 = scalar_select %p45, %s44, 15
  %s47 = smul.addr %s46, 8
  %s48 = scalar_lea.vmem %s1, %s47
  %s49 = ssub.s32 0, 0
  %s50 = smul.u32 16, %s49
  %s51 = ssub.s32 0, 0
  %s52 = smul.u32 16, %s51
  %p53 = scmp.lt.s32.totalorder %s52, 15
  %s54 = scalar_select %p53, %s52, 15
  %s55 = smul.addr %s54, 8
  %s56 = scalar_lea.vmem %s6, %s55
  %s57 = ssub.s32 0, 0
  %s58 = smul.u32 16, %s57
  %p59 = scmp.eq.s32.totalorder 0, 0
  // Predicated region
  $region22: #{recurrent_encoder_forward.1} parent=0 // pred_check
    %p60 = pneg %p59
  $region23: #{recurrent_encoder_forward.1} parent=0 // pred_check_branch
    %62 = sbr.rel (%p60) target = $region25
  $region24: #{recurrent_encoder_forward.1} parent=0 // pred_region
    %vm63 = vcmask 261120
    %64 = vst.msk [vmem:[#allocation2] sm:$0xff] %vm63, 0.0
    %65 = vst.msk [vmem:[#allocation3] sm:$0xff] %vm63, 0.0
  $region25: #{recurrent_encoder_forward.1} parent=0 // pred_fallthru
    _
  %v66 = vld [vmem:[%s2] sm:$0xff]
  %v67 = vld [vmem:[%s3] sm:$0xff]
  %v68 = vld [vmem:[%s3 + $0x8] sm:$0xff]
  %v69 = vld [vmem:[%s3 + $0x10] sm:$0xff]
  %v70 = vld [vmem:[%s3 + $0x18] sm:$0xff]
  %v71 = vld [vmem:[%s3 + $0x20] sm:$0xff]
  %v72 = vld [vmem:[%s3 + $0x28] sm:$0xff]
  %v73 = vld [vmem:[%s3 + $0x30] sm:$0xff]
  %v74 = vld [vmem:[%s3 + $0x38] sm:$0xff]
  %v75 = vld [vmem:[%s3 + $0x40] sm:$0xff]
  %v76 = vld [vmem:[%s3 + $0x48] sm:$0xff]
  %v77 = vld [vmem:[%s3 + $0x50] sm:$0xff]
  %v78 = vld [vmem:[%s3 + $0x58] sm:$0xff]
  %v79 = vld [vmem:[%s3 + $0x60] sm:$0xff]
  %v80 = vld [vmem:[%s3 + $0x68] sm:$0xff]
  %v81 = vld [vmem:[%s3 + $0x70] sm:$0xff]
  %v82 = vld [vmem:[%s3 + $0x78] sm:$0xff]
  %v83 = vld [vmem:[%s4] sm:$0x3]
  %s84 = smul.u32 0, 16
  %v85 = vld [vmem:[#allocation2] sm:$0xff]
  %v86 = vld [vmem:[#allocation3] sm:$0xff]
  %s87 = ssub.s32 15, %s84
  %v88 = vstv %s84
  %vm89 = vcmp.gt.s32.totalorder %v66, %v88
  %v90 = vsel %vm89, 1, 0
  %91 = vset.pattern.permute.xlu0 0
  %92 = vperm.xlu0 %91, %v90
  %v93 = vpop.permute.xlu0 %92
  %vm94 = vcmp.eq.s32.totalorder %v93, 1
  %v95 = vstv %s87
  %vm96 = vcmp.gt.s32.totalorder %v66, %v95
  %v97 = vsel %vm96, 1, 0
  %98 = vset.pattern.permute.xlu0 0
  %99 = vperm.xlu0 %98, %v97
  %v100 = vpop.permute.xlu0 %99
  %vm101 = vcmp.eq.s32.totalorder %v100, 1
  %v102 = vld [vmem:[%s0] sm:$0xff]
  %s103 = scalar_lea.vmem %s48, 120
  %v104 = vld [vmem:[%s103] sm:$0xff]
  %106 = vrot.lane.b32.xlu0 %v86, 32
  %v107 = vpop.permute.xlu0 %106
  %vm109 = vcmask 261120
  %v110 = vsel %vm109, %v85, %v107
  %v112 = vlaneseq
  %v113 = vshrl.u32 %v112, 7
  %v114 = vsub.s32 0, %v113
  %v115 = vrot.slane %v83, %v114
  %v116 = vlaneseq
  %v117 = vshrl.u32 %v116, 7
  %v118 = vsub.s32 1, %v117
  %v119 = vrot.slane %v83, %v118
  %vm122 = vcmask 523264
  %v124 = vsel %vm122, %v110, 0
  %126 = vmatprep.subr.mxu0 %v68
  %127 = vmatpush1.msra.mxu0 %v67
  %128 = vmatprep.subr.mxu0 %v70
  %129 = vmatpush1.msra.mxu0 %v69
  %130 = vmatprep.subr.mxu0 %v72
  %131 = vmatpush1.msra.mxu0 %v71
  %132 = vmatprep.subr.mxu0 %v74
  %133 = vmatpush1.msra.mxu0 %v73
  %134 = vmatprep.subr.mxu0 %v76
  %135 = vmatpush1.msra.mxu0 %v75
  %136 = vmatprep.subr.mxu0 %v78
  %137 = vmatpush1.msra.mxu0 %v77
  %138 = vmatprep.subr.mxu0 %v80
  %139 = vmatpush1.msra.mxu0 %v79
  %140 = vmatprep.subr.mxu0 %v82
  %141 = vmatpush1.msra.mxu0 %v81
  %142 = vmatprep.subr.mxu0 0.0
  %143 = vmatpush1.msra.mxu0 0.0
  %144 = vmatprep.subr.mxu0 0.0
  %145 = vmatpush1.msra.mxu0 0.0
  %146 = vmatprep.subr.mxu0 0.0
  %147 = vmatpush1.msra.mxu0 0.0
  %148 = vmatprep.subr.mxu0 0.0
  %149 = vmatpush1.msra.mxu0 0.0
  %150 = vmatprep.subr.mxu0 0.0
  %151 = vmatpush1.msra.mxu0 0.0
  %152 = vmatprep.subr.mxu0 0.0
  %153 = vmatpush1.msra.mxu0 0.0
  %154 = vmatprep.subr.mxu0 0.0
  %155 = vmatpush1.msra.mxu0 0.0
  %156 = vmatprep.subr.mxu0 0.0
  %157 = vmatpush1.msra.mxu0 0.0
  %158 = vmatprep.subr.mxu0 0.0
  %159 = vmatpush1.msra.mxu0 0.0
  %160 = vmatprep.subr.mxu0 0.0
  %161 = vmatpush1.msra.mxu0 0.0
  %162 = vmatprep.subr.mxu0 0.0
  %163 = vmatpush1.msra.mxu0 0.0
  %164 = vmatprep.subr.mxu0 0.0
  %165 = vmatpush1.msra.mxu0 0.0
  %166 = vmatprep.subr.mxu0 0.0
  %167 = vmatpush1.msra.mxu0 0.0
  %168 = vmatprep.subr.mxu0 0.0
  %169 = vmatpush1.msra.mxu0 0.0
  %170 = vmatprep.subr.mxu0 0.0
  %171 = vmatpush1.msra.mxu0 0.0
  %172 = vmatprep.subr.mxu0 0.0
  %173 = vmatpush1.msra.mxu0 0.0
  %174 = vmatprep.subr.mxu0 0.0
  %175 = vmatpush1.msra.mxu0 0.0
  %176 = vmatprep.subr.mxu0 0.0
  %177 = vmatpush1.msra.mxu0 0.0
  %178 = vmatprep.subr.mxu0 0.0
  %179 = vmatpush1.msra.mxu0 0.0
  %180 = vmatprep.subr.mxu0 0.0
  %181 = vmatpush1.msra.mxu0 0.0
  %182 = vmatprep.subr.mxu0 0.0
  %183 = vmatpush1.msra.mxu0 0.0
  %184 = vmatprep.subr.mxu0 0.0
  %185 = vmatpush1.msra.mxu0 0.0
  %186 = vmatprep.subr.mxu0 0.0
  %187 = vmatpush1.msra.mxu0 0.0
  %188 = vmatprep.subr.mxu0 0.0
  %189 = vmatpush1.msra.mxu0 0.0
  %190 = vmatprep.mubr.f32.mxu0 0.0
  %191 = vmatmul.mubr.f32.gmra.mrb[0].mxu0 %v124
  %v192 = vpop.f32.mrb[0].mxu0
  %v193 = vadd.f32 %v115, %v192
  %v194 = vpop.f32.mrb[0].mxu0
  %v195 = vadd.f32 %v119, %v194
  %196 = vdwg.mxu0
  %v197 = vadd.f32 %v102, %v193
  %v198 = vxor.u32 %v197, 2147483648
  %v199 = vmul.f32 %v198, 1.442695
  %v200 = vpow.pop %v199
  %v201 = vadd.f32 %v200, 1.0
  %v202 = vrcp.pop %v201
  %v203 = vmul.f32 1.0, %v202
  %205 = vrot.lane.b32.xlu0 %v193, 64
  %v206 = vpop.permute.xlu0 %205
  %v208 = vmul.f32 %v203, %v206
  %210 = vrot.lane.b32.xlu0 %v208, 64
  %v211 = vpop.permute.xlu0 %210
  %v213 = vadd.f32 %v102, %v211
  %v214 = vtanh.pop %v213
  %v215 = vsub.f32 1.0, %v203
  %217 = vrot.lane.b32.xlu0 %v214, 96
  %v218 = vpop.permute.xlu0 %217
  %v220 = vmul.f32 %v215, %v218
  %222 = vrot.lane.b32.xlu0 %v85, 32
  %v223 = vpop.permute.xlu0 %222
  %v225 = vmul.f32 %v203, %v223
  %v226 = vadd.f32 %v220, %v225
  %v227 = vsel %vm94, %v226, %v223
  %228 = vrot.lane.b32.xlu0 %v193, 32
  %v229 = vpop.permute.xlu0 %228
  %v231 = vadd.f32 %v104, %v229
  %v232 = vxor.u32 %v231, 2147483648
  %v233 = vmul.f32 %v232, 1.442695
  %v234 = vpow.pop %v233
  %v235 = vadd.f32 %v234, 1.0
  %v236 = vrcp.pop %v235
  %v237 = vmul.f32 1.0, %v236
  %239 = vrot.lane.b32.xlu0 %v195, 32
  %v240 = vpop.permute.xlu0 %239
  %v242 = vadd.f32 %v104, %v240
  %v243 = vxor.u32 %v242, 2147483648
  %v244 = vmul.f32 %v243, 1.442695
  %v245 = vpow.pop %v244
  %v246 = vadd.f32 %v245, 1.0
  %v247 = vrcp.pop %v246
  %v248 = vmul.f32 1.0, %v247
  %249 = vrot.lane.b32.xlu0 %v195, 96
  %v250 = vpop.permute.xlu0 %249
  %v252 = vmul.f32 %v237, %v250
  %254 = vrot.lane.b32.xlu0 %v252, 64
  %v255 = vpop.permute.xlu0 %254
  %v257 = vadd.f32 %v104, %v255
  %v258 = vtanh.pop %v257
  %v259 = vsub.f32 1.0, %v248
  %261 = vrot.lane.b32.xlu0 %v258, 96
  %v262 = vpop.permute.xlu0 %261
  %v264 = vmul.f32 %v259, %v262
  %v265 = vmul.f32 %v248, %v107
  %v266 = vadd.f32 %v264, %v265
  %v267 = vsel %vm101, %v266, %v107
  %v268 = vsel %vm94, %v226, 0.0
  %270 = vrot.lane.b32.xlu0 %v268, 96
  %v271 = vpop.permute.xlu0 %270
  %273 = vst.msk [vmem:[%s5] sm:$0xff] %vm109, %v271
  %v274 = vsel %vm101, %v266, 0.0
  %276 = vrot.lane.b32.xlu0 %v274, 96
  %v277 = vpop.permute.xlu0 %276
  %s279 = scalar_lea.vmem %s56, 120
  %280 = vst.msk [vmem:[%s279] sm:$0xff] %vm109, %v277
  %s281 = sadd.s32 %s84, 1
  %s282 = ssub.s32 14, %s84
  %v283 = vstv %s281
  %vm284 = vcmp.gt.s32.totalorder %v66, %v283
  %v285 = vsel %vm284, 1, 0
  %286 = vset.pattern.permute.xlu0 0
  %287 = vperm.xlu0 %286, %v285
  %v288 = vpop.permute.xlu0 %287
  %vm289 = vcmp.eq.s32.totalorder %v288, 1
  %v290 = vstv %s282
  %vm291 = vcmp.gt.s32.totalorder %v66, %v290
  %v292 = vsel %vm291, 1, 0
  %293 = vset.pattern.permute.xlu0 0
  %294 = vperm.xlu0 %293, %v292
  %v295 = vpop.permute.xlu0 %294
  %vm296 = vcmp.eq.s32.totalorder %v295, 1
  %s297 = scalar_lea.vmem %s0, 8
  %v298 = vld [vmem:[%s297] sm:$0xff]
  %s299 = scalar_lea.vmem %s48, 112
  %v300 = vld [vmem:[%s299] sm:$0xff]
  %302 = vrot.lane.b32.xlu0 %v227, 96
  %v303 = vpop.permute.xlu0 %302
  %v305 = vsel %vm109, %v303, %v267
  %v307 = vsel %vm122, %v305, 0
  %309 = vmatprep.subr.mxu0 %v68
  %310 = vmatpush1.msra.mxu0 %v67
  %311 = vmatprep.subr.mxu0 %v70
  %312 = vmatpush1.msra.mxu0 %v69
  %313 = vmatprep.subr.mxu0 %v72
  %314 = vmatpush1.msra.mxu0 %v71
  %315 = vmatprep.subr.mxu0 %v74
  %316 = vmatpush1.msra.mxu0 %v73
  %317 = vmatprep.subr.mxu0 %v76
  %318 = vmatpush1.msra.mxu0 %v75
  %319 = vmatprep.subr.mxu0 %v78
  %320 = vmatpush1.msra.mxu0 %v77
  %321 = vmatprep.subr.mxu0 %v80
  %322 = vmatpush1.msra.mxu0 %v79
  %323 = vmatprep.subr.mxu0 %v82
  %324 = vmatpush1.msra.mxu0 %v81
  %325 = vmatprep.subr.mxu0 0.0
  %326 = vmatpush1.msra.mxu0 0.0
  %327 = vmatprep.subr.mxu0 0.0
  %328 = vmatpush1.msra.mxu0 0.0
  %329 = vmatprep.subr.mxu0 0.0
  %330 = vmatpush1.msra.mxu0 0.0
  %331 = vmatprep.subr.mxu0 0.0
  %332 = vmatpush1.msra.mxu0 0.0
  %333 = vmatprep.subr.mxu0 0.0
  %334 = vmatpush1.msra.mxu0 0.0
  %335 = vmatprep.subr.mxu0 0.0
  %336 = vmatpush1.msra.mxu0 0.0
  %337 = vmatprep.subr.mxu0 0.0
  %338 = vmatpush1.msra.mxu0 0.0
  %339 = vmatprep.subr.mxu0 0.0
  %340 = vmatpush1.msra.mxu0 0.0
  %341 = vmatprep.subr.mxu0 0.0
  %342 = vmatpush1.msra.mxu0 0.0
  %343 = vmatprep.subr.mxu0 0.0
  %344 = vmatpush1.msra.mxu0 0.0
  %345 = vmatprep.subr.mxu0 0.0
  %346 = vmatpush1.msra.mxu0 0.0
  %347 = vmatprep.subr.mxu0 0.0
  %348 = vmatpush1.msra.mxu0 0.0
  %349 = vmatprep.subr.mxu0 0.0
  %350 = vmatpush1.msra.mxu0 0.0
  %351 = vmatprep.subr.mxu0 0.0
  %352 = vmatpush1.msra.mxu0 0.0
  %353 = vmatprep.subr.mxu0 0.0
  %354 = vmatpush1.msra.mxu0 0.0
  %355 = vmatprep.subr.mxu0 0.0
  %356 = vmatpush1.msra.mxu0 0.0
  %357 = vmatprep.subr.mxu0 0.0
  %358 = vmatpush1.msra.mxu0 0.0
  %359 = vmatprep.subr.mxu0 0.0
  %360 = vmatpush1.msra.mxu0 0.0
  %361 = vmatprep.subr.mxu0 0.0
  %362 = vmatpush1.msra.mxu0 0.0
  %363 = vmatprep.subr.mxu0 0.0
  %364 = vmatpush1.msra.mxu0 0.0
  %365 = vmatprep.subr.mxu0 0.0
  %366 = vmatpush1.msra.mxu0 0.0
  %367 = vmatprep.subr.mxu0 0.0
  %368 = vmatpush1.msra.mxu0 0.0
  %369 = vmatprep.subr.mxu0 0.0
  %370 = vmatpush1.msra.mxu0 0.0
  %371 = vmatprep.subr.mxu0 0.0
  %372 = vmatpush1.msra.mxu0 0.0
  %373 = vmatprep.mubr.f32.mxu0 0.0
  %374 = vmatmul.mubr.f32.gmra.mrb[0].mxu0 %v307
  %v375 = vpop.f32.mrb[0].mxu0
  %v376 = vadd.f32 %v115, %v375
  %v377 = vpop.f32.mrb[0].mxu0
  %v378 = vadd.f32 %v119, %v377
  %379 = vdwg.mxu0
  %v380 = vadd.f32 %v298, %v376
  %v381 = vxor.u32 %v380, 2147483648
  %v382 = vmul.f32 %v381, 1.442695
  %v383 = vpow.pop %v382
  %v384 = vadd.f32 %v383, 1.0
  %v385 = vrcp.pop %v384
  %v386 = vmul.f32 1.0, %v385
  %388 = vrot.lane.b32.xlu0 %v376, 64
  %v389 = vpop.permute.xlu0 %388
  %v391 = vmul.f32 %v386, %v389
  %393 = vrot.lane.b32.xlu0 %v391, 64
  %v394 = vpop.permute.xlu0 %393
  %v396 = vadd.f32 %v298, %v394
  %v397 = vtanh.pop %v396
  %v398 = vsub.f32 1.0, %v386
  %400 = vrot.lane.b32.xlu0 %v397, 96
  %v401 = vpop.permute.xlu0 %400
  %v403 = vmul.f32 %v398, %v401
  %v404 = vmul.f32 %v386, %v227
  %v405 = vadd.f32 %v403, %v404
  %v406 = vsel %vm289, %v405, %v227
  %407 = vrot.lane.b32.xlu0 %v376, 32
  %v408 = vpop.permute.xlu0 %407
  %v410 = vadd.f32 %v300, %v408
  %v411 = vxor.u32 %v410, 2147483648
  %v412 = vmul.f32 %v411, 1.442695
  %v413 = vpow.pop %v412
  %v414 = vadd.f32 %v413, 1.0
  %v415 = vrcp.pop %v414
  %v416 = vmul.f32 1.0, %v415
  %418 = vrot.lane.b32.xlu0 %v378, 32
  %v419 = vpop.permute.xlu0 %418
  %v421 = vadd.f32 %v300, %v419
  %v422 = vxor.u32 %v421, 2147483648
  %v423 = vmul.f32 %v422, 1.442695
  %v424 = vpow.pop %v423
  %v425 = vadd.f32 %v424, 1.0
  %v426 = vrcp.pop %v425
  %v427 = vmul.f32 1.0, %v426
  %428 = vrot.lane.b32.xlu0 %v378, 96
  %v429 = vpop.permute.xlu0 %428
  %v431 = vmul.f32 %v416, %v429
  %433 = vrot.lane.b32.xlu0 %v431, 64
  %v434 = vpop.permute.xlu0 %433
  %v436 = vadd.f32 %v300, %v434
  %v437 = vtanh.pop %v436
  %v438 = vsub.f32 1.0, %v427
  %440 = vrot.lane.b32.xlu0 %v437, 96
  %v441 = vpop.permute.xlu0 %440
  %v443 = vmul.f32 %v438, %v441
  %v444 = vmul.f32 %v427, %v267
  %v445 = vadd.f32 %v443, %v444
  %v446 = vsel %vm296, %v445, %v267
  %v447 = vsel %vm289, %v405, 0.0
  %449 = vrot.lane.b32.xlu0 %v447, 96
  %v450 = vpop.permute.xlu0 %449
  %s452 = scalar_lea.vmem %s5, 8
  %453 = vst.msk [vmem:[%s452] sm:$0xff] %vm109, %v450
  %v454 = vsel %vm296, %v445, 0.0
  %456 = vrot.lane.b32.xlu0 %v454, 96
  %v457 = vpop.permute.xlu0 %456
  %s459 = scalar_lea.vmem %s56, 112
  %460 = vst.msk [vmem:[%s459] sm:$0xff] %vm109, %v457
  %s461 = sadd.s32 %s84, 2
  %s462 = ssub.s32 13, %s84
  %v463 = vstv %s461
  %vm464 = vcmp.gt.s32.totalorder %v66, %v463
  %v465 = vsel %vm464, 1, 0
  %466 = vset.pattern.permute.xlu0 0
  %467 = vperm.xlu0 %466, %v465
  %v468 = vpop.permute.xlu0 %467
  %vm469 = vcmp.eq.s32.totalorder %v468, 1
  %v470 = vstv %s462
  %vm471 = vcmp.gt.s32.totalorder %v66, %v470
  %v472 = vsel %vm471, 1, 0
  %473 = vset.pattern.permute.xlu0 0
  %474 = vperm.xlu0 %473, %v472
  %v475 = vpop.permute.xlu0 %474
  %vm476 = vcmp.eq.s32.totalorder %v475, 1
  %s477 = scalar_lea.vmem %s0, 16
  %v478 = vld [vmem:[%s477] sm:$0xff]
  %s479 = scalar_lea.vmem %s48, 104
  %v480 = vld [vmem:[%s479] sm:$0xff]
  %482 = vrot.lane.b32.xlu0 %v406, 96
  %v483 = vpop.permute.xlu0 %482
  %v485 = vsel %vm109, %v483, %v446
  %v487 = vsel %vm122, %v485, 0
  %489 = vmatprep.subr.mxu0 %v68
  %490 = vmatpush1.msra.mxu0 %v67
  %491 = vmatprep.subr.mxu0 %v70
  %492 = vmatpush1.msra.mxu0 %v69
  %493 = vmatprep.subr.mxu0 %v72
  %494 = vmatpush1.msra.mxu0 %v71
  %495 = vmatprep.subr.mxu0 %v74
  %496 = vmatpush1.msra.mxu0 %v73
  %497 = vmatprep.subr.mxu0 %v76
  %498 = vmatpush1.msra.mxu0 %v75
  %499 = vmatprep.subr.mxu0 %v78
  %500 = vmatpush1.msra.mxu0 %v77
  %501 = vmatprep.subr.mxu0 %v80
  %502 = vmatpush1.msra.mxu0 %v79
  %503 = vmatprep.subr.mxu0 %v82
  %504 = vmatpush1.msra.mxu0 %v81
  %505 = vmatprep.subr.mxu0 0.0
  %506 = vmatpush1.msra.mxu0 0.0
  %507 = vmatprep.subr.mxu0 0.0
  %508 = vmatpush1.msra.mxu0 0.0
  %509 = vmatprep.subr.mxu0 0.0
  %510 = vmatpush1.msra.mxu0 0.0
  %511 = vmatprep.subr.mxu0 0.0
  %512 = vmatpush1.msra.mxu0 0.0
  %513 = vmatprep.subr.mxu0 0.0
  %514 = vmatpush1.msra.mxu0 0.0
  %515 = vmatprep.subr.mxu0 0.0
  %516 = vmatpush1.msra.mxu0 0.0
  %517 = vmatprep.subr.mxu0 0.0
  %518 = vmatpush1.msra.mxu0 0.0
  %519 = vmatprep.subr.mxu0 0.0
  %520 = vmatpush1.msra.mxu0 0.0
  %521 = vmatprep.subr.mxu0 0.0
  %522 = vmatpush1.msra.mxu0 0.0
  %523 = vmatprep.subr.mxu0 0.0
  %524 = vmatpush1.msra.mxu0 0.0
  %525 = vmatprep.subr.mxu0 0.0
  %526 = vmatpush1.msra.mxu0 0.0
  %527 = vmatprep.subr.mxu0 0.0
  %528 = vmatpush1.msra.mxu0 0.0
  %529 = vmatprep.subr.mxu0 0.0
  %530 = vmatpush1.msra.mxu0 0.0
  %531 = vmatprep.subr.mxu0 0.0
  %532 = vmatpush1.msra.mxu0 0.0
  %533 = vmatprep.subr.mxu0 0.0
  %534 = vmatpush1.msra.mxu0 0.0
  %535 = vmatprep.subr.mxu0 0.0
  %536 = vmatpush1.msra.mxu0 0.0
  %537 = vmatprep.subr.mxu0 0.0
  %538 = vmatpush1.msra.mxu0 0.0
  %539 = vmatprep.subr.mxu0 0.0
  %540 = vmatpush1.msra.mxu0 0.0
  %541 = vmatprep.subr.mxu0 0.0
  %542 = vmatpush1.msra.mxu0 0.0
  %543 = vmatprep.subr.mxu0 0.0
  %544 = vmatpush1.msra.mxu0 0.0
  %545 = vmatprep.subr.mxu0 0.0
  %546 = vmatpush1.msra.mxu0 0.0
  %547 = vmatprep.subr.mxu0 0.0
  %548 = vmatpush1.msra.mxu0 0.0
  %549 = vmatprep.subr.mxu0 0.0
  %550 = vmatpush1.msra.mxu0 0.0
  %551 = vmatprep.subr.mxu0 0.0
  %552 = vmatpush1.msra.mxu0 0.0
  %553 = vmatprep.mubr.f32.mxu0 0.0
  %554 = vmatmul.mubr.f32.gmra.mrb[0].mxu0 %v487
  %v555 = vpop.f32.mrb[0].mxu0
  %v556 = vadd.f32 %v115, %v555
  %v557 = vpop.f32.mrb[0].mxu0
  %v558 = vadd.f32 %v119, %v557
  %559 = vdwg.mxu0
  %v560 = vadd.f32 %v478, %v556
  %v561 = vxor.u32 %v560, 2147483648
  %v562 = vmul.f32 %v561, 1.442695
  %v563 = vpow.pop %v562
  %v564 = vadd.f32 %v563, 1.0
  %v565 = vrcp.pop %v564
  %v566 = vmul.f32 1.0, %v565
  %568 = vrot.lane.b32.xlu0 %v556, 64
  %v569 = vpop.permute.xlu0 %568
  %v571 = vmul.f32 %v566, %v569
  %573 = vrot.lane.b32.xlu0 %v571, 64
  %v574 = vpop.permute.xlu0 %573
  %v576 = vadd.f32 %v478, %v574
  %v577 = vtanh.pop %v576
  %v578 = vsub.f32 1.0, %v566
  %580 = vrot.lane.b32.xlu0 %v577, 96
  %v581 = vpop.permute.xlu0 %580
  %v583 = vmul.f32 %v578, %v581
  %v584 = vmul.f32 %v566, %v406
  %v585 = vadd.f32 %v583, %v584
  %v586 = vsel %vm469, %v585, %v406
  %587 = vrot.lane.b32.xlu0 %v556, 32
  %v588 = vpop.permute.xlu0 %587
  %v590 = vadd.f32 %v480, %v588
  %v591 = vxor.u32 %v590, 2147483648
  %v592 = vmul.f32 %v591, 1.442695
  %v593 = vpow.pop %v592
  %v594 = vadd.f32 %v593, 1.0
  %v595 = vrcp.pop %v594
  %v596 = vmul.f32 1.0, %v595
  %598 = vrot.lane.b32.xlu0 %v558, 32
  %v599 = vpop.permute.xlu0 %598
  %v601 = vadd.f32 %v480, %v599
  %v602 = vxor.u32 %v601, 2147483648
  %v603 = vmul.f32 %v602, 1.442695
  %v604 = vpow.pop %v603
  %v605 = vadd.f32 %v604, 1.0
  %v606 = vrcp.pop %v605
  %v607 = vmul.f32 1.0, %v606
  %608 = vrot.lane.b32.xlu0 %v558, 96
  %v609 = vpop.permute.xlu0 %608
  %v611 = vmul.f32 %v596, %v609
  %613 = vrot.lane.b32.xlu0 %v611, 64
  %v614 = vpop.permute.xlu0 %613
  %v616 = vadd.f32 %v480, %v614
  %v617 = vtanh.pop %v616
  %v618 = vsub.f32 1.0, %v607
  %620 = vrot.lane.b32.xlu0 %v617, 96
  %v621 = vpop.permute.xlu0 %620
  %v623 = vmul.f32 %v618, %v621
  %v624 = vmul.f32 %v607, %v446
  %v625 = vadd.f32 %v623, %v624
  %v626 = vsel %vm476, %v625, %v446
  %v627 = vsel %vm469, %v585, 0.0
  %629 = vrot.lane.b32.xlu0 %v627, 96
  %v630 = vpop.permute.xlu0 %629
  %s632 = scalar_lea.vmem %s5, 16
  %633 = vst.msk [vmem:[%s632] sm:$0xff] %vm109, %v630
  %v634 = vsel %vm476, %v625, 0.0
  %636 = vrot.lane.b32.xlu0 %v634, 96
  %v637 = vpop.permute.xlu0 %636
  %s639 = scalar_lea.vmem %s56, 104
  %640 = vst.msk [vmem:[%s639] sm:$0xff] %vm109, %v637
  %s641 = sadd.s32 %s84, 3
  %s642 = ssub.s32 12, %s84
  %v643 = vstv %s641
  %vm644 = vcmp.gt.s32.totalorder %v66, %v643
  %v645 = vsel %vm644, 1, 0
  %646 = vset.pattern.permute.xlu0 0
  %647 = vperm.xlu0 %646, %v645
  %v648 = vpop.permute.xlu0 %647
  %vm649 = vcmp.eq.s32.totalorder %v648, 1
  %v650 = vstv %s642
  %vm651 = vcmp.gt.s32.totalorder %v66, %v650
  %v652 = vsel %vm651, 1, 0
  %653 = vset.pattern.permute.xlu0 0
  %654 = vperm.xlu0 %653, %v652
  %v655 = vpop.permute.xlu0 %654
  %vm656 = vcmp.eq.s32.totalorder %v655, 1
  %s657 = scalar_lea.vmem %s0, 24
  %v658 = vld [vmem:[%s657] sm:$0xff]
  %s659 = scalar_lea.vmem %s48, 96
  %v660 = vld [vmem:[%s659] sm:$0xff]
  %662 = vrot.lane.b32.xlu0 %v586, 96
  %v663 = vpop.permute.xlu0 %662
  %v665 = vsel %vm109, %v663, %v626
  %v667 = vsel %vm122, %v665, 0
  %669 = vmatprep.subr.mxu0 %v68
  %670 = vmatpush1.msra.mxu0 %v67
  %671 = vmatprep.subr.mxu0 %v70
  %672 = vmatpush1.msra.mxu0 %v69
  %673 = vmatprep.subr.mxu0 %v72
  %674 = vmatpush1.msra.mxu0 %v71
  %675 = vmatprep.subr.mxu0 %v74
  %676 = vmatpush1.msra.mxu0 %v73
  %677 = vmatprep.subr.mxu0 %v76
  %678 = vmatpush1.msra.mxu0 %v75
  %679 = vmatprep.subr.mxu0 %v78
  %680 = vmatpush1.msra.mxu0 %v77
  %681 = vmatprep.subr.mxu0 %v80
  %682 = vmatpush1.msra.mxu0 %v79
  %683 = vmatprep.subr.mxu0 %v82
  %684 = vmatpush1.msra.mxu0 %v81
  %685 = vmatprep.subr.mxu0 0.0
  %686 = vmatpush1.msra.mxu0 0.0
  %687 = vmatprep.subr.mxu0 0.0
  %688 = vmatpush1.msra.mxu0 0.0
  %689 = vmatprep.subr.mxu0 0.0
  %690 = vmatpush1.msra.mxu0 0.0
  %691 = vmatprep.subr.mxu0 0.0
  %692 = vmatpush1.msra.mxu0 0.0
  %693 = vmatprep.subr.mxu0 0.0
  %694 = vmatpush1.msra.mxu0 0.0
  %695 = vmatprep.subr.mxu0 0.0
  %696 = vmatpush1.msra.mxu0 0.0
  %697 = vmatprep.subr.mxu0 0.0
  %698 = vmatpush1.msra.mxu0 0.0
  %699 = vmatprep.subr.mxu0 0.0
  %700 = vmatpush1.msra.mxu0 0.0
  %701 = vmatprep.subr.mxu0 0.0
  %702 = vmatpush1.msra.mxu0 0.0
  %703 = vmatprep.subr.mxu0 0.0
  %704 = vmatpush1.msra.mxu0 0.0
  %705 = vmatprep.subr.mxu0 0.0
  %706 = vmatpush1.msra.mxu0 0.0
  %707 = vmatprep.subr.mxu0 0.0
  %708 = vmatpush1.msra.mxu0 0.0
  %709 = vmatprep.subr.mxu0 0.0
  %710 = vmatpush1.msra.mxu0 0.0
  %711 = vmatprep.subr.mxu0 0.0
  %712 = vmatpush1.msra.mxu0 0.0
  %713 = vmatprep.subr.mxu0 0.0
  %714 = vmatpush1.msra.mxu0 0.0
  %715 = vmatprep.subr.mxu0 0.0
  %716 = vmatpush1.msra.mxu0 0.0
  %717 = vmatprep.subr.mxu0 0.0
  %718 = vmatpush1.msra.mxu0 0.0
  %719 = vmatprep.subr.mxu0 0.0
  %720 = vmatpush1.msra.mxu0 0.0
  %721 = vmatprep.subr.mxu0 0.0
  %722 = vmatpush1.msra.mxu0 0.0
  %723 = vmatprep.subr.mxu0 0.0
  %724 = vmatpush1.msra.mxu0 0.0
  %725 = vmatprep.subr.mxu0 0.0
  %726 = vmatpush1.msra.mxu0 0.0
  %727 = vmatprep.subr.mxu0 0.0
  %728 = vmatpush1.msra.mxu0 0.0
  %729 = vmatprep.subr.mxu0 0.0
  %730 = vmatpush1.msra.mxu0 0.0
  %731 = vmatprep.subr.mxu0 0.0
  %732 = vmatpush1.msra.mxu0 0.0
  %733 = vmatprep.mubr.f32.mxu0 0.0
  %734 = vmatmul.mubr.f32.gmra.mrb[0].mxu0 %v667
  %v735 = vpop.f32.mrb[0].mxu0
  %v736 = vadd.f32 %v115, %v735
  %v737 = vpop.f32.mrb[0].mxu0
  %v738 = vadd.f32 %v119, %v737
  %739 = vdwg.mxu0
  %v740 = vadd.f32 %v658, %v736
  %v741 = vxor.u32 %v740, 2147483648
  %v742 = vmul.f32 %v741, 1.442695
  %v743 = vpow.pop %v742
  %v744 = vadd.f32 %v743, 1.0
  %v745 = vrcp.pop %v744
  %v746 = vmul.f32 1.0, %v745
  %748 = vrot.lane.b32.xlu0 %v736, 64
  %v749 = vpop.permute.xlu0 %748
  %v751 = vmul.f32 %v746, %v749
  %753 = vrot.lane.b32.xlu0 %v751, 64
  %v754 = vpop.permute.xlu0 %753
  %v756 = vadd.f32 %v658, %v754
  %v757 = vtanh.pop %v756
  %v758 = vsub.f32 1.0, %v746
  %760 = vrot.lane.b32.xlu0 %v757, 96
  %v761 = vpop.permute.xlu0 %760
  %v763 = vmul.f32 %v758, %v761
  %v764 = vmul.f32 %v746, %v586
  %v765 = vadd.f32 %v763, %v764
  %v766 = vsel %vm649, %v765, %v586
  %767 = vrot.lane.b32.xlu0 %v736, 32
  %v768 = vpop.permute.xlu0 %767
  %v770 = vadd.f32 %v660, %v768
  %v771 = vxor.u32 %v770, 2147483648
  %v772 = vmul.f32 %v771, 1.442695
  %v773 = vpow.pop %v772
  %v774 = vadd.f32 %v773, 1.0
  %v775 = vrcp.pop %v774
  %v776 = vmul.f32 1.0, %v775
  %778 = vrot.lane.b32.xlu0 %v738, 32
  %v779 = vpop.permute.xlu0 %778
  %v781 = vadd.f32 %v660, %v779
  %v782 = vxor.u32 %v781, 2147483648
  %v783 = vmul.f32 %v782, 1.442695
  %v784 = vpow.pop %v783
  %v785 = vadd.f32 %v784, 1.0
  %v786 = vrcp.pop %v785
  %v787 = vmul.f32 1.0, %v786
  %788 = vrot.lane.b32.xlu0 %v738, 96
  %v789 = vpop.permute.xlu0 %788
  %v791 = vmul.f32 %v776, %v789
  %793 = vrot.lane.b32.xlu0 %v791, 64
  %v794 = vpop.permute.xlu0 %793
  %v796 = vadd.f32 %v660, %v794
  %v797 = vtanh.pop %v796
  %v798 = vsub.f32 1.0, %v787
  %800 = vrot.lane.b32.xlu0 %v797, 96
  %v801 = vpop.permute.xlu0 %800
  %v803 = vmul.f32 %v798, %v801
  %v804 = vmul.f32 %v787, %v626
  %v805 = vadd.f32 %v803, %v804
  %v806 = vsel %vm656, %v805, %v626
  %v807 = vsel %vm649, %v765, 0.0
  %809 = vrot.lane.b32.xlu0 %v807, 96
  %v810 = vpop.permute.xlu0 %809
  %s812 = scalar_lea.vmem %s5, 24
  %813 = vst.msk [vmem:[%s812] sm:$0xff] %vm109, %v810
  %v814 = vsel %vm656, %v805, 0.0
  %816 = vrot.lane.b32.xlu0 %v814, 96
  %v817 = vpop.permute.xlu0 %816
  %s819 = scalar_lea.vmem %s56, 96
  %820 = vst.msk [vmem:[%s819] sm:$0xff] %vm109, %v817
  %s821 = sadd.s32 %s84, 4
  %s822 = ssub.s32 11, %s84
  %v823 = vstv %s821
  %vm824 = vcmp.gt.s32.totalorder %v66, %v823
  %v825 = vsel %vm824, 1, 0
  %826 = vset.pattern.permute.xlu0 0
  %827 = vperm.xlu0 %826, %v825
  %v828 = vpop.permute.xlu0 %827
  %vm829 = vcmp.eq.s32.totalorder %v828, 1
  %v830 = vstv %s822
  %vm831 = vcmp.gt.s32.totalorder %v66, %v830
  %v832 = vsel %vm831, 1, 0
  %833 = vset.pattern.permute.xlu0 0
  %834 = vperm.xlu0 %833, %v832
  %v835 = vpop.permute.xlu0 %834
  %vm836 = vcmp.eq.s32.totalorder %v835, 1
  %s837 = scalar_lea.vmem %s0, 32
  %v838 = vld [vmem:[%s837] sm:$0xff]
  %s839 = scalar_lea.vmem %s48, 88
  %v840 = vld [vmem:[%s839] sm:$0xff]
  %842 = vrot.lane.b32.xlu0 %v766, 96
  %v843 = vpop.permute.xlu0 %842
  %v845 = vsel %vm109, %v843, %v806
  %v847 = vsel %vm122, %v845, 0
  %849 = vmatprep.subr.mxu0 %v68
  %850 = vmatpush1.msra.mxu0 %v67
  %851 = vmatprep.subr.mxu0 %v70
  %852 = vmatpush1.msra.mxu0 %v69
  %853 = vmatprep.subr.mxu0 %v72
  %854 = vmatpush1.msra.mxu0 %v71
  %855 = vmatprep.subr.mxu0 %v74
  %856 = vmatpush1.msra.mxu0 %v73
  %857 = vmatprep.subr.mxu0 %v76
  %858 = vmatpush1.msra.mxu0 %v75
  %859 = vmatprep.subr.mxu0 %v78
  %860 = vmatpush1.msra.mxu0 %v77
  %861 = vmatprep.subr.mxu0 %v80
  %862 = vmatpush1.msra.mxu0 %v79
  %863 = vmatprep.subr.mxu0 %v82
  %864 = vmatpush1.msra.mxu0 %v81
  %865 = vmatprep.subr.mxu0 0.0
  %866 = vmatpush1.msra.mxu0 0.0
  %867 = vmatprep.subr.mxu0 0.0
  %868 = vmatpush1.msra.mxu0 0.0
  %869 = vmatprep.subr.mxu0 0.0
  %870 = vmatpush1.msra.mxu0 0.0
  %871 = vmatprep.subr.mxu0 0.0
  %872 = vmatpush1.msra.mxu0 0.0
  %873 = vmatprep.subr.mxu0 0.0
  %874 = vmatpush1.msra.mxu0 0.0
  %875 = vmatprep.subr.mxu0 0.0
  %876 = vmatpush1.msra.mxu0 0.0
  %877 = vmatprep.subr.mxu0 0.0
  %878 = vmatpush1.msra.mxu0 0.0
  %879 = vmatprep.subr.mxu0 0.0
  %880 = vmatpush1.msra.mxu0 0.0
  %881 = vmatprep.subr.mxu0 0.0
  %882 = vmatpush1.msra.mxu0 0.0
  %883 = vmatprep.subr.mxu0 0.0
  %884 = vmatpush1.msra.mxu0 0.0
  %885 = vmatprep.subr.mxu0 0.0
  %886 = vmatpush1.msra.mxu0 0.0
  %887 = vmatprep.subr.mxu0 0.0
  %888 = vmatpush1.msra.mxu0 0.0
  %889 = vmatprep.subr.mxu0 0.0
  %890 = vmatpush1.msra.mxu0 0.0
  %891 = vmatprep.subr.mxu0 0.0
  %892 = vmatpush1.msra.mxu0 0.0
  %893 = vmatprep.subr.mxu0 0.0
  %894 = vmatpush1.msra.mxu0 0.0
  %895 = vmatprep.subr.mxu0 0.0
  %896 = vmatpush1.msra.mxu0 0.0
  %897 = vmatprep.subr.mxu0 0.0
  %898 = vmatpush1.msra.mxu0 0.0
  %899 = vmatprep.subr.mxu0 0.0
  %900 = vmatpush1.msra.mxu0 0.0
  %901 = vmatprep.subr.mxu0 0.0
  %902 = vmatpush1.msra.mxu0 0.0
  %903 = vmatprep.subr.mxu0 0.0
  %904 = vmatpush1.msra.mxu0 0.0
  %905 = vmatprep.subr.mxu0 0.0
  %906 = vmatpush1.msra.mxu0 0.0
  %907 = vmatprep.subr.mxu0 0.0
  %908 = vmatpush1.msra.mxu0 0.0
  %909 = vmatprep.subr.mxu0 0.0
  %910 = vmatpush1.msra.mxu0 0.0
  %911 = vmatprep.subr.mxu0 0.0
  %912 = vmatpush1.msra.mxu0 0.0
  %913 = vmatprep.mubr.f32.mxu0 0.0
  %914 = vmatmul.mubr.f32.gmra.mrb[0].mxu0 %v847
  %v915 = vpop.f32.mrb[0].mxu0
  %v916 = vadd.f32 %v115, %v915
  %v917 = vpop.f32.mrb[0].mxu0
  %v918 = vadd.f32 %v119, %v917
  %919 = vdwg.mxu0
  %v920 = vadd.f32 %v838, %v916
  %v921 = vxor.u32 %v920, 2147483648
  %v922 = vmul.f32 %v921, 1.442695
  %v923 = vpow.pop %v922
  %v924 = vadd.f32 %v923, 1.0
  %v925 = vrcp.pop %v924
  %v926 = vmul.f32 1.0, %v925
  %928 = vrot.lane.b32.xlu0 %v916, 64
  %v929 = vpop.permute.xlu0 %928
  %v931 = vmul.f32 %v926, %v929
  %933 = vrot.lane.b32.xlu0 %v931, 64
  %v934 = vpop.permute.xlu0 %933
  %v936 = vadd.f32 %v838, %v934
  %v937 = vtanh.pop %v936
  %v938 = vsub.f32 1.0, %v926
  %940 = vrot.lane.b32.xlu0 %v937, 96
  %v941 = vpop.permute.xlu0 %940
  %v943 = vmul.f32 %v938, %v941
  %v944 = vmul.f32 %v926, %v766
  %v945 = vadd.f32 %v943, %v944
  %v946 = vsel %vm829, %v945, %v766
  %947 = vrot.lane.b32.xlu0 %v916, 32
  %v948 = vpop.permute.xlu0 %947
  %v950 = vadd.f32 %v840, %v948
  %v951 = vxor.u32 %v950, 2147483648
  %v952 = vmul.f32 %v951, 1.442695
  %v953 = vpow.pop %v952
  %v954 = vadd.f32 %v953, 1.0
  %v955 = vrcp.pop %v954
  %v956 = vmul.f32 1.0, %v955
  %958 = vrot.lane.b32.xlu0 %v918, 32
  %v959 = vpop.permute.xlu0 %958
  %v961 = vadd.f32 %v840, %v959
  %v962 = vxor.u32 %v961, 2147483648
  %v963 = vmul.f32 %v962, 1.442695
  %v964 = vpow.pop %v963
  %v965 = vadd.f32 %v964, 1.0
  %v966 = vrcp.pop %v965
  %v967 = vmul.f32 1.0, %v966
  %968 = vrot.lane.b32.xlu0 %v918, 96
  %v969 = vpop.permute.xlu0 %968
  %v971 = vmul.f32 %v956, %v969
  %973 = vrot.lane.b32.xlu0 %v971, 64
  %v974 = vpop.permute.xlu0 %973
  %v976 = vadd.f32 %v840, %v974
  %v977 = vtanh.pop %v976
  %v978 = vsub.f32 1.0, %v967
  %980 = vrot.lane.b32.xlu0 %v977, 96
  %v981 = vpop.permute.xlu0 %980
  %v983 = vmul.f32 %v978, %v981
  %v984 = vmul.f32 %v967, %v806
  %v985 = vadd.f32 %v983, %v984
  %v986 = vsel %vm836, %v985, %v806
  %v987 = vsel %vm829, %v945, 0.0
  %989 = vrot.lane.b32.xlu0 %v987, 96
  %v990 = vpop.permute.xlu0 %989
  %s992 = scalar_lea.vmem %s5, 32
  %993 = vst.msk [vmem:[%s992] sm:$0xff] %vm109, %v990
  %v994 = vsel %vm836, %v985, 0.0
  %996 = vrot.lane.b32.xlu0 %v994, 96
  %v997 = vpop.permute.xlu0 %996
  %s999 = scalar_lea.vmem %s56, 88
  %1000 = vst.msk [vmem:[%s999] sm:$0xff] %vm109, %v997
  %s1001 = sadd.s32 %s84, 5
  %s1002 = ssub.s32 10, %s84
  %v1003 = vstv %s1001
  %vm1004 = vcmp.gt.s32.totalorder %v66, %v1003
  %v1005 = vsel %vm1004, 1, 0
  %1006 = vset.pattern.permute.xlu0 0
  %1007 = vperm.xlu0 %1006, %v1005
  %v1008 = vpop.permute.xlu0 %1007
  %vm1009 = vcmp.eq.s32.totalorder %v1008, 1
  %v1010 = vstv %s1002
  %vm1011 = vcmp.gt.s32.totalorder %v66, %v1010
  %v1012 = vsel %vm1011, 1, 0
  %1013 = vset.pattern.permute.xlu0 0
  %1014 = vperm.xlu0 %1013, %v1012
  %v1015 = vpop.permute.xlu0 %1014
  %vm1016 = vcmp.eq.s32.totalorder %v1015, 1
  %s1017 = scalar_lea.vmem %s0, 40
  %v1018 = vld [vmem:[%s1017] sm:$0xff]
  %s1019 = scalar_lea.vmem %s48, 80
  %v1020 = vld [vmem:[%s1019] sm:$0xff]
  %1022 = vrot.lane.b32.xlu0 %v946, 96
  %v1023 = vpop.permute.xlu0 %1022
  %v1025 = vsel %vm109, %v1023, %v986
  %v1027 = vsel %vm122, %v1025, 0
  %1029 = vmatprep.subr.mxu0 %v68
  %1030 = vmatpush1.msra.mxu0 %v67
  %1031 = vmatprep.subr.mxu0 %v70
  %1032 = vmatpush1.msra.mxu0 %v69
  %1033 = vmatprep.subr.mxu0 %v72
  %1034 = vmatpush1.msra.mxu0 %v71
  %1035 = vmatprep.subr.mxu0 %v74
  %1036 = vmatpush1.msra.mxu0 %v73
  %1037 = vmatprep.subr.mxu0 %v76
  %1038 = vmatpush1.msra.mxu0 %v75
  %1039 = vmatprep.subr.mxu0 %v78
  %1040 = vmatpush1.msra.mxu0 %v77
  %1041 = vmatprep.subr.mxu0 %v80
  %1042 = vmatpush1.msra.mxu0 %v79
  %1043 = vmatprep.subr.mxu0 %v82
  %1044 = vmatpush1.msra.mxu0 %v81
  %1045 = vmatprep.subr.mxu0 0.0
  %1046 = vmatpush1.msra.mxu0 0.0
  %1047 = vmatprep.subr.mxu0 0.0
  %1048 = vmatpush1.msra.mxu0 0.0
  %1049 = vmatprep.subr.mxu0 0.0
  %1050 = vmatpush1.msra.mxu0 0.0
  %1051 = vmatprep.subr.mxu0 0.0
  %1052 = vmatpush1.msra.mxu0 0.0
  %1053 = vmatprep.subr.mxu0 0.0
  %1054 = vmatpush1.msra.mxu0 0.0
  %1055 = vmatprep.subr.mxu0 0.0
  %1056 = vmatpush1.msra.mxu0 0.0
  %1057 = vmatprep.subr.mxu0 0.0
  %1058 = vmatpush1.msra.mxu0 0.0
  %1059 = vmatprep.subr.mxu0 0.0
  %1060 = vmatpush1.msra.mxu0 0.0
  %1061 = vmatprep.subr.mxu0 0.0
  %1062 = vmatpush1.msra.mxu0 0.0
  %1063 = vmatprep.subr.mxu0 0.0
  %1064 = vmatpush1.msra.mxu0 0.0
  %1065 = vmatprep.subr.mxu0 0.0
  %1066 = vmatpush1.msra.mxu0 0.0
  %1067 = vmatprep.subr.mxu0 0.0
  %1068 = vmatpush1.msra.mxu0 0.0
  %1069 = vmatprep.subr.mxu0 0.0
  %1070 = vmatpush1.msra.mxu0 0.0
  %1071 = vmatprep.subr.mxu0 0.0
  %1072 = vmatpush1.msra.mxu0 0.0
  %1073 = vmatprep.subr.mxu0 0.0
  %1074 = vmatpush1.msra.mxu0 0.0
  %1075 = vmatprep.subr.mxu0 0.0
  %1076 = vmatpush1.msra.mxu0 0.0
  %1077 = vmatprep.subr.mxu0 0.0
  %1078 = vmatpush1.msra.mxu0 0.0
  %1079 = vmatprep.subr.mxu0 0.0
  %1080 = vmatpush1.msra.mxu0 0.0
  %1081 = vmatprep.subr.mxu0 0.0
  %1082 = vmatpush1.msra.mxu0 0.0
  %1083 = vmatprep.subr.mxu0 0.0
  %1084 = vmatpush1.msra.mxu0 0.0
  %1085 = vmatprep.subr.mxu0 0.0
  %1086 = vmatpush1.msra.mxu0 0.0
  %1087 = vmatprep.subr.mxu0 0.0
  %1088 = vmatpush1.msra.mxu0 0.0
  %1089 = vmatprep.subr.mxu0 0.0
  %1090 = vmatpush1.msra.mxu0 0.0
  %1091 = vmatprep.subr.mxu0 0.0
  %1092 = vmatpush1.msra.mxu0 0.0
  %1093 = vmatprep.mubr.f32.mxu0 0.0
  %1094 = vmatmul.mubr.f32.gmra.mrb[0].mxu0 %v1027
  %v1095 = vpop.f32.mrb[0].mxu0
  %v1096 = vadd.f32 %v115, %v1095
  %v1097 = vpop.f32.mrb[0].mxu0
  %v1098 = vadd.f32 %v119, %v1097
  %1099 = vdwg.mxu0
  %v1100 = vadd.f32 %v1018, %v1096
  %v1101 = vxor.u32 %v1100, 2147483648
  %v1102 = vmul.f32 %v1101, 1.442695
  %v1103 = vpow.pop %v1102
  %v1104 = vadd.f32 %v1103, 1.0
  %v1105 = vrcp.pop %v1104
  %v1106 = vmul.f32 1.0, %v1105
  %1108 = vrot.lane.b32.xlu0 %v1096, 64
  %v1109 = vpop.permute.xlu0 %1108
  %v1111 = vmul.f32 %v1106, %v1109
  %1113 = vrot.lane.b32.xlu0 %v1111, 64
  %v1114 = vpop.permute.xlu0 %1113
  %v1116 = vadd.f32 %v1018, %v1114
  %v1117 = vtanh.pop %v1116
  %v1118 = vsub.f32 1.0, %v1106
  %1120 = vrot.lane.b32.xlu0 %v1117, 96
  %v1121 = vpop.permute.xlu0 %1120
  %v1123 = vmul.f32 %v1118, %v1121
  %v1124 = vmul.f32 %v1106, %v946
  %v1125 = vadd.f32 %v1123, %v1124
  %v1126 = vsel %vm1009, %v1125, %v946
  %1127 = vrot.lane.b32.xlu0 %v1096, 32
  %v1128 = vpop.permute.xlu0 %1127
  %v1130 = vadd.f32 %v1020, %v1128
  %v1131 = vxor.u32 %v1130, 2147483648
  %v1132 = vmul.f32 %v1131, 1.442695
  %v1133 = vpow.pop %v1132
  %v1134 = vadd.f32 %v1133, 1.0
  %v1135 = vrcp.pop %v1134
  %v1136 = vmul.f32 1.0, %v1135
  %1138 = vrot.lane.b32.xlu0 %v1098, 32
  %v1139 = vpop.permute.xlu0 %1138
  %v1141 = vadd.f32 %v1020, %v1139
  %v1142 = vxor.u32 %v1141, 2147483648
  %v1143 = vmul.f32 %v1142, 1.442695
  %v1144 = vpow.pop %v1143
  %v1145 = vadd.f32 %v1144, 1.0
  %v1146 = vrcp.pop %v1145
  %v1147 = vmul.f32 1.0, %v1146
  %1148 = vrot.lane.b32.xlu0 %v1098, 96
  %v1149 = vpop.permute.xlu0 %1148
  %v1151 = vmul.f32 %v1136, %v1149
  %1153 = vrot.lane.b32.xlu0 %v1151, 64
  %v1154 = vpop.permute.xlu0 %1153
  %v1156 = vadd.f32 %v1020, %v1154
  %v1157 = vtanh.pop %v1156
  %v1158 = vsub.f32 1.0, %v1147
  %1160 = vrot.lane.b32.xlu0 %v1157, 96
  %v1161 = vpop.permute.xlu0 %1160
  %v1163 = vmul.f32 %v1158, %v1161
  %v1164 = vmul.f32 %v1147, %v986
  %v1165 = vadd.f32 %v1163, %v1164
  %v1166 = vsel %vm1016, %v1165, %v986
  %v1167 = vsel %vm1009, %v1125, 0.0
  %1169 = vrot.lane.b32.xlu0 %v1167, 96
  %v1170 = vpop.permute.xlu0 %1169
  %s1172 = scalar_lea.vmem %s5, 40
  %1173 = vst.msk [vmem:[%s1172] sm:$0xff] %vm109, %v1170
  %v1174 = vsel %vm1016, %v1165, 0.0
  %1176 = vrot.lane.b32.xlu0 %v1174, 96
  %v1177 = vpop.permute.xlu0 %1176
  %s1179 = scalar_lea.vmem %s56, 80
  %1180 = vst.msk [vmem:[%s1179] sm:$0xff] %vm109, %v1177
  %s1181 = sadd.s32 %s84, 6
  %s1182 = ssub.s32 9, %s84
  %v1183 = vstv %s1181
  %vm1184 = vcmp.gt.s32.totalorder %v66, %v1183
  %v1185 = vsel %vm1184, 1, 0
  %1186 = vset.pattern.permute.xlu0 0
  %1187 = vperm.xlu0 %1186, %v1185
  %v1188 = vpop.permute.xlu0 %1187
  %vm1189 = vcmp.eq.s32.totalorder %v1188, 1
  %v1190 = vstv %s1182
  %vm1191 = vcmp.gt.s32.totalorder %v66, %v1190
  %v1192 = vsel %vm1191, 1, 0
  %1193 = vset.pattern.permute.xlu0 0
  %1194 = vperm.xlu0 %1193, %v1192
  %v1195 = vpop.permute.xlu0 %1194
  %vm1196 = vcmp.eq.s32.totalorder %v1195, 1
  %s1197 = scalar_lea.vmem %s0, 48
  %v1198 = vld [vmem:[%s1197] sm:$0xff]
  %s1199 = scalar_lea.vmem %s48, 72
  %v1200 = vld [vmem:[%s1199] sm:$0xff]
  %1202 = vrot.lane.b32.xlu0 %v1126, 96
  %v1203 = vpop.permute.xlu0 %1202
  %v1205 = vsel %vm109, %v1203, %v1166
  %v1207 = vsel %vm122, %v1205, 0
  %1209 = vmatprep.subr.mxu0 %v68
  %1210 = vmatpush1.msra.mxu0 %v67
  %1211 = vmatprep.subr.mxu0 %v70
  %1212 = vmatpush1.msra.mxu0 %v69
  %1213 = vmatprep.subr.mxu0 %v72
  %1214 = vmatpush1.msra.mxu0 %v71
  %1215 = vmatprep.subr.mxu0 %v74
  %1216 = vmatpush1.msra.mxu0 %v73
  %1217 = vmatprep.subr.mxu0 %v76
  %1218 = vmatpush1.msra.mxu0 %v75
  %1219 = vmatprep.subr.mxu0 %v78
  %1220 = vmatpush1.msra.mxu0 %v77
  %1221 = vmatprep.subr.mxu0 %v80
  %1222 = vmatpush1.msra.mxu0 %v79
  %1223 = vmatprep.subr.mxu0 %v82
  %1224 = vmatpush1.msra.mxu0 %v81
  %1225 = vmatprep.subr.mxu0 0.0
  %1226 = vmatpush1.msra.mxu0 0.0
  %1227 = vmatprep.subr.mxu0 0.0
  %1228 = vmatpush1.msra.mxu0 0.0
  %1229 = vmatprep.subr.mxu0 0.0
  %1230 = vmatpush1.msra.mxu0 0.0
  %1231 = vmatprep.subr.mxu0 0.0
  %1232 = vmatpush1.msra.mxu0 0.0
  %1233 = vmatprep.subr.mxu0 0.0
  %1234 = vmatpush1.msra.mxu0 0.0
  %1235 = vmatprep.subr.mxu0 0.0
  %1236 = vmatpush1.msra.mxu0 0.0
  %1237 = vmatprep.subr.mxu0 0.0
  %1238 = vmatpush1.msra.mxu0 0.0
  %1239 = vmatprep.subr.mxu0 0.0
  %1240 = vmatpush1.msra.mxu0 0.0
  %1241 = vmatprep.subr.mxu0 0.0
  %1242 = vmatpush1.msra.mxu0 0.0
  %1243 = vmatprep.subr.mxu0 0.0
  %1244 = vmatpush1.msra.mxu0 0.0
  %1245 = vmatprep.subr.mxu0 0.0
  %1246 = vmatpush1.msra.mxu0 0.0
  %1247 = vmatprep.subr.mxu0 0.0
  %1248 = vmatpush1.msra.mxu0 0.0
  %1249 = vmatprep.subr.mxu0 0.0
  %1250 = vmatpush1.msra.mxu0 0.0
  %1251 = vmatprep.subr.mxu0 0.0
  %1252 = vmatpush1.msra.mxu0 0.0
  %1253 = vmatprep.subr.mxu0 0.0
  %1254 = vmatpush1.msra.mxu0 0.0
  %1255 = vmatprep.subr.mxu0 0.0
  %1256 = vmatpush1.msra.mxu0 0.0
  %1257 = vmatprep.subr.mxu0 0.0
  %1258 = vmatpush1.msra.mxu0 0.0
  %1259 = vmatprep.subr.mxu0 0.0
  %1260 = vmatpush1.msra.mxu0 0.0
  %1261 = vmatprep.subr.mxu0 0.0
  %1262 = vmatpush1.msra.mxu0 0.0
  %1263 = vmatprep.subr.mxu0 0.0
  %1264 = vmatpush1.msra.mxu0 0.0
  %1265 = vmatprep.subr.mxu0 0.0
  %1266 = vmatpush1.msra.mxu0 0.0
  %1267 = vmatprep.subr.mxu0 0.0
  %1268 = vmatpush1.msra.mxu0 0.0
  %1269 = vmatprep.subr.mxu0 0.0
  %1270 = vmatpush1.msra.mxu0 0.0
  %1271 = vmatprep.subr.mxu0 0.0
  %1272 = vmatpush1.msra.mxu0 0.0
  %1273 = vmatprep.mubr.f32.mxu0 0.0
  %1274 = vmatmul.mubr.f32.gmra.mrb[0].mxu0 %v1207
  %v1275 = vpop.f32.mrb[0].mxu0
  %v1276 = vadd.f32 %v115, %v1275
  %v1277 = vpop.f32.mrb[0].mxu0
  %v1278 = vadd.f32 %v119, %v1277
  %1279 = vdwg.mxu0
  %v1280 = vadd.f32 %v1198, %v1276
  %v1281 = vxor.u32 %v1280, 2147483648
  %v1282 = vmul.f32 %v1281, 1.442695
  %v1283 = vpow.pop %v1282
  %v1284 = vadd.f32 %v1283, 1.0
  %v1285 = vrcp.pop %v1284
  %v1286 = vmul.f32 1.0, %v1285
  %1288 = vrot.lane.b32.xlu0 %v1276, 64
  %v1289 = vpop.permute.xlu0 %1288
  %v1291 = vmul.f32 %v1286, %v1289
  %1293 = vrot.lane.b32.xlu0 %v1291, 64
  %v1294 = vpop.permute.xlu0 %1293
  %v1296 = vadd.f32 %v1198, %v1294
  %v1297 = vtanh.pop %v1296
  %v1298 = vsub.f32 1.0, %v1286
  %1300 = vrot.lane.b32.xlu0 %v1297, 96
  %v1301 = vpop.permute.xlu0 %1300
  %v1303 = vmul.f32 %v1298, %v1301
  %v1304 = vmul.f32 %v1286, %v1126
  %v1305 = vadd.f32 %v1303, %v1304
  %v1306 = vsel %vm1189, %v1305, %v1126
  %1307 = vrot.lane.b32.xlu0 %v1276, 32
  %v1308 = vpop.permute.xlu0 %1307
  %v1310 = vadd.f32 %v1200, %v1308
  %v1311 = vxor.u32 %v1310, 2147483648
  %v1312 = vmul.f32 %v1311, 1.442695
  %v1313 = vpow.pop %v1312
  %v1314 = vadd.f32 %v1313, 1.0
  %v1315 = vrcp.pop %v1314
  %v1316 = vmul.f32 1.0, %v1315
  %1318 = vrot.lane.b32.xlu0 %v1278, 32
  %v1319 = vpop.permute.xlu0 %1318
  %v1321 = vadd.f32 %v1200, %v1319
  %v1322 = vxor.u32 %v1321, 2147483648
  %v1323 = vmul.f32 %v1322, 1.442695
  %v1324 = vpow.pop %v1323
  %v1325 = vadd.f32 %v1324, 1.0
  %v1326 = vrcp.pop %v1325
  %v1327 = vmul.f32 1.0, %v1326
  %1328 = vrot.lane.b32.xlu0 %v1278, 96
  %v1329 = vpop.permute.xlu0 %1328
  %v1331 = vmul.f32 %v1316, %v1329
  %1333 = vrot.lane.b32.xlu0 %v1331, 64
  %v1334 = vpop.permute.xlu0 %1333
  %v1336 = vadd.f32 %v1200, %v1334
  %v1337 = vtanh.pop %v1336
  %v1338 = vsub.f32 1.0, %v1327
  %1340 = vrot.lane.b32.xlu0 %v1337, 96
  %v1341 = vpop.permute.xlu0 %1340
  %v1343 = vmul.f32 %v1338, %v1341
  %v1344 = vmul.f32 %v1327, %v1166
  %v1345 = vadd.f32 %v1343, %v1344
  %v1346 = vsel %vm1196, %v1345, %v1166
  %v1347 = vsel %vm1189, %v1305, 0.0
  %1349 = vrot.lane.b32.xlu0 %v1347, 96
  %v1350 = vpop.permute.xlu0 %1349
  %s1352 = scalar_lea.vmem %s5, 48
  %1353 = vst.msk [vmem:[%s1352] sm:$0xff] %vm109, %v1350
  %v1354 = vsel %vm1196, %v1345, 0.0
  %1356 = vrot.lane.b32.xlu0 %v1354, 96
  %v1357 = vpop.permute.xlu0 %1356
  %s1359 = scalar_lea.vmem %s56, 72
  %1360 = vst.msk [vmem:[%s1359] sm:$0xff] %vm109, %v1357
  %s1361 = sadd.s32 %s84, 7
  %s1362 = ssub.s32 8, %s84
  %v1363 = vstv %s1361
  %vm1364 = vcmp.gt.s32.totalorder %v66, %v1363
  %v1365 = vsel %vm1364, 1, 0
  %1366 = vset.pattern.permute.xlu0 0
  %1367 = vperm.xlu0 %1366, %v1365
  %v1368 = vpop.permute.xlu0 %1367
  %vm1369 = vcmp.eq.s32.totalorder %v1368, 1
  %v1370 = vstv %s1362
  %vm1371 = vcmp.gt.s32.totalorder %v66, %v1370
  %v1372 = vsel %vm1371, 1, 0
  %1373 = vset.pattern.permute.xlu0 0
  %1374 = vperm.xlu0 %1373, %v1372
  %v1375 = vpop.permute.xlu0 %1374
  %vm1376 = vcmp.eq.s32.totalorder %v1375, 1
  %s1377 = scalar_lea.vmem %s0, 56
  %v1378 = vld [vmem:[%s1377] sm:$0xff]
  %s1379 = scalar_lea.vmem %s48, 64
  %v1380 = vld [vmem:[%s1379] sm:$0xff]
  %1382 = vrot.lane.b32.xlu0 %v1306, 96
  %v1383 = vpop.permute.xlu0 %1382
  %v1385 = vsel %vm109, %v1383, %v1346
  %v1387 = vsel %vm122, %v1385, 0
  %1389 = vmatprep.subr.mxu0 %v68
  %1390 = vmatpush1.msra.mxu0 %v67
  %1391 = vmatprep.subr.mxu0 %v70
  %1392 = vmatpush1.msra.mxu0 %v69
  %1393 = vmatprep.subr.mxu0 %v72
  %1394 = vmatpush1.msra.mxu0 %v71
  %1395 = vmatprep.subr.mxu0 %v74
  %1396 = vmatpush1.msra.mxu0 %v73
  %1397 = vmatprep.subr.mxu0 %v76
  %1398 = vmatpush1.msra.mxu0 %v75
  %1399 = vmatprep.subr.mxu0 %v78
  %1400 = vmatpush1.msra.mxu0 %v77
  %1401 = vmatprep.subr.mxu0 %v80
  %1402 = vmatpush1.msra.mxu0 %v79
  %1403 = vmatprep.subr.mxu0 %v82
  %1404 = vmatpush1.msra.mxu0 %v81
  %1405 = vmatprep.subr.mxu0 0.0
  %1406 = vmatpush1.msra.mxu0 0.0
  %1407 = vmatprep.subr.mxu0 0.0
  %1408 = vmatpush1.msra.mxu0 0.0
  %1409 = vmatprep.subr.mxu0 0.0
  %1410 = vmatpush1.msra.mxu0 0.0
  %1411 = vmatprep.subr.mxu0 0.0
  %1412 = vmatpush1.msra.mxu0 0.0
  %1413 = vmatprep.subr.mxu0 0.0
  %1414 = vmatpush1.msra.mxu0 0.0
  %1415 = vmatprep.subr.mxu0 0.0
  %1416 = vmatpush1.msra.mxu0 0.0
  %1417 = vmatprep.subr.mxu0 0.0
  %1418 = vmatpush1.msra.mxu0 0.0
  %1419 = vmatprep.subr.mxu0 0.0
  %1420 = vmatpush1.msra.mxu0 0.0
  %1421 = vmatprep.subr.mxu0 0.0
  %1422 = vmatpush1.msra.mxu0 0.0
  %1423 = vmatprep.subr.mxu0 0.0
  %1424 = vmatpush1.msra.mxu0 0.0
  %1425 = vmatprep.subr.mxu0 0.0
  %1426 = vmatpush1.msra.mxu0 0.0
  %1427 = vmatprep.subr.mxu0 0.0
  %1428 = vmatpush1.msra.mxu0 0.0
  %1429 = vmatprep.subr.mxu0 0.0
  %1430 = vmatpush1.msra.mxu0 0.0
  %1431 = vmatprep.subr.mxu0 0.0
  %1432 = vmatpush1.msra.mxu0 0.0
  %1433 = vmatprep.subr.mxu0 0.0
  %1434 = vmatpush1.msra.mxu0 0.0
  %1435 = vmatprep.subr.mxu0 0.0
  %1436 = vmatpush1.msra.mxu0 0.0
  %1437 = vmatprep.subr.mxu0 0.0
  %1438 = vmatpush1.msra.mxu0 0.0
  %1439 = vmatprep.subr.mxu0 0.0
  %1440 = vmatpush1.msra.mxu0 0.0
  %1441 = vmatprep.subr.mxu0 0.0
  %1442 = vmatpush1.msra.mxu0 0.0
  %1443 = vmatprep.subr.mxu0 0.0
  %1444 = vmatpush1.msra.mxu0 0.0
  %1445 = vmatprep.subr.mxu0 0.0
  %1446 = vmatpush1.msra.mxu0 0.0
  %1447 = vmatprep.subr.mxu0 0.0
  %1448 = vmatpush1.msra.mxu0 0.0
  %1449 = vmatprep.subr.mxu0 0.0
  %1450 = vmatpush1.msra.mxu0 0.0
  %1451 = vmatprep.subr.mxu0 0.0
  %1452 = vmatpush1.msra.mxu0 0.0
  %1453 = vmatprep.mubr.f32.mxu0 0.0
  %1454 = vmatmul.mubr.f32.gmra.mrb[0].mxu0 %v1387
  %v1455 = vpop.f32.mrb[0].mxu0
  %v1456 = vadd.f32 %v115, %v1455
  %v1457 = vpop.f32.mrb[0].mxu0
  %v1458 = vadd.f32 %v119, %v1457
  %1459 = vdwg.mxu0
  %v1460 = vadd.f32 %v1378, %v1456
  %v1461 = vxor.u32 %v1460, 2147483648
  %v1462 = vmul.f32 %v1461, 1.442695
  %v1463 = vpow.pop %v1462
  %v1464 = vadd.f32 %v1463, 1.0
  %v1465 = vrcp.pop %v1464
  %v1466 = vmul.f32 1.0, %v1465
  %1468 = vrot.lane.b32.xlu0 %v1456, 64
  %v1469 = vpop.permute.xlu0 %1468
  %v1471 = vmul.f32 %v1466, %v1469
  %1473 = vrot.lane.b32.xlu0 %v1471, 64
  %v1474 = vpop.permute.xlu0 %1473
  %v1476 = vadd.f32 %v1378, %v1474
  %v1477 = vtanh.pop %v1476
  %v1478 = vsub.f32 1.0, %v1466
  %1480 = vrot.lane.b32.xlu0 %v1477, 96
  %v1481 = vpop.permute.xlu0 %1480
  %v1483 = vmul.f32 %v1478, %v1481
  %v1484 = vmul.f32 %v1466, %v1306
  %v1485 = vadd.f32 %v1483, %v1484
  %v1486 = vsel %vm1369, %v1485, %v1306
  %1487 = vrot.lane.b32.xlu0 %v1456, 32
  %v1488 = vpop.permute.xlu0 %1487
  %v1490 = vadd.f32 %v1380, %v1488
  %v1491 = vxor.u32 %v1490, 2147483648
  %v1492 = vmul.f32 %v1491, 1.442695
  %v1493 = vpow.pop %v1492
  %v1494 = vadd.f32 %v1493, 1.0
  %v1495 = vrcp.pop %v1494
  %v1496 = vmul.f32 1.0, %v1495
  %1498 = vrot.lane.b32.xlu0 %v1458, 32
  %v1499 = vpop.permute.xlu0 %1498
  %v1501 = vadd.f32 %v1380, %v1499
  %v1502 = vxor.u32 %v1501, 2147483648
  %v1503 = vmul.f32 %v1502, 1.442695
  %v1504 = vpow.pop %v1503
  %v1505 = vadd.f32 %v1504, 1.0
  %v1506 = vrcp.pop %v1505
  %v1507 = vmul.f32 1.0, %v1506
  %1508 = vrot.lane.b32.xlu0 %v1458, 96
  %v1509 = vpop.permute.xlu0 %1508
  %v1511 = vmul.f32 %v1496, %v1509
  %1513 = vrot.lane.b32.xlu0 %v1511, 64
  %v1514 = vpop.permute.xlu0 %1513
  %v1516 = vadd.f32 %v1380, %v1514
  %v1517 = vtanh.pop %v1516
  %v1518 = vsub.f32 1.0, %v1507
  %1520 = vrot.lane.b32.xlu0 %v1517, 96
  %v1521 = vpop.permute.xlu0 %1520
  %v1523 = vmul.f32 %v1518, %v1521
  %v1524 = vmul.f32 %v1507, %v1346
  %v1525 = vadd.f32 %v1523, %v1524
  %v1526 = vsel %vm1376, %v1525, %v1346
  %v1527 = vsel %vm1369, %v1485, 0.0
  %1529 = vrot.lane.b32.xlu0 %v1527, 96
  %v1530 = vpop.permute.xlu0 %1529
  %s1532 = scalar_lea.vmem %s5, 56
  %1533 = vst.msk [vmem:[%s1532] sm:$0xff] %vm109, %v1530
  %v1534 = vsel %vm1376, %v1525, 0.0
  %1536 = vrot.lane.b32.xlu0 %v1534, 96
  %v1537 = vpop.permute.xlu0 %1536
  %s1539 = scalar_lea.vmem %s56, 64
  %1540 = vst.msk [vmem:[%s1539] sm:$0xff] %vm109, %v1537
  %s1541 = sadd.s32 %s84, 8
  %s1542 = ssub.s32 7, %s84
  %v1543 = vstv %s1541
  %vm1544 = vcmp.gt.s32.totalorder %v66, %v1543
  %v1545 = vsel %vm1544, 1, 0
  %1546 = vset.pattern.permute.xlu0 0
  %1547 = vperm.xlu0 %1546, %v1545
  %v1548 = vpop.permute.xlu0 %1547
  %vm1549 = vcmp.eq.s32.totalorder %v1548, 1
  %v1550 = vstv %s1542
  %vm1551 = vcmp.gt.s32.totalorder %v66, %v1550
  %v1552 = vsel %vm1551, 1, 0
  %1553 = vset.pattern.permute.xlu0 0
  %1554 = vperm.xlu0 %1553, %v1552
  %v1555 = vpop.permute.xlu0 %1554
  %vm1556 = vcmp.eq.s32.totalorder %v1555, 1
  %s1557 = scalar_lea.vmem %s0, 64
  %v1558 = vld [vmem:[%s1557] sm:$0xff]
  %s1559 = scalar_lea.vmem %s48, 56
  %v1560 = vld [vmem:[%s1559] sm:$0xff]
  %1562 = vrot.lane.b32.xlu0 %v1486, 96
  %v1563 = vpop.permute.xlu0 %1562
  %v1565 = vsel %vm109, %v1563, %v1526
  %v1567 = vsel %vm122, %v1565, 0
  %1569 = vmatprep.subr.mxu0 %v68
  %1570 = vmatpush1.msra.mxu0 %v67
  %1571 = vmatprep.subr.mxu0 %v70
  %1572 = vmatpush1.msra.mxu0 %v69
  %1573 = vmatprep.subr.mxu0 %v72
  %1574 = vmatpush1.msra.mxu0 %v71
  %1575 = vmatprep.subr.mxu0 %v74
  %1576 = vmatpush1.msra.mxu0 %v73
  %1577 = vmatprep.subr.mxu0 %v76
  %1578 = vmatpush1.msra.mxu0 %v75
  %1579 = vmatprep.subr.mxu0 %v78
  %1580 = vmatpush1.msra.mxu0 %v77
  %1581 = vmatprep.subr.mxu0 %v80
  %1582 = vmatpush1.msra.mxu0 %v79
  %1583 = vmatprep.subr.mxu0 %v82
  %1584 = vmatpush1.msra.mxu0 %v81
  %1585 = vmatprep.subr.mxu0 0.0
  %1586 = vmatpush1.msra.mxu0 0.0
  %1587 = vmatprep.subr.mxu0 0.0
  %1588 = vmatpush1.msra.mxu0 0.0
  %1589 = vmatprep.subr.mxu0 0.0
  %1590 = vmatpush1.msra.mxu0 0.0
  %1591 = vmatprep.subr.mxu0 0.0
  %1592 = vmatpush1.msra.mxu0 0.0
  %1593 = vmatprep.subr.mxu0 0.0
  %1594 = vmatpush1.msra.mxu0 0.0
  %1595 = vmatprep.subr.mxu0 0.0
  %1596 = vmatpush1.msra.mxu0 0.0
  %1597 = vmatprep.subr.mxu0 0.0
  %1598 = vmatpush1.msra.mxu0 0.0
  %1599 = vmatprep.subr.mxu0 0.0
  %1600 = vmatpush1.msra.mxu0 0.0
  %1601 = vmatprep.subr.mxu0 0.0
  %1602 = vmatpush1.msra.mxu0 0.0
  %1603 = vmatprep.subr.mxu0 0.0
  %1604 = vmatpush1.msra.mxu0 0.0
  %1605 = vmatprep.subr.mxu0 0.0
  %1606 = vmatpush1.msra.mxu0 0.0
  %1607 = vmatprep.subr.mxu0 0.0
  %1608 = vmatpush1.msra.mxu0 0.0
  %1609 = vmatprep.subr.mxu0 0.0
  %1610 = vmatpush1.msra.mxu0 0.0
  %1611 = vmatprep.subr.mxu0 0.0
  %1612 = vmatpush1.msra.mxu0 0.0
  %1613 = vmatprep.subr.mxu0 0.0
  %1614 = vmatpush1.msra.mxu0 0.0
  %1615 = vmatprep.subr.mxu0 0.0
  %1616 = vmatpush1.msra.mxu0 0.0
  %1617 = vmatprep.subr.mxu0 0.0
  %1618 = vmatpush1.msra.mxu0 0.0
  %1619 = vmatprep.subr.mxu0 0.0
  %1620 = vmatpush1.msra.mxu0 0.0
  %1621 = vmatprep.subr.mxu0 0.0
  %1622 = vmatpush1.msra.mxu0 0.0
  %1623 = vmatprep.subr.mxu0 0.0
  %1624 = vmatpush1.msra.mxu0 0.0
  %1625 = vmatprep.subr.mxu0 0.0
  %1626 = vmatpush1.msra.mxu0 0.0
  %1627 = vmatprep.subr.mxu0 0.0
  %1628 = vmatpush1.msra.mxu0 0.0
  %1629 = vmatprep.subr.mxu0 0.0
  %1630 = vmatpush1.msra.mxu0 0.0
  %1631 = vmatprep.subr.mxu0 0.0
  %1632 = vmatpush1.msra.mxu0 0.0
  %1633 = vmatprep.mubr.f32.mxu0 0.0
  %1634 = vmatmul.mubr.f32.gmra.mrb[0].mxu0 %v1567
  %v1635 = vpop.f32.mrb[0].mxu0
  %v1636 = vadd.f32 %v115, %v1635
  %v1637 = vpop.f32.mrb[0].mxu0
  %v1638 = vadd.f32 %v119, %v1637
  %1639 = vdwg.mxu0
  %v1640 = vadd.f32 %v1558, %v1636
  %v1641 = vxor.u32 %v1640, 2147483648
  %v1642 = vmul.f32 %v1641, 1.442695
  %v1643 = vpow.pop %v1642
  %v1644 = vadd.f32 %v1643, 1.0
  %v1645 = vrcp.pop %v1644
  %v1646 = vmul.f32 1.0, %v1645
  %1648 = vrot.lane.b32.xlu0 %v1636, 64
  %v1649 = vpop.permute.xlu0 %1648
  %v1651 = vmul.f32 %v1646, %v1649
  %1653 = vrot.lane.b32.xlu0 %v1651, 64
  %v1654 = vpop.permute.xlu0 %1653
  %v1656 = vadd.f32 %v1558, %v1654
  %v1657 = vtanh.pop %v1656
  %v1658 = vsub.f32 1.0, %v1646
  %1660 = vrot.lane.b32.xlu0 %v1657, 96
  %v1661 = vpop.permute.xlu0 %1660
  %v1663 = vmul.f32 %v1658, %v1661
  %v1664 = vmul.f32 %v1646, %v1486
  %v1665 = vadd.f32 %v1663, %v1664
  %v1666 = vsel %vm1549, %v1665, %v1486
  %1667 = vrot.lane.b32.xlu0 %v1636, 32
  %v1668 = vpop.permute.xlu0 %1667
  %v1670 = vadd.f32 %v1560, %v1668
  %v1671 = vxor.u32 %v1670, 2147483648
  %v1672 = vmul.f32 %v1671, 1.442695
  %v1673 = vpow.pop %v1672
  %v1674 = vadd.f32 %v1673, 1.0
  %v1675 = vrcp.pop %v1674
  %v1676 = vmul.f32 1.0, %v1675
  %1678 = vrot.lane.b32.xlu0 %v1638, 32
  %v1679 = vpop.permute.xlu0 %1678
  %v1681 = vadd.f32 %v1560, %v1679
  %v1682 = vxor.u32 %v1681, 2147483648
  %v1683 = vmul.f32 %v1682, 1.442695
  %v1684 = vpow.pop %v1683
  %v1685 = vadd.f32 %v1684, 1.0
  %v1686 = vrcp.pop %v1685
  %v1687 = vmul.f32 1.0, %v1686
  %1688 = vrot.lane.b32.xlu0 %v1638, 96
  %v1689 = vpop.permute.xlu0 %1688
  %v1691 = vmul.f32 %v1676, %v1689
  %1693 = vrot.lane.b32.xlu0 %v1691, 64
  %v1694 = vpop.permute.xlu0 %1693
  %v1696 = vadd.f32 %v1560, %v1694
  %v1697 = vtanh.pop %v1696
  %v1698 = vsub.f32 1.0, %v1687
  %1700 = vrot.lane.b32.xlu0 %v1697, 96
  %v1701 = vpop.permute.xlu0 %1700
  %v1703 = vmul.f32 %v1698, %v1701
  %v1704 = vmul.f32 %v1687, %v1526
  %v1705 = vadd.f32 %v1703, %v1704
  %v1706 = vsel %vm1556, %v1705, %v1526
  %v1707 = vsel %vm1549, %v1665, 0.0
  %1709 = vrot.lane.b32.xlu0 %v1707, 96
  %v1710 = vpop.permute.xlu0 %1709
  %s1712 = scalar_lea.vmem %s5, 64
  %1713 = vst.msk [vmem:[%s1712] sm:$0xff] %vm109, %v1710
  %v1714 = vsel %vm1556, %v1705, 0.0
  %1716 = vrot.lane.b32.xlu0 %v1714, 96
  %v1717 = vpop.permute.xlu0 %1716
  %s1719 = scalar_lea.vmem %s56, 56
  %1720 = vst.msk [vmem:[%s1719] sm:$0xff] %vm109, %v1717
  %s1721 = sadd.s32 %s84, 9
  %s1722 = ssub.s32 6, %s84
  %v1723 = vstv %s1721
  %vm1724 = vcmp.gt.s32.totalorder %v66, %v1723
  %v1725 = vsel %vm1724, 1, 0
  %1726 = vset.pattern.permute.xlu0 0
  %1727 = vperm.xlu0 %1726, %v1725
  %v1728 = vpop.permute.xlu0 %1727
  %vm1729 = vcmp.eq.s32.totalorder %v1728, 1
  %v1730 = vstv %s1722
  %vm1731 = vcmp.gt.s32.totalorder %v66, %v1730
  %v1732 = vsel %vm1731, 1, 0
  %1733 = vset.pattern.permute.xlu0 0
  %1734 = vperm.xlu0 %1733, %v1732
  %v1735 = vpop.permute.xlu0 %1734
  %vm1736 = vcmp.eq.s32.totalorder %v1735, 1
  %s1737 = scalar_lea.vmem %s0, 72
  %v1738 = vld [vmem:[%s1737] sm:$0xff]
  %s1739 = scalar_lea.vmem %s48, 48
  %v1740 = vld [vmem:[%s1739] sm:$0xff]
  %1742 = vrot.lane.b32.xlu0 %v1666, 96
  %v1743 = vpop.permute.xlu0 %1742
  %v1745 = vsel %vm109, %v1743, %v1706
  %v1747 = vsel %vm122, %v1745, 0
  %1749 = vmatprep.subr.mxu0 %v68
  %1750 = vmatpush1.msra.mxu0 %v67
  %1751 = vmatprep.subr.mxu0 %v70
  %1752 = vmatpush1.msra.mxu0 %v69
  %1753 = vmatprep.subr.mxu0 %v72
  %1754 = vmatpush1.msra.mxu0 %v71
  %1755 = vmatprep.subr.mxu0 %v74
  %1756 = vmatpush1.msra.mxu0 %v73
  %1757 = vmatprep.subr.mxu0 %v76
  %1758 = vmatpush1.msra.mxu0 %v75
  %1759 = vmatprep.subr.mxu0 %v78
  %1760 = vmatpush1.msra.mxu0 %v77
  %1761 = vmatprep.subr.mxu0 %v80
  %1762 = vmatpush1.msra.mxu0 %v79
  %1763 = vmatprep.subr.mxu0 %v82
  %1764 = vmatpush1.msra.mxu0 %v81
  %1765 = vmatprep.subr.mxu0 0.0
  %1766 = vmatpush1.msra.mxu0 0.0
  %1767 = vmatprep.subr.mxu0 0.0
  %1768 = vmatpush1.msra.mxu0 0.0
  %1769 = vmatprep.subr.mxu0 0.0
  %1770 = vmatpush1.msra.mxu0 0.0
  %1771 = vmatprep.subr.mxu0 0.0
  %1772 = vmatpush1.msra.mxu0 0.0
  %1773 = vmatprep.subr.mxu0 0.0
  %1774 = vmatpush1.msra.mxu0 0.0
  %1775 = vmatprep.subr.mxu0 0.0
  %1776 = vmatpush1.msra.mxu0 0.0
  %1777 = vmatprep.subr.mxu0 0.0
  %1778 = vmatpush1.msra.mxu0 0.0
  %1779 = vmatprep.subr.mxu0 0.0
  %1780 = vmatpush1.msra.mxu0 0.0
  %1781 = vmatprep.subr.mxu0 0.0
  %1782 = vmatpush1.msra.mxu0 0.0
  %1783 = vmatprep.subr.mxu0 0.0
  %1784 = vmatpush1.msra.mxu0 0.0
  %1785 = vmatprep.subr.mxu0 0.0
  %1786 = vmatpush1.msra.mxu0 0.0
  %1787 = vmatprep.subr.mxu0 0.0
  %1788 = vmatpush1.msra.mxu0 0.0
  %1789 = vmatprep.subr.mxu0 0.0
  %1790 = vmatpush1.msra.mxu0 0.0
  %1791 = vmatprep.subr.mxu0 0.0
  %1792 = vmatpush1.msra.mxu0 0.0
  %1793 = vmatprep.subr.mxu0 0.0
  %1794 = vmatpush1.msra.mxu0 0.0
  %1795 = vmatprep.subr.mxu0 0.0
  %1796 = vmatpush1.msra.mxu0 0.0
  %1797 = vmatprep.subr.mxu0 0.0
  %1798 = vmatpush1.msra.mxu0 0.0
  %1799 = vmatprep.subr.mxu0 0.0
  %1800 = vmatpush1.msra.mxu0 0.0
  %1801 = vmatprep.subr.mxu0 0.0
  %1802 = vmatpush1.msra.mxu0 0.0
  %1803 = vmatprep.subr.mxu0 0.0
  %1804 = vmatpush1.msra.mxu0 0.0
  %1805 = vmatprep.subr.mxu0 0.0
  %1806 = vmatpush1.msra.mxu0 0.0
  %1807 = vmatprep.subr.mxu0 0.0
  %1808 = vmatpush1.msra.mxu0 0.0
  %1809 = vmatprep.subr.mxu0 0.0
  %1810 = vmatpush1.msra.mxu0 0.0
  %1811 = vmatprep.subr.mxu0 0.0
  %1812 = vmatpush1.msra.mxu0 0.0
  %1813 = vmatprep.mubr.f32.mxu0 0.0
  %1814 = vmatmul.mubr.f32.gmra.mrb[0].mxu0 %v1747
  %v1815 = vpop.f32.mrb[0].mxu0
  %v1816 = vadd.f32 %v115, %v1815
  %v1817 = vpop.f32.mrb[0].mxu0
  %v1818 = vadd.f32 %v119, %v1817
  %1819 = vdwg.mxu0
  %v1820 = vadd.f32 %v1738, %v1816
  %v1821 = vxor.u32 %v1820, 2147483648
  %v1822 = vmul.f32 %v1821, 1.442695
  %v1823 = vpow.pop %v1822
  %v1824 = vadd.f32 %v1823, 1.0
  %v1825 = vrcp.pop %v1824
  %v1826 = vmul.f32 1.0, %v1825
  %1828 = vrot.lane.b32.xlu0 %v1816, 64
  %v1829 = vpop.permute.xlu0 %1828
  %v1831 = vmul.f32 %v1826, %v1829
  %1833 = vrot.lane.b32.xlu0 %v1831, 64
  %v1834 = vpop.permute.xlu0 %1833
  %v1836 = vadd.f32 %v1738, %v1834
  %v1837 = vtanh.pop %v1836
  %v1838 = vsub.f32 1.0, %v1826
  %1840 = vrot.lane.b32.xlu0 %v1837, 96
  %v1841 = vpop.permute.xlu0 %1840
  %v1843 = vmul.f32 %v1838, %v1841
  %v1844 = vmul.f32 %v1826, %v1666
  %v1845 = vadd.f32 %v1843, %v1844
  %v1846 = vsel %vm1729, %v1845, %v1666
  %1847 = vrot.lane.b32.xlu0 %v1816, 32
  %v1848 = vpop.permute.xlu0 %1847
  %v1850 = vadd.f32 %v1740, %v1848
  %v1851 = vxor.u32 %v1850, 2147483648
  %v1852 = vmul.f32 %v1851, 1.442695
  %v1853 = vpow.pop %v1852
  %v1854 = vadd.f32 %v1853, 1.0
  %v1855 = vrcp.pop %v1854
  %v1856 = vmul.f32 1.0, %v1855
  %1858 = vrot.lane.b32.xlu0 %v1818, 32
  %v1859 = vpop.permute.xlu0 %1858
  %v1861 = vadd.f32 %v1740, %v1859
  %v1862 = vxor.u32 %v1861, 2147483648
  %v1863 = vmul.f32 %v1862, 1.442695
  %v1864 = vpow.pop %v1863
  %v1865 = vadd.f32 %v1864, 1.0
  %v1866 = vrcp.pop %v1865
  %v1867 = vmul.f32 1.0, %v1866
  %1868 = vrot.lane.b32.xlu0 %v1818, 96
  %v1869 = vpop.permute.xlu0 %1868
  %v1871 = vmul.f32 %v1856, %v1869
  %1873 = vrot.lane.b32.xlu0 %v1871, 64
  %v1874 = vpop.permute.xlu0 %1873
  %v1876 = vadd.f32 %v1740, %v1874
  %v1877 = vtanh.pop %v1876
  %v1878 = vsub.f32 1.0, %v1867
  %1880 = vrot.lane.b32.xlu0 %v1877, 96
  %v1881 = vpop.permute.xlu0 %1880
  %v1883 = vmul.f32 %v1878, %v1881
  %v1884 = vmul.f32 %v1867, %v1706
  %v1885 = vadd.f32 %v1883, %v1884
  %v1886 = vsel %vm1736, %v1885, %v1706
  %v1887 = vsel %vm1729, %v1845, 0.0
  %1889 = vrot.lane.b32.xlu0 %v1887, 96
  %v1890 = vpop.permute.xlu0 %1889
  %s1892 = scalar_lea.vmem %s5, 72
  %1893 = vst.msk [vmem:[%s1892] sm:$0xff] %vm109, %v1890
  %v1894 = vsel %vm1736, %v1885, 0.0
  %1896 = vrot.lane.b32.xlu0 %v1894, 96
  %v1897 = vpop.permute.xlu0 %1896
  %s1899 = scalar_lea.vmem %s56, 48
  %1900 = vst.msk [vmem:[%s1899] sm:$0xff] %vm109, %v1897
  %s1901 = sadd.s32 %s84, 10
  %s1902 = ssub.s32 5, %s84
  %v1903 = vstv %s1901
  %vm1904 = vcmp.gt.s32.totalorder %v66, %v1903
  %v1905 = vsel %vm1904, 1, 0
  %1906 = vset.pattern.permute.xlu0 0
  %1907 = vperm.xlu0 %1906, %v1905
  %v1908 = vpop.permute.xlu0 %1907
  %vm1909 = vcmp.eq.s32.totalorder %v1908, 1
  %v1910 = vstv %s1902
  %vm1911 = vcmp.gt.s32.totalorder %v66, %v1910
  %v1912 = vsel %vm1911, 1, 0
  %1913 = vset.pattern.permute.xlu0 0
  %1914 = vperm.xlu0 %1913, %v1912
  %v1915 = vpop.permute.xlu0 %1914
  %vm1916 = vcmp.eq.s32.totalorder %v1915, 1
  %s1917 = scalar_lea.vmem %s0, 80
  %v1918 = vld [vmem:[%s1917] sm:$0xff]
  %s1919 = scalar_lea.vmem %s48, 40
  %v1920 = vld [vmem:[%s1919] sm:$0xff]
  %1922 = vrot.lane.b32.xlu0 %v1846, 96
  %v1923 = vpop.permute.xlu0 %1922
  %v1925 = vsel %vm109, %v1923, %v1886
  %v1927 = vsel %vm122, %v1925, 0
  %1929 = vmatprep.subr.mxu0 %v68
  %1930 = vmatpush1.msra.mxu0 %v67
  %1931 = vmatprep.subr.mxu0 %v70
  %1932 = vmatpush1.msra.mxu0 %v69
  %1933 = vmatprep.subr.mxu0 %v72
  %1934 = vmatpush1.msra.mxu0 %v71
  %1935 = vmatprep.subr.mxu0 %v74
  %1936 = vmatpush1.msra.mxu0 %v73
  %1937 = vmatprep.subr.mxu0 %v76
  %1938 = vmatpush1.msra.mxu0 %v75
  %1939 = vmatprep.subr.mxu0 %v78
  %1940 = vmatpush1.msra.mxu0 %v77
  %1941 = vmatprep.subr.mxu0 %v80
  %1942 = vmatpush1.msra.mxu0 %v79
  %1943 = vmatprep.subr.mxu0 %v82
  %1944 = vmatpush1.msra.mxu0 %v81
  %1945 = vmatprep.subr.mxu0 0.0
  %1946 = vmatpush1.msra.mxu0 0.0
  %1947 = vmatprep.subr.mxu0 0.0
  %1948 = vmatpush1.msra.mxu0 0.0
  %1949 = vmatprep.subr.mxu0 0.0
  %1950 = vmatpush1.msra.mxu0 0.0
  %1951 = vmatprep.subr.mxu0 0.0
  %1952 = vmatpush1.msra.mxu0 0.0
  %1953 = vmatprep.subr.mxu0 0.0
  %1954 = vmatpush1.msra.mxu0 0.0
  %1955 = vmatprep.subr.mxu0 0.0
  %1956 = vmatpush1.msra.mxu0 0.0
  %1957 = vmatprep.subr.mxu0 0.0
  %1958 = vmatpush1.msra.mxu0 0.0
  %1959 = vmatprep.subr.mxu0 0.0
  %1960 = vmatpush1.msra.mxu0 0.0
  %1961 = vmatprep.subr.mxu0 0.0
  %1962 = vmatpush1.msra.mxu0 0.0
  %1963 = vmatprep.subr.mxu0 0.0
  %1964 = vmatpush1.msra.mxu0 0.0
  %1965 = vmatprep.subr.mxu0 0.0
  %1966 = vmatpush1.msra.mxu0 0.0
  %1967 = vmatprep.subr.mxu0 0.0
  %1968 = vmatpush1.msra.mxu0 0.0
  %1969 = vmatprep.subr.mxu0 0.0
  %1970 = vmatpush1.msra.mxu0 0.0
  %1971 = vmatprep.subr.mxu0 0.0
  %1972 = vmatpush1.msra.mxu0 0.0
  %1973 = vmatprep.subr.mxu0 0.0
  %1974 = vmatpush1.msra.mxu0 0.0
  %1975 = vmatprep.subr.mxu0 0.0
  %1976 = vmatpush1.msra.mxu0 0.0
  %1977 = vmatprep.subr.mxu0 0.0
  %1978 = vmatpush1.msra.mxu0 0.0
  %1979 = vmatprep.subr.mxu0 0.0
  %1980 = vmatpush1.msra.mxu0 0.0
  %1981 = vmatprep.subr.mxu0 0.0
  %1982 = vmatpush1.msra.mxu0 0.0
  %1983 = vmatprep.subr.mxu0 0.0
  %1984 = vmatpush1.msra.mxu0 0.0
  %1985 = vmatprep.subr.mxu0 0.0
  %1986 = vmatpush1.msra.mxu0 0.0
  %1987 = vmatprep.subr.mxu0 0.0
  %1988 = vmatpush1.msra.mxu0 0.0
  %1989 = vmatprep.subr.mxu0 0.0
  %1990 = vmatpush1.msra.mxu0 0.0
  %1991 = vmatprep.subr.mxu0 0.0
  %1992 = vmatpush1.msra.mxu0 0.0
  %1993 = vmatprep.mubr.f32.mxu0 0.0
  %1994 = vmatmul.mubr.f32.gmra.mrb[0].mxu0 %v1927
  %v1995 = vpop.f32.mrb[0].mxu0
  %v1996 = vadd.f32 %v115, %v1995
  %v1997 = vpop.f32.mrb[0].mxu0
  %v1998 = vadd.f32 %v119, %v1997
  %1999 = vdwg.mxu0
  %v2000 = vadd.f32 %v1918, %v1996
  %v2001 = vxor.u32 %v2000, 2147483648
  %v2002 = vmul.f32 %v2001, 1.442695
  %v2003 = vpow.pop %v2002
  %v2004 = vadd.f32 %v2003, 1.0
  %v2005 = vrcp.pop %v2004
  %v2006 = vmul.f32 1.0, %v2005
  %2008 = vrot.lane.b32.xlu0 %v1996, 64
  %v2009 = vpop.permute.xlu0 %2008
  %v2011 = vmul.f32 %v2006, %v2009
  %2013 = vrot.lane.b32.xlu0 %v2011, 64
  %v2014 = vpop.permute.xlu0 %2013
  %v2016 = vadd.f32 %v1918, %v2014
  %v2017 = vtanh.pop %v2016
  %v2018 = vsub.f32 1.0, %v2006
  %2020 = vrot.lane.b32.xlu0 %v2017, 96
  %v2021 = vpop.permute.xlu0 %2020
  %v2023 = vmul.f32 %v2018, %v2021
  %v2024 = vmul.f32 %v2006, %v1846
  %v2025 = vadd.f32 %v2023, %v2024
  %v2026 = vsel %vm1909, %v2025, %v1846
  %2027 = vrot.lane.b32.xlu0 %v1996, 32
  %v2028 = vpop.permute.xlu0 %2027
  %v2030 = vadd.f32 %v1920, %v2028
  %v2031 = vxor.u32 %v2030, 2147483648
  %v2032 = vmul.f32 %v2031, 1.442695
  %v2033 = vpow.pop %v2032
  %v2034 = vadd.f32 %v2033, 1.0
  %v2035 = vrcp.pop %v2034
  %v2036 = vmul.f32 1.0, %v2035
  %2038 = vrot.lane.b32.xlu0 %v1998, 32
  %v2039 = vpop.permute.xlu0 %2038
  %v2041 = vadd.f32 %v1920, %v2039
  %v2042 = vxor.u32 %v2041, 2147483648
  %v2043 = vmul.f32 %v2042, 1.442695
  %v2044 = vpow.pop %v2043
  %v2045 = vadd.f32 %v2044, 1.0
  %v2046 = vrcp.pop %v2045
  %v2047 = vmul.f32 1.0, %v2046
  %2048 = vrot.lane.b32.xlu0 %v1998, 96
  %v2049 = vpop.permute.xlu0 %2048
  %v2051 = vmul.f32 %v2036, %v2049
  %2053 = vrot.lane.b32.xlu0 %v2051, 64
  %v2054 = vpop.permute.xlu0 %2053
  %v2056 = vadd.f32 %v1920, %v2054
  %v2057 = vtanh.pop %v2056
  %v2058 = vsub.f32 1.0, %v2047
  %2060 = vrot.lane.b32.xlu0 %v2057, 96
  %v2061 = vpop.permute.xlu0 %2060
  %v2063 = vmul.f32 %v2058, %v2061
  %v2064 = vmul.f32 %v2047, %v1886
  %v2065 = vadd.f32 %v2063, %v2064
  %v2066 = vsel %vm1916, %v2065, %v1886
  %v2067 = vsel %vm1909, %v2025, 0.0
  %2069 = vrot.lane.b32.xlu0 %v2067, 96
  %v2070 = vpop.permute.xlu0 %2069
  %s2072 = scalar_lea.vmem %s5, 80
  %2073 = vst.msk [vmem:[%s2072] sm:$0xff] %vm109, %v2070
  %v2074 = vsel %vm1916, %v2065, 0.0
  %2076 = vrot.lane.b32.xlu0 %v2074, 96
  %v2077 = vpop.permute.xlu0 %2076
  %s2079 = scalar_lea.vmem %s56, 40
  %2080 = vst.msk [vmem:[%s2079] sm:$0xff] %vm109, %v2077
  %s2081 = sadd.s32 %s84, 11
  %s2082 = ssub.s32 4, %s84
  %v2083 = vstv %s2081
  %vm2084 = vcmp.gt.s32.totalorder %v66, %v2083
  %v2085 = vsel %vm2084, 1, 0
  %2086 = vset.pattern.permute.xlu0 0
  %2087 = vperm.xlu0 %2086, %v2085
  %v2088 = vpop.permute.xlu0 %2087
  %vm2089 = vcmp.eq.s32.totalorder %v2088, 1
  %v2090 = vstv %s2082
  %vm2091 = vcmp.gt.s32.totalorder %v66, %v2090
  %v2092 = vsel %vm2091, 1, 0
  %2093 = vset.pattern.permute.xlu0 0
  %2094 = vperm.xlu0 %2093, %v2092
  %v2095 = vpop.permute.xlu0 %2094
  %vm2096 = vcmp.eq.s32.totalorder %v2095, 1
  %s2097 = scalar_lea.vmem %s0, 88
  %v2098 = vld [vmem:[%s2097] sm:$0xff]
  %s2099 = scalar_lea.vmem %s48, 32
  %v2100 = vld [vmem:[%s2099] sm:$0xff]
  %2102 = vrot.lane.b32.xlu0 %v2026, 96
  %v2103 = vpop.permute.xlu0 %2102
  %v2105 = vsel %vm109, %v2103, %v2066
  %v2107 = vsel %vm122, %v2105, 0
  %2109 = vmatprep.subr.mxu0 %v68
  %2110 = vmatpush1.msra.mxu0 %v67
  %2111 = vmatprep.subr.mxu0 %v70
  %2112 = vmatpush1.msra.mxu0 %v69
  %2113 = vmatprep.subr.mxu0 %v72
  %2114 = vmatpush1.msra.mxu0 %v71
  %2115 = vmatprep.subr.mxu0 %v74
  %2116 = vmatpush1.msra.mxu0 %v73
  %2117 = vmatprep.subr.mxu0 %v76
  %2118 = vmatpush1.msra.mxu0 %v75
  %2119 = vmatprep.subr.mxu0 %v78
  %2120 = vmatpush1.msra.mxu0 %v77
  %2121 = vmatprep.subr.mxu0 %v80
  %2122 = vmatpush1.msra.mxu0 %v79
  %2123 = vmatprep.subr.mxu0 %v82
  %2124 = vmatpush1.msra.mxu0 %v81
  %2125 = vmatprep.subr.mxu0 0.0
  %2126 = vmatpush1.msra.mxu0 0.0
  %2127 = vmatprep.subr.mxu0 0.0
  %2128 = vmatpush1.msra.mxu0 0.0
  %2129 = vmatprep.subr.mxu0 0.0
  %2130 = vmatpush1.msra.mxu0 0.0
  %2131 = vmatprep.subr.mxu0 0.0
  %2132 = vmatpush1.msra.mxu0 0.0
  %2133 = vmatprep.subr.mxu0 0.0
  %2134 = vmatpush1.msra.mxu0 0.0
  %2135 = vmatprep.subr.mxu0 0.0
  %2136 = vmatpush1.msra.mxu0 0.0
  %2137 = vmatprep.subr.mxu0 0.0
  %2138 = vmatpush1.msra.mxu0 0.0
  %2139 = vmatprep.subr.mxu0 0.0
  %2140 = vmatpush1.msra.mxu0 0.0
  %2141 = vmatprep.subr.mxu0 0.0
  %2142 = vmatpush1.msra.mxu0 0.0
  %2143 = vmatprep.subr.mxu0 0.0
  %2144 = vmatpush1.msra.mxu0 0.0
  %2145 = vmatprep.subr.mxu0 0.0
  %2146 = vmatpush1.msra.mxu0 0.0
  %2147 = vmatprep.subr.mxu0 0.0
  %2148 = vmatpush1.msra.mxu0 0.0
  %2149 = vmatprep.subr.mxu0 0.0
  %2150 = vmatpush1.msra.mxu0 0.0
  %2151 = vmatprep.subr.mxu0 0.0
  %2152 = vmatpush1.msra.mxu0 0.0
  %2153 = vmatprep.subr.mxu0 0.0
  %2154 = vmatpush1.msra.mxu0 0.0
  %2155 = vmatprep.subr.mxu0 0.0
  %2156 = vmatpush1.msra.mxu0 0.0
  %2157 = vmatprep.subr.mxu0 0.0
  %2158 = vmatpush1.msra.mxu0 0.0
  %2159 = vmatprep.subr.mxu0 0.0
  %2160 = vmatpush1.msra.mxu0 0.0
  %2161 = vmatprep.subr.mxu0 0.0
  %2162 = vmatpush1.msra.mxu0 0.0
  %2163 = vmatprep.subr.mxu0 0.0
  %2164 = vmatpush1.msra.mxu0 0.0
  %2165 = vmatprep.subr.mxu0 0.0
  %2166 = vmatpush1.msra.mxu0 0.0
  %2167 = vmatprep.subr.mxu0 0.0
  %2168 = vmatpush1.msra.mxu0 0.0
  %2169 = vmatprep.subr.mxu0 0.0
  %2170 = vmatpush1.msra.mxu0 0.0
  %2171 = vmatprep.subr.mxu0 0.0
  %2172 = vmatpush1.msra.mxu0 0.0
  %2173 = vmatprep.mubr.f32.mxu0 0.0
  %2174 = vmatmul.mubr.f32.gmra.mrb[0].mxu0 %v2107
  %v2175 = vpop.f32.mrb[0].mxu0
  %v2176 = vadd.f32 %v115, %v2175
  %v2177 = vpop.f32.mrb[0].mxu0
  %v2178 = vadd.f32 %v119, %v2177
  %2179 = vdwg.mxu0
  %v2180 = vadd.f32 %v2098, %v2176
  %v2181 = vxor.u32 %v2180, 2147483648
  %v2182 = vmul.f32 %v2181, 1.442695
  %v2183 = vpow.pop %v2182
  %v2184 = vadd.f32 %v2183, 1.0
  %v2185 = vrcp.pop %v2184
  %v2186 = vmul.f32 1.0, %v2185
  %2188 = vrot.lane.b32.xlu0 %v2176, 64
  %v2189 = vpop.permute.xlu0 %2188
  %v2191 = vmul.f32 %v2186, %v2189
  %2193 = vrot.lane.b32.xlu0 %v2191, 64
  %v2194 = vpop.permute.xlu0 %2193
  %v2196 = vadd.f32 %v2098, %v2194
  %v2197 = vtanh.pop %v2196
  %v2198 = vsub.f32 1.0, %v2186
  %2200 = vrot.lane.b32.xlu0 %v2197, 96
  %v2201 = vpop.permute.xlu0 %2200
  %v2203 = vmul.f32 %v2198, %v2201
  %v2204 = vmul.f32 %v2186, %v2026
  %v2205 = vadd.f32 %v2203, %v2204
  %v2206 = vsel %vm2089, %v2205, %v2026
  %2207 = vrot.lane.b32.xlu0 %v2176, 32
  %v2208 = vpop.permute.xlu0 %2207
  %v2210 = vadd.f32 %v2100, %v2208
  %v2211 = vxor.u32 %v2210, 2147483648
  %v2212 = vmul.f32 %v2211, 1.442695
  %v2213 = vpow.pop %v2212
  %v2214 = vadd.f32 %v2213, 1.0
  %v2215 = vrcp.pop %v2214
  %v2216 = vmul.f32 1.0, %v2215
  %2218 = vrot.lane.b32.xlu0 %v2178, 32
  %v2219 = vpop.permute.xlu0 %2218
  %v2221 = vadd.f32 %v2100, %v2219
  %v2222 = vxor.u32 %v2221, 2147483648
  %v2223 = vmul.f32 %v2222, 1.442695
  %v2224 = vpow.pop %v2223
  %v2225 = vadd.f32 %v2224, 1.0
  %v2226 = vrcp.pop %v2225
  %v2227 = vmul.f32 1.0, %v2226
  %2228 = vrot.lane.b32.xlu0 %v2178, 96
  %v2229 = vpop.permute.xlu0 %2228
  %v2231 = vmul.f32 %v2216, %v2229
  %2233 = vrot.lane.b32.xlu0 %v2231, 64
  %v2234 = vpop.permute.xlu0 %2233
  %v2236 = vadd.f32 %v2100, %v2234
  %v2237 = vtanh.pop %v2236
  %v2238 = vsub.f32 1.0, %v2227
  %2240 = vrot.lane.b32.xlu0 %v2237, 96
  %v2241 = vpop.permute.xlu0 %2240
  %v2243 = vmul.f32 %v2238, %v2241
  %v2244 = vmul.f32 %v2227, %v2066
  %v2245 = vadd.f32 %v2243, %v2244
  %v2246 = vsel %vm2096, %v2245, %v2066
  %v2247 = vsel %vm2089, %v2205, 0.0
  %2249 = vrot.lane.b32.xlu0 %v2247, 96
  %v2250 = vpop.permute.xlu0 %2249
  %s2252 = scalar_lea.vmem %s5, 88
  %2253 = vst.msk [vmem:[%s2252] sm:$0xff] %vm109, %v2250
  %v2254 = vsel %vm2096, %v2245, 0.0
  %2256 = vrot.lane.b32.xlu0 %v2254, 96
  %v2257 = vpop.permute.xlu0 %2256
  %s2259 = scalar_lea.vmem %s56, 32
  %2260 = vst.msk [vmem:[%s2259] sm:$0xff] %vm109, %v2257
  %s2261 = sadd.s32 %s84, 12
  %s2262 = ssub.s32 3, %s84
  %v2263 = vstv %s2261
  %vm2264 = vcmp.gt.s32.totalorder %v66, %v2263
  %v2265 = vsel %vm2264, 1, 0
  %2266 = vset.pattern.permute.xlu0 0
  %2267 = vperm.xlu0 %2266, %v2265
  %v2268 = vpop.permute.xlu0 %2267
  %vm2269 = vcmp.eq.s32.totalorder %v2268, 1
  %v2270 = vstv %s2262
  %vm2271 = vcmp.gt.s32.totalorder %v66, %v2270
  %v2272 = vsel %vm2271, 1, 0
  %2273 = vset.pattern.permute.xlu0 0
  %2274 = vperm.xlu0 %2273, %v2272
  %v2275 = vpop.permute.xlu0 %2274
  %vm2276 = vcmp.eq.s32.totalorder %v2275, 1
  %s2277 = scalar_lea.vmem %s0, 96
  %v2278 = vld [vmem:[%s2277] sm:$0xff]
  %s2279 = scalar_lea.vmem %s48, 24
  %v2280 = vld [vmem:[%s2279] sm:$0xff]
  %2282 = vrot.lane.b32.xlu0 %v2206, 96
  %v2283 = vpop.permute.xlu0 %2282
  %v2285 = vsel %vm109, %v2283, %v2246
  %v2287 = vsel %vm122, %v2285, 0
  %2289 = vmatprep.subr.mxu0 %v68
  %2290 = vmatpush1.msra.mxu0 %v67
  %2291 = vmatprep.subr.mxu0 %v70
  %2292 = vmatpush1.msra.mxu0 %v69
  %2293 = vmatprep.subr.mxu0 %v72
  %2294 = vmatpush1.msra.mxu0 %v71
  %2295 = vmatprep.subr.mxu0 %v74
  %2296 = vmatpush1.msra.mxu0 %v73
  %2297 = vmatprep.subr.mxu0 %v76
  %2298 = vmatpush1.msra.mxu0 %v75
  %2299 = vmatprep.subr.mxu0 %v78
  %2300 = vmatpush1.msra.mxu0 %v77
  %2301 = vmatprep.subr.mxu0 %v80
  %2302 = vmatpush1.msra.mxu0 %v79
  %2303 = vmatprep.subr.mxu0 %v82
  %2304 = vmatpush1.msra.mxu0 %v81
  %2305 = vmatprep.subr.mxu0 0.0
  %2306 = vmatpush1.msra.mxu0 0.0
  %2307 = vmatprep.subr.mxu0 0.0
  %2308 = vmatpush1.msra.mxu0 0.0
  %2309 = vmatprep.subr.mxu0 0.0
  %2310 = vmatpush1.msra.mxu0 0.0
  %2311 = vmatprep.subr.mxu0 0.0
  %2312 = vmatpush1.msra.mxu0 0.0
  %2313 = vmatprep.subr.mxu0 0.0
  %2314 = vmatpush1.msra.mxu0 0.0
  %2315 = vmatprep.subr.mxu0 0.0
  %2316 = vmatpush1.msra.mxu0 0.0
  %2317 = vmatprep.subr.mxu0 0.0
  %2318 = vmatpush1.msra.mxu0 0.0
  %2319 = vmatprep.subr.mxu0 0.0
  %2320 = vmatpush1.msra.mxu0 0.0
  %2321 = vmatprep.subr.mxu0 0.0
  %2322 = vmatpush1.msra.mxu0 0.0
  %2323 = vmatprep.subr.mxu0 0.0
  %2324 = vmatpush1.msra.mxu0 0.0
  %2325 = vmatprep.subr.mxu0 0.0
  %2326 = vmatpush1.msra.mxu0 0.0
  %2327 = vmatprep.subr.mxu0 0.0
  %2328 = vmatpush1.msra.mxu0 0.0
  %2329 = vmatprep.subr.mxu0 0.0
  %2330 = vmatpush1.msra.mxu0 0.0
  %2331 = vmatprep.subr.mxu0 0.0
  %2332 = vmatpush1.msra.mxu0 0.0
  %2333 = vmatprep.subr.mxu0 0.0
  %2334 = vmatpush1.msra.mxu0 0.0
  %2335 = vmatprep.subr.mxu0 0.0
  %2336 = vmatpush1.msra.mxu0 0.0
  %2337 = vmatprep.subr.mxu0 0.0
  %2338 = vmatpush1.msra.mxu0 0.0
  %2339 = vmatprep.subr.mxu0 0.0
  %2340 = vmatpush1.msra.mxu0 0.0
  %2341 = vmatprep.subr.mxu0 0.0
  %2342 = vmatpush1.msra.mxu0 0.0
  %2343 = vmatprep.subr.mxu0 0.0
  %2344 = vmatpush1.msra.mxu0 0.0
  %2345 = vmatprep.subr.mxu0 0.0
  %2346 = vmatpush1.msra.mxu0 0.0
  %2347 = vmatprep.subr.mxu0 0.0
  %2348 = vmatpush1.msra.mxu0 0.0
  %2349 = vmatprep.subr.mxu0 0.0
  %2350 = vmatpush1.msra.mxu0 0.0
  %2351 = vmatprep.subr.mxu0 0.0
  %2352 = vmatpush1.msra.mxu0 0.0
  %2353 = vmatprep.mubr.f32.mxu0 0.0
  %2354 = vmatmul.mubr.f32.gmra.mrb[0].mxu0 %v2287
  %v2355 = vpop.f32.mrb[0].mxu0
  %v2356 = vadd.f32 %v115, %v2355
  %v2357 = vpop.f32.mrb[0].mxu0
  %v2358 = vadd.f32 %v119, %v2357
  %2359 = vdwg.mxu0
  %v2360 = vadd.f32 %v2278, %v2356
  %v2361 = vxor.u32 %v2360, 2147483648
  %v2362 = vmul.f32 %v2361, 1.442695
  %v2363 = vpow.pop %v2362
  %v2364 = vadd.f32 %v2363, 1.0
  %v2365 = vrcp.pop %v2364
  %v2366 = vmul.f32 1.0, %v2365
  %2368 = vrot.lane.b32.xlu0 %v2356, 64
  %v2369 = vpop.permute.xlu0 %2368
  %v2371 = vmul.f32 %v2366, %v2369
  %2373 = vrot.lane.b32.xlu0 %v2371, 64
  %v2374 = vpop.permute.xlu0 %2373
  %v2376 = vadd.f32 %v2278, %v2374
  %v2377 = vtanh.pop %v2376
  %v2378 = vsub.f32 1.0, %v2366
  %2380 = vrot.lane.b32.xlu0 %v2377, 96
  %v2381 = vpop.permute.xlu0 %2380
  %v2383 = vmul.f32 %v2378, %v2381
  %v2384 = vmul.f32 %v2366, %v2206
  %v2385 = vadd.f32 %v2383, %v2384
  %v2386 = vsel %vm2269, %v2385, %v2206
  %2387 = vrot.lane.b32.xlu0 %v2356, 32
  %v2388 = vpop.permute.xlu0 %2387
  %v2390 = vadd.f32 %v2280, %v2388
  %v2391 = vxor.u32 %v2390, 2147483648
  %v2392 = vmul.f32 %v2391, 1.442695
  %v2393 = vpow.pop %v2392
  %v2394 = vadd.f32 %v2393, 1.0
  %v2395 = vrcp.pop %v2394
  %v2396 = vmul.f32 1.0, %v2395
  %2398 = vrot.lane.b32.xlu0 %v2358, 32
  %v2399 = vpop.permute.xlu0 %2398
  %v2401 = vadd.f32 %v2280, %v2399
  %v2402 = vxor.u32 %v2401, 2147483648
  %v2403 = vmul.f32 %v2402, 1.442695
  %v2404 = vpow.pop %v2403
  %v2405 = vadd.f32 %v2404, 1.0
  %v2406 = vrcp.pop %v2405
  %v2407 = vmul.f32 1.0, %v2406
  %2408 = vrot.lane.b32.xlu0 %v2358, 96
  %v2409 = vpop.permute.xlu0 %2408
  %v2411 = vmul.f32 %v2396, %v2409
  %2413 = vrot.lane.b32.xlu0 %v2411, 64
  %v2414 = vpop.permute.xlu0 %2413
  %v2416 = vadd.f32 %v2280, %v2414
  %v2417 = vtanh.pop %v2416
  %v2418 = vsub.f32 1.0, %v2407
  %2420 = vrot.lane.b32.xlu0 %v2417, 96
  %v2421 = vpop.permute.xlu0 %2420
  %v2423 = vmul.f32 %v2418, %v2421
  %v2424 = vmul.f32 %v2407, %v2246
  %v2425 = vadd.f32 %v2423, %v2424
  %v2426 = vsel %vm2276, %v2425, %v2246
  %v2427 = vsel %vm2269, %v2385, 0.0
  %2429 = vrot.lane.b32.xlu0 %v2427, 96
  %v2430 = vpop.permute.xlu0 %2429
  %s2432 = scalar_lea.vmem %s5, 96
  %2433 = vst.msk [vmem:[%s2432] sm:$0xff] %vm109, %v2430
  %v2434 = vsel %vm2276, %v2425, 0.0
  %2436 = vrot.lane.b32.xlu0 %v2434, 96
  %v2437 = vpop.permute.xlu0 %2436
  %s2439 = scalar_lea.vmem %s56, 24
  %2440 = vst.msk [vmem:[%s2439] sm:$0xff] %vm109, %v2437
  %s2441 = sadd.s32 %s84, 13
  %s2442 = ssub.s32 2, %s84
  %v2443 = vstv %s2441
  %vm2444 = vcmp.gt.s32.totalorder %v66, %v2443
  %v2445 = vsel %vm2444, 1, 0
  %2446 = vset.pattern.permute.xlu0 0
  %2447 = vperm.xlu0 %2446, %v2445
  %v2448 = vpop.permute.xlu0 %2447
  %vm2449 = vcmp.eq.s32.totalorder %v2448, 1
  %v2450 = vstv %s2442
  %vm2451 = vcmp.gt.s32.totalorder %v66, %v2450
  %v2452 = vsel %vm2451, 1, 0
  %2453 = vset.pattern.permute.xlu0 0
  %2454 = vperm.xlu0 %2453, %v2452
  %v2455 = vpop.permute.xlu0 %2454
  %vm2456 = vcmp.eq.s32.totalorder %v2455, 1
  %s2457 = scalar_lea.vmem %s0, 104
  %v2458 = vld [vmem:[%s2457] sm:$0xff]
  %s2459 = scalar_lea.vmem %s48, 16
  %v2460 = vld [vmem:[%s2459] sm:$0xff]
  %2462 = vrot.lane.b32.xlu0 %v2386, 96
  %v2463 = vpop.permute.xlu0 %2462
  %v2465 = vsel %vm109, %v2463, %v2426
  %v2467 = vsel %vm122, %v2465, 0
  %2469 = vmatprep.subr.mxu0 %v68
  %2470 = vmatpush1.msra.mxu0 %v67
  %2471 = vmatprep.subr.mxu0 %v70
  %2472 = vmatpush1.msra.mxu0 %v69
  %2473 = vmatprep.subr.mxu0 %v72
  %2474 = vmatpush1.msra.mxu0 %v71
  %2475 = vmatprep.subr.mxu0 %v74
  %2476 = vmatpush1.msra.mxu0 %v73
  %2477 = vmatprep.subr.mxu0 %v76
  %2478 = vmatpush1.msra.mxu0 %v75
  %2479 = vmatprep.subr.mxu0 %v78
  %2480 = vmatpush1.msra.mxu0 %v77
  %2481 = vmatprep.subr.mxu0 %v80
  %2482 = vmatpush1.msra.mxu0 %v79
  %2483 = vmatprep.subr.mxu0 %v82
  %2484 = vmatpush1.msra.mxu0 %v81
  %2485 = vmatprep.subr.mxu0 0.0
  %2486 = vmatpush1.msra.mxu0 0.0
  %2487 = vmatprep.subr.mxu0 0.0
  %2488 = vmatpush1.msra.mxu0 0.0
  %2489 = vmatprep.subr.mxu0 0.0
  %2490 = vmatpush1.msra.mxu0 0.0
  %2491 = vmatprep.subr.mxu0 0.0
  %2492 = vmatpush1.msra.mxu0 0.0
  %2493 = vmatprep.subr.mxu0 0.0
  %2494 = vmatpush1.msra.mxu0 0.0
  %2495 = vmatprep.subr.mxu0 0.0
  %2496 = vmatpush1.msra.mxu0 0.0
  %2497 = vmatprep.subr.mxu0 0.0
  %2498 = vmatpush1.msra.mxu0 0.0
  %2499 = vmatprep.subr.mxu0 0.0
  %2500 = vmatpush1.msra.mxu0 0.0
  %2501 = vmatprep.subr.mxu0 0.0
  %2502 = vmatpush1.msra.mxu0 0.0
  %2503 = vmatprep.subr.mxu0 0.0
  %2504 = vmatpush1.msra.mxu0 0.0
  %2505 = vmatprep.subr.mxu0 0.0
  %2506 = vmatpush1.msra.mxu0 0.0
  %2507 = vmatprep.subr.mxu0 0.0
  %2508 = vmatpush1.msra.mxu0 0.0
  %2509 = vmatprep.subr.mxu0 0.0
  %2510 = vmatpush1.msra.mxu0 0.0
  %2511 = vmatprep.subr.mxu0 0.0
  %2512 = vmatpush1.msra.mxu0 0.0
  %2513 = vmatprep.subr.mxu0 0.0
  %2514 = vmatpush1.msra.mxu0 0.0
  %2515 = vmatprep.subr.mxu0 0.0
  %2516 = vmatpush1.msra.mxu0 0.0
  %2517 = vmatprep.subr.mxu0 0.0
  %2518 = vmatpush1.msra.mxu0 0.0
  %2519 = vmatprep.subr.mxu0 0.0
  %2520 = vmatpush1.msra.mxu0 0.0
  %2521 = vmatprep.subr.mxu0 0.0
  %2522 = vmatpush1.msra.mxu0 0.0
  %2523 = vmatprep.subr.mxu0 0.0
  %2524 = vmatpush1.msra.mxu0 0.0
  %2525 = vmatprep.subr.mxu0 0.0
  %2526 = vmatpush1.msra.mxu0 0.0
  %2527 = vmatprep.subr.mxu0 0.0
  %2528 = vmatpush1.msra.mxu0 0.0
  %2529 = vmatprep.subr.mxu0 0.0
  %2530 = vmatpush1.msra.mxu0 0.0
  %2531 = vmatprep.subr.mxu0 0.0
  %2532 = vmatpush1.msra.mxu0 0.0
  %2533 = vmatprep.mubr.f32.mxu0 0.0
  %2534 = vmatmul.mubr.f32.gmra.mrb[0].mxu0 %v2467
  %v2535 = vpop.f32.mrb[0].mxu0
  %v2536 = vadd.f32 %v115, %v2535
  %v2537 = vpop.f32.mrb[0].mxu0
  %v2538 = vadd.f32 %v119, %v2537
  %2539 = vdwg.mxu0
  %v2540 = vadd.f32 %v2458, %v2536
  %v2541 = vxor.u32 %v2540, 2147483648
  %v2542 = vmul.f32 %v2541, 1.442695
  %v2543 = vpow.pop %v2542
  %v2544 = vadd.f32 %v2543, 1.0
  %v2545 = vrcp.pop %v2544
  %v2546 = vmul.f32 1.0, %v2545
  %2548 = vrot.lane.b32.xlu0 %v2536, 64
  %v2549 = vpop.permute.xlu0 %2548
  %v2551 = vmul.f32 %v2546, %v2549
  %2553 = vrot.lane.b32.xlu0 %v2551, 64
  %v2554 = vpop.permute.xlu0 %2553
  %v2556 = vadd.f32 %v2458, %v2554
  %v2557 = vtanh.pop %v2556
  %v2558 = vsub.f32 1.0, %v2546
  %2560 = vrot.lane.b32.xlu0 %v2557, 96
  %v2561 = vpop.permute.xlu0 %2560
  %v2563 = vmul.f32 %v2558, %v2561
  %v2564 = vmul.f32 %v2546, %v2386
  %v2565 = vadd.f32 %v2563, %v2564
  %v2566 = vsel %vm2449, %v2565, %v2386
  %2567 = vrot.lane.b32.xlu0 %v2536, 32
  %v2568 = vpop.permute.xlu0 %2567
  %v2570 = vadd.f32 %v2460, %v2568
  %v2571 = vxor.u32 %v2570, 2147483648
  %v2572 = vmul.f32 %v2571, 1.442695
  %v2573 = vpow.pop %v2572
  %v2574 = vadd.f32 %v2573, 1.0
  %v2575 = vrcp.pop %v2574
  %v2576 = vmul.f32 1.0, %v2575
  %2578 = vrot.lane.b32.xlu0 %v2538, 32
  %v2579 = vpop.permute.xlu0 %2578
  %v2581 = vadd.f32 %v2460, %v2579
  %v2582 = vxor.u32 %v2581, 2147483648
  %v2583 = vmul.f32 %v2582, 1.442695
  %v2584 = vpow.pop %v2583
  %v2585 = vadd.f32 %v2584, 1.0
  %v2586 = vrcp.pop %v2585
  %v2587 = vmul.f32 1.0, %v2586
  %2588 = vrot.lane.b32.xlu0 %v2538, 96
  %v2589 = vpop.permute.xlu0 %2588
  %v2591 = vmul.f32 %v2576, %v2589
  %2593 = vrot.lane.b32.xlu0 %v2591, 64
  %v2594 = vpop.permute.xlu0 %2593
  %v2596 = vadd.f32 %v2460, %v2594
  %v2597 = vtanh.pop %v2596
  %v2598 = vsub.f32 1.0, %v2587
  %2600 = vrot.lane.b32.xlu0 %v2597, 96
  %v2601 = vpop.permute.xlu0 %2600
  %v2603 = vmul.f32 %v2598, %v2601
  %v2604 = vmul.f32 %v2587, %v2426
  %v2605 = vadd.f32 %v2603, %v2604
  %v2606 = vsel %vm2456, %v2605, %v2426
  %v2607 = vsel %vm2449, %v2565, 0.0
  %2609 = vrot.lane.b32.xlu0 %v2607, 96
  %v2610 = vpop.permute.xlu0 %2609
  %s2612 = scalar_lea.vmem %s5, 104
  %2613 = vst.msk [vmem:[%s2612] sm:$0xff] %vm109, %v2610
  %v2614 = vsel %vm2456, %v2605, 0.0
  %2616 = vrot.lane.b32.xlu0 %v2614, 96
  %v2617 = vpop.permute.xlu0 %2616
  %s2619 = scalar_lea.vmem %s56, 16
  %2620 = vst.msk [vmem:[%s2619] sm:$0xff] %vm109, %v2617
  %s2621 = sadd.s32 %s84, 14
  %s2622 = ssub.s32 1, %s84
  %v2623 = vstv %s2621
  %vm2624 = vcmp.gt.s32.totalorder %v66, %v2623
  %v2625 = vsel %vm2624, 1, 0
  %2626 = vset.pattern.permute.xlu0 0
  %2627 = vperm.xlu0 %2626, %v2625
  %v2628 = vpop.permute.xlu0 %2627
  %vm2629 = vcmp.eq.s32.totalorder %v2628, 1
  %v2630 = vstv %s2622
  %vm2631 = vcmp.gt.s32.totalorder %v66, %v2630
  %v2632 = vsel %vm2631, 1, 0
  %2633 = vset.pattern.permute.xlu0 0
  %2634 = vperm.xlu0 %2633, %v2632
  %v2635 = vpop.permute.xlu0 %2634
  %vm2636 = vcmp.eq.s32.totalorder %v2635, 1
  %s2637 = scalar_lea.vmem %s0, 112
  %v2638 = vld [vmem:[%s2637] sm:$0xff]
  %s2639 = scalar_lea.vmem %s48, 8
  %v2640 = vld [vmem:[%s2639] sm:$0xff]
  %2642 = vrot.lane.b32.xlu0 %v2566, 96
  %v2643 = vpop.permute.xlu0 %2642
  %v2645 = vsel %vm109, %v2643, %v2606
  %v2647 = vsel %vm122, %v2645, 0
  %2649 = vmatprep.subr.mxu0 %v68
  %2650 = vmatpush1.msra.mxu0 %v67
  %2651 = vmatprep.subr.mxu0 %v70
  %2652 = vmatpush1.msra.mxu0 %v69
  %2653 = vmatprep.subr.mxu0 %v72
  %2654 = vmatpush1.msra.mxu0 %v71
  %2655 = vmatprep.subr.mxu0 %v74
  %2656 = vmatpush1.msra.mxu0 %v73
  %2657 = vmatprep.subr.mxu0 %v76
  %2658 = vmatpush1.msra.mxu0 %v75
  %2659 = vmatprep.subr.mxu0 %v78
  %2660 = vmatpush1.msra.mxu0 %v77
  %2661 = vmatprep.subr.mxu0 %v80
  %2662 = vmatpush1.msra.mxu0 %v79
  %2663 = vmatprep.subr.mxu0 %v82
  %2664 = vmatpush1.msra.mxu0 %v81
  %2665 = vmatprep.subr.mxu0 0.0
  %2666 = vmatpush1.msra.mxu0 0.0
  %2667 = vmatprep.subr.mxu0 0.0
  %2668 = vmatpush1.msra.mxu0 0.0
  %2669 = vmatprep.subr.mxu0 0.0
  %2670 = vmatpush1.msra.mxu0 0.0
  %2671 = vmatprep.subr.mxu0 0.0
  %2672 = vmatpush1.msra.mxu0 0.0
  %2673 = vmatprep.subr.mxu0 0.0
  %2674 = vmatpush1.msra.mxu0 0.0
  %2675 = vmatprep.subr.mxu0 0.0
  %2676 = vmatpush1.msra.mxu0 0.0
  %2677 = vmatprep.subr.mxu0 0.0
  %2678 = vmatpush1.msra.mxu0 0.0
  %2679 = vmatprep.subr.mxu0 0.0
  %2680 = vmatpush1.msra.mxu0 0.0
  %2681 = vmatprep.subr.mxu0 0.0
  %2682 = vmatpush1.msra.mxu0 0.0
  %2683 = vmatprep.subr.mxu0 0.0
  %2684 = vmatpush1.msra.mxu0 0.0
  %2685 = vmatprep.subr.mxu0 0.0
  %2686 = vmatpush1.msra.mxu0 0.0
  %2687 = vmatprep.subr.mxu0 0.0
  %2688 = vmatpush1.msra.mxu0 0.0
  %2689 = vmatprep.subr.mxu0 0.0
  %2690 = vmatpush1.msra.mxu0 0.0
  %2691 = vmatprep.subr.mxu0 0.0
  %2692 = vmatpush1.msra.mxu0 0.0
  %2693 = vmatprep.subr.mxu0 0.0
  %2694 = vmatpush1.msra.mxu0 0.0
  %2695 = vmatprep.subr.mxu0 0.0
  %2696 = vmatpush1.msra.mxu0 0.0
  %2697 = vmatprep.subr.mxu0 0.0
  %2698 = vmatpush1.msra.mxu0 0.0
  %2699 = vmatprep.subr.mxu0 0.0
  %2700 = vmatpush1.msra.mxu0 0.0
  %2701 = vmatprep.subr.mxu0 0.0
  %2702 = vmatpush1.msra.mxu0 0.0
  %2703 = vmatprep.subr.mxu0 0.0
  %2704 = vmatpush1.msra.mxu0 0.0
  %2705 = vmatprep.subr.mxu0 0.0
  %2706 = vmatpush1.msra.mxu0 0.0
  %2707 = vmatprep.subr.mxu0 0.0
  %2708 = vmatpush1.msra.mxu0 0.0
  %2709 = vmatprep.subr.mxu0 0.0
  %2710 = vmatpush1.msra.mxu0 0.0
  %2711 = vmatprep.subr.mxu0 0.0
  %2712 = vmatpush1.msra.mxu0 0.0
  %2713 = vmatprep.mubr.f32.mxu0 0.0
  %2714 = vmatmul.mubr.f32.gmra.mrb[0].mxu0 %v2647
  %v2715 = vpop.f32.mrb[0].mxu0
  %v2716 = vadd.f32 %v115, %v2715
  %v2717 = vpop.f32.mrb[0].mxu0
  %v2718 = vadd.f32 %v119, %v2717
  %2719 = vdwg.mxu0
  %v2720 = vadd.f32 %v2638, %v2716
  %v2721 = vxor.u32 %v2720, 2147483648
  %v2722 = vmul.f32 %v2721, 1.442695
  %v2723 = vpow.pop %v2722
  %v2724 = vadd.f32 %v2723, 1.0
  %v2725 = vrcp.pop %v2724
  %v2726 = vmul.f32 1.0, %v2725
  %2728 = vrot.lane.b32.xlu0 %v2716, 64
  %v2729 = vpop.permute.xlu0 %2728
  %v2731 = vmul.f32 %v2726, %v2729
  %2733 = vrot.lane.b32.xlu0 %v2731, 64
  %v2734 = vpop.permute.xlu0 %2733
  %v2736 = vadd.f32 %v2638, %v2734
  %v2737 = vtanh.pop %v2736
  %v2738 = vsub.f32 1.0, %v2726
  %2740 = vrot.lane.b32.xlu0 %v2737, 96
  %v2741 = vpop.permute.xlu0 %2740
  %v2743 = vmul.f32 %v2738, %v2741
  %v2744 = vmul.f32 %v2726, %v2566
  %v2745 = vadd.f32 %v2743, %v2744
  %v2746 = vsel %vm2629, %v2745, %v2566
  %2747 = vrot.lane.b32.xlu0 %v2716, 32
  %v2748 = vpop.permute.xlu0 %2747
  %v2750 = vadd.f32 %v2640, %v2748
  %v2751 = vxor.u32 %v2750, 2147483648
  %v2752 = vmul.f32 %v2751, 1.442695
  %v2753 = vpow.pop %v2752
  %v2754 = vadd.f32 %v2753, 1.0
  %v2755 = vrcp.pop %v2754
  %v2756 = vmul.f32 1.0, %v2755
  %2758 = vrot.lane.b32.xlu0 %v2718, 32
  %v2759 = vpop.permute.xlu0 %2758
  %v2761 = vadd.f32 %v2640, %v2759
  %v2762 = vxor.u32 %v2761, 2147483648
  %v2763 = vmul.f32 %v2762, 1.442695
  %v2764 = vpow.pop %v2763
  %v2765 = vadd.f32 %v2764, 1.0
  %v2766 = vrcp.pop %v2765
  %v2767 = vmul.f32 1.0, %v2766
  %2768 = vrot.lane.b32.xlu0 %v2718, 96
  %v2769 = vpop.permute.xlu0 %2768
  %v2771 = vmul.f32 %v2756, %v2769
  %2773 = vrot.lane.b32.xlu0 %v2771, 64
  %v2774 = vpop.permute.xlu0 %2773
  %v2776 = vadd.f32 %v2640, %v2774
  %v2777 = vtanh.pop %v2776
  %v2778 = vsub.f32 1.0, %v2767
  %2780 = vrot.lane.b32.xlu0 %v2777, 96
  %v2781 = vpop.permute.xlu0 %2780
  %v2783 = vmul.f32 %v2778, %v2781
  %v2784 = vmul.f32 %v2767, %v2606
  %v2785 = vadd.f32 %v2783, %v2784
  %v2786 = vsel %vm2636, %v2785, %v2606
  %v2787 = vsel %vm2629, %v2745, 0.0
  %2789 = vrot.lane.b32.xlu0 %v2787, 96
  %v2790 = vpop.permute.xlu0 %2789
  %s2792 = scalar_lea.vmem %s5, 112
  %2793 = vst.msk [vmem:[%s2792] sm:$0xff] %vm109, %v2790
  %v2794 = vsel %vm2636, %v2785, 0.0
  %2796 = vrot.lane.b32.xlu0 %v2794, 96
  %v2797 = vpop.permute.xlu0 %2796
  %s2799 = scalar_lea.vmem %s56, 8
  %2800 = vst.msk [vmem:[%s2799] sm:$0xff] %vm109, %v2797
  %s2801 = sadd.s32 %s84, 15
  %s2802 = ssub.s32 0, %s84
  %v2803 = vstv %s2801
  %vm2804 = vcmp.gt.s32.totalorder %v66, %v2803
  %v2805 = vsel %vm2804, 1, 0
  %2806 = vset.pattern.permute.xlu0 0
  %2807 = vperm.xlu0 %2806, %v2805
  %v2808 = vpop.permute.xlu0 %2807
  %vm2809 = vcmp.eq.s32.totalorder %v2808, 1
  %v2810 = vstv %s2802
  %vm2811 = vcmp.gt.s32.totalorder %v66, %v2810
  %v2812 = vsel %vm2811, 1, 0
  %2813 = vset.pattern.permute.xlu0 0
  %2814 = vperm.xlu0 %2813, %v2812
  %v2815 = vpop.permute.xlu0 %2814
  %vm2816 = vcmp.eq.s32.totalorder %v2815, 1
  %s2817 = scalar_lea.vmem %s0, 120
  %v2818 = vld [vmem:[%s2817] sm:$0xff]
  %v2819 = vld [vmem:[%s48] sm:$0xff]
  %2821 = vrot.lane.b32.xlu0 %v2746, 96
  %v2822 = vpop.permute.xlu0 %2821
  %v2824 = vsel %vm109, %v2822, %v2786
  %v2826 = vsel %vm122, %v2824, 0
  %2828 = vmatprep.subr.mxu0 %v68
  %2829 = vmatpush1.msra.mxu0 %v67
  %2830 = vmatprep.subr.mxu0 %v70
  %2831 = vmatpush1.msra.mxu0 %v69
  %2832 = vmatprep.subr.mxu0 %v72
  %2833 = vmatpush1.msra.mxu0 %v71
  %2834 = vmatprep.subr.mxu0 %v74
  %2835 = vmatpush1.msra.mxu0 %v73
  %2836 = vmatprep.subr.mxu0 %v76
  %2837 = vmatpush1.msra.mxu0 %v75
  %2838 = vmatprep.subr.mxu0 %v78
  %2839 = vmatpush1.msra.mxu0 %v77
  %2840 = vmatprep.subr.mxu0 %v80
  %2841 = vmatpush1.msra.mxu0 %v79
  %2842 = vmatprep.subr.mxu0 %v82
  %2843 = vmatpush1.msra.mxu0 %v81
  %2844 = vmatprep.subr.mxu0 0.0
  %2845 = vmatpush1.msra.mxu0 0.0
  %2846 = vmatprep.subr.mxu0 0.0
  %2847 = vmatpush1.msra.mxu0 0.0
  %2848 = vmatprep.subr.mxu0 0.0
  %2849 = vmatpush1.msra.mxu0 0.0
  %2850 = vmatprep.subr.mxu0 0.0
  %2851 = vmatpush1.msra.mxu0 0.0
  %2852 = vmatprep.subr.mxu0 0.0
  %2853 = vmatpush1.msra.mxu0 0.0
  %2854 = vmatprep.subr.mxu0 0.0
  %2855 = vmatpush1.msra.mxu0 0.0
  %2856 = vmatprep.subr.mxu0 0.0
  %2857 = vmatpush1.msra.mxu0 0.0
  %2858 = vmatprep.subr.mxu0 0.0
  %2859 = vmatpush1.msra.mxu0 0.0
  %2860 = vmatprep.subr.mxu0 0.0
  %2861 = vmatpush1.msra.mxu0 0.0
  %2862 = vmatprep.subr.mxu0 0.0
  %2863 = vmatpush1.msra.mxu0 0.0
  %2864 = vmatprep.subr.mxu0 0.0
  %2865 = vmatpush1.msra.mxu0 0.0
  %2866 = vmatprep.subr.mxu0 0.0
  %2867 = vmatpush1.msra.mxu0 0.0
  %2868 = vmatprep.subr.mxu0 0.0
  %2869 = vmatpush1.msra.mxu0 0.0
  %2870 = vmatprep.subr.mxu0 0.0
  %2871 = vmatpush1.msra.mxu0 0.0
  %2872 = vmatprep.subr.mxu0 0.0
  %2873 = vmatpush1.msra.mxu0 0.0
  %2874 = vmatprep.subr.mxu0 0.0
  %2875 = vmatpush1.msra.mxu0 0.0
  %2876 = vmatprep.subr.mxu0 0.0
  %2877 = vmatpush1.msra.mxu0 0.0
  %2878 = vmatprep.subr.mxu0 0.0
  %2879 = vmatpush1.msra.mxu0 0.0
  %2880 = vmatprep.subr.mxu0 0.0
  %2881 = vmatpush1.msra.mxu0 0.0
  %2882 = vmatprep.subr.mxu0 0.0
  %2883 = vmatpush1.msra.mxu0 0.0
  %2884 = vmatprep.subr.mxu0 0.0
  %2885 = vmatpush1.msra.mxu0 0.0
  %2886 = vmatprep.subr.mxu0 0.0
  %2887 = vmatpush1.msra.mxu0 0.0
  %2888 = vmatprep.subr.mxu0 0.0
  %2889 = vmatpush1.msra.mxu0 0.0
  %2890 = vmatprep.subr.mxu0 0.0
  %2891 = vmatpush1.msra.mxu0 0.0
  %2892 = vmatprep.mubr.f32.mxu0 0.0
  %2893 = vmatmul.mubr.f32.gmra.mrb[0].mxu0 %v2826
  %v2894 = vpop.f32.mrb[0].mxu0
  %v2895 = vadd.f32 %v115, %v2894
  %v2896 = vpop.f32.mrb[0].mxu0
  %v2897 = vadd.f32 %v119, %v2896
  %2898 = vdwg.mxu0
  %v2899 = vadd.f32 %v2818, %v2895
  %v2900 = vxor.u32 %v2899, 2147483648
  %v2901 = vmul.f32 %v2900, 1.442695
  %v2902 = vpow.pop %v2901
  %v2903 = vadd.f32 %v2902, 1.0
  %v2904 = vrcp.pop %v2903
  %v2905 = vmul.f32 1.0, %v2904
  %2907 = vrot.lane.b32.xlu0 %v2895, 64
  %v2908 = vpop.permute.xlu0 %2907
  %v2910 = vmul.f32 %v2905, %v2908
  %2912 = vrot.lane.b32.xlu0 %v2910, 64
  %v2913 = vpop.permute.xlu0 %2912
  %v2915 = vadd.f32 %v2818, %v2913
  %v2916 = vtanh.pop %v2915
  %v2917 = vsub.f32 1.0, %v2905
  %2919 = vrot.lane.b32.xlu0 %v2916, 96
  %v2920 = vpop.permute.xlu0 %2919
  %v2922 = vmul.f32 %v2917, %v2920
  %v2923 = vmul.f32 %v2905, %v2746
  %v2924 = vadd.f32 %v2922, %v2923
  %v2925 = vsel %vm2809, %v2924, %v2746
  %2926 = vrot.lane.b32.xlu0 %v2895, 32
  %v2927 = vpop.permute.xlu0 %2926
  %v2929 = vadd.f32 %v2819, %v2927
  %v2930 = vxor.u32 %v2929, 2147483648
  %v2931 = vmul.f32 %v2930, 1.442695
  %v2932 = vpow.pop %v2931
  %v2933 = vadd.f32 %v2932, 1.0
  %v2934 = vrcp.pop %v2933
  %v2935 = vmul.f32 1.0, %v2934
  %2937 = vrot.lane.b32.xlu0 %v2897, 32
  %v2938 = vpop.permute.xlu0 %2937
  %v2940 = vadd.f32 %v2819, %v2938
  %v2941 = vxor.u32 %v2940, 2147483648
  %v2942 = vmul.f32 %v2941, 1.442695
  %v2943 = vpow.pop %v2942
  %v2944 = vadd.f32 %v2943, 1.0
  %v2945 = vrcp.pop %v2944
  %v2946 = vmul.f32 1.0, %v2945
  %2947 = vrot.lane.b32.xlu0 %v2897, 96
  %v2948 = vpop.permute.xlu0 %2947
  %v2950 = vmul.f32 %v2935, %v2948
  %2952 = vrot.lane.b32.xlu0 %v2950, 64
  %v2953 = vpop.permute.xlu0 %2952
  %v2955 = vadd.f32 %v2819, %v2953
  %v2956 = vtanh.pop %v2955
  %v2957 = vsub.f32 1.0, %v2946
  %2959 = vrot.lane.b32.xlu0 %v2956, 96
  %v2960 = vpop.permute.xlu0 %2959
  %v2962 = vmul.f32 %v2957, %v2960
  %v2963 = vmul.f32 %v2946, %v2786
  %v2964 = vadd.f32 %v2962, %v2963
  %v2965 = vsel %vm2816, %v2964, %v2786
  %v2966 = vsel %vm2809, %v2924, 0.0
  %2968 = vrot.lane.b32.xlu0 %v2966, 96
  %v2969 = vpop.permute.xlu0 %2968
  %s2971 = scalar_lea.vmem %s5, 120
  %2972 = vst.msk [vmem:[%s2971] sm:$0xff] %vm109, %v2969
  %v2973 = vsel %vm2816, %v2964, 0.0
  %2975 = vrot.lane.b32.xlu0 %v2973, 96
  %v2976 = vpop.permute.xlu0 %2975
  %2978 = vst.msk [vmem:[%s56] sm:$0xff] %vm109, %v2976
  %2980 = vrot.lane.b32.xlu0 %v2925, 96
  %v2981 = vpop.permute.xlu0 %2980
  %2983 = vst.msk [vmem:[#allocation2] sm:$0xff] %vm109, %v2981
  %2985 = vrot.lane.b32.xlu0 %v2965, 96
  %v2986 = vpop.permute.xlu0 %2985
  %2988 = vst.msk [vmem:[#allocation3] sm:$0xff] %vm109, %v2986
  // Predicated region
  $region26: #{recurrent_encoder_forward.1} parent=0 // pred_check
    %p2989 = pneg %p59
  $region27: #{recurrent_encoder_forward.1} parent=0 // pred_check_branch
    %2991 = sbr.rel (%p2989) target = $region29
  $region28: #{recurrent_encoder_forward.1} parent=0 // pred_region
    %2992 = vst.msk [vmem:[%s7] sm:$0xff] %vm109, %v2981
    %vm2993 = vcmask 523520
    %2994 = vst.msk [vmem:[%s7] sm:$0xff] %vm2993, %v2965
  $region29: #{recurrent_encoder_forward.1} parent=0 // pred_fallthru
    _
  %s2995 = ssub.s32 0, 0
  %s2996 = smul.u32 16, %s2995
  %p2997 = scmp.lt.s32.totalorder %s2996, 15
  %s2998 = scalar_select %p2997, %s2996, 15
  %s2999 = smul.addr %s2998, 8
  %s3000 = scalar_lea.vmem %s6, %s2999
  // Predicated region
  $region30: #{recurrent_encoder_forward.1} parent=0 // pred_check
    _
  $region31: #{recurrent_encoder_forward.1} parent=0 // pred_check_branch
    %3002 = sbr.rel (0) target = $region33
  $region32: #{recurrent_encoder_forward.1} parent=0 // pred_region
    _
  $region33: #{recurrent_encoder_forward.1} parent=0 // pred_fallthru
    _
  // Predicated region
  $region34: #{recurrent_encoder_forward.1} parent=0 // pred_check
    _
  $region35: #{recurrent_encoder_forward.1} parent=0 // pred_check_branch
    %3004 = sbr.rel (0) target = $region37
  $region36: #{recurrent_encoder_forward.1} parent=0 // pred_region
    %s3005 = ssub.s32 0, 0
    %s3006 = smul.u32 16, %s3005
  $region37: #{recurrent_encoder_forward.1} parent=0 // pred_fallthru
    _
  // Predicated region
  $region38: #{recurrent_encoder_forward.1} parent=0 // pred_check
    _
  $region39: #{recurrent_encoder_forward.1} parent=0 // pred_check_branch
    %3008 = sbr.rel (0) target = $region41
  $region40: #{recurrent_encoder_forward.1} parent=0 // pred_region
    _
  $region41: #{recurrent_encoder_forward.1} parent=0 // pred_fallthru
    _
  // Predicated region
  $region42: #{recurrent_encoder_forward.1} parent=0 // pred_check
    _
  $region43: #{recurrent_encoder_forward.1} parent=0 // pred_check_branch
    %3010 = sbr.rel (0) target = $region45
  $region44: #{recurrent_encoder_forward.1} parent=0 // pred_region
    _
  $region45: #{recurrent_encoder_forward.1} parent=0 // pred_fallthru
    _
  // Predicated region
  $region46: #{recurrent_encoder_forward.1} parent=0 // pred_check
    _
  $region47: #{recurrent_encoder_forward.1} parent=0 // pred_check_branch
    %3012 = sbr.rel (0) target = $region49
  $region48: #{recurrent_encoder_forward.1} parent=0 // pred_region
    %s3013 = ssub.s32 0, 0
    %s3014 = smul.u32 16, %s3013
    %p3015 = scmp.lt.s32.totalorder %s3014, 15
    %s3016 = scalar_select %p3015, %s3014, 15
    %s3017 = smul.addr %s3016, 8
    %s3018 = scalar_lea.vmem %s6, %s3017
  $region49: #{recurrent_encoder_forward.1} parent=0 // pred_fallthru
    _
  // Predicated region
  $region50: #{recurrent_encoder_forward.1} parent=0 // pred_check
    _
  $region51: #{recurrent_encoder_forward.1} parent=0 // pred_check_branch
    %3020 = sbr.rel (0) target = $region53
  $region52: #{recurrent_encoder_forward.1} parent=0 // pred_region
    _
  $region53: #{recurrent_encoder_forward.1} parent=0 // pred_fallthru
    _

</llo_original>
